<compile_context>
chip_gen: v7x
topology: tpu7x:2x2x1
jax: 0.10.0
libtpu: 0.0.40
codegen_flags: <defaults>
</compile_context>

<pallas_src>
import jax
import jax.numpy as jnp
from jax.experimental import pallas as pl
from jax.experimental.pallas import tpu as pltpu

BLOCK_SIZE = 128               # T == block_size (full prefill)
EMBED = 64                     # embed_size
NUM_HEAD = 4
HEAD_SIZE = EMBED // NUM_HEAD  # 16


def mha_kernel(x_ref, wqkv_ref, wph_ref, bp_ref, o_ref):
    # x_ref: (T, E) tile for one batch element (leading batch dim squeezed away).
    # wqkv_ref: (E, 3E) bf16 fused [Wq | Wk | Wv];  wph_ref: (H, hs, E) bf16 proj weight;
    # bp_ref: (1, E) f32 proj bias;  o_ref: (T, E) f32 output tile.
    T, E = x_ref.shape
    H, hs = NUM_HEAD, HEAD_SIZE

    x = x_ref[...].astype(jnp.bfloat16)
    # Single fused, lane-dense QKV projection: (T, E) @ (E, 3E) -> (T, 3E), f32 accumulate.
    qkv = jnp.dot(x, wqkv_ref[...], preferred_element_type=jnp.float32)

    # Re-pack into batched-head layout (H, T, hs) using static lane slices.
    q = jnp.stack([qkv[:, h * hs:(h + 1) * hs] for h in range(H)], axis=0)
    k = jnp.stack([qkv[:, E + h * hs:E + (h + 1) * hs] for h in range(H)], axis=0)
    v = jnp.stack([qkv[:, 2 * E + h * hs:2 * E + (h + 1) * hs] for h in range(H)], axis=0)

    # Scale q once (small tensor) instead of scaling every (T, T) score matrix.
    q = (q * (1.0 / (hs ** 0.5))).astype(jnp.bfloat16)
    k = k.astype(jnp.bfloat16)
    v = v.astype(jnp.bfloat16)

    row = jax.lax.broadcasted_iota(jnp.int32, (T, T), 0)
    col = jax.lax.broadcasted_iota(jnp.int32, (T, T), 1)
    causal = row >= col                                              # tril mask

    # Batched-over-heads score matmul, causal mask, numerically-stable softmax.
    s = jnp.einsum("htd,hsd->hts", q, k, preferred_element_type=jnp.float32)   # (H, T, T)
    s = jnp.where(causal[None, :, :], s, -jnp.inf)
    s = s - jnp.max(s, axis=-1, keepdims=True)
    p = jnp.exp(s)
    p = p * pl.reciprocal(jnp.sum(p, axis=-1, keepdims=True), approx=True)

    # (H, T, T) @ (H, T, hs) -> (H, T, hs)
    o = jnp.einsum("hts,hsd->htd", p.astype(jnp.bfloat16), v,
                   preferred_element_type=jnp.float32)

    # Per-head output projection + sum over heads replaces the lane-axis concat:
    #   concat_h(o_h) @ Wp == sum_h o_h @ Wp[h*hs:(h+1)*hs, :]
    y = jnp.einsum("htd,hde->hte", o.astype(jnp.bfloat16), wph_ref[...],
                   preferred_element_type=jnp.float32)               # (H, T, E)
    o_ref[...] = jnp.sum(y, axis=0) + bp_ref[...]


def multi_head_attention(x, wq, wk, wv, wp, bp):
    """x: (B, T, E) f32.  wq/wk/wv/wp: (E, E) f32, already transposed so x @ W projects
    (head h occupies output columns h*hs:(h+1)*hs).  bp: (1, E) f32.  Returns (B, T, E) f32."""
    B, T, E = x.shape
    # Weight packing / bf16 cast is one-time layout plumbing done in the wrapper.
    wqkv = jnp.concatenate([wq, wk, wv], axis=1).astype(jnp.bfloat16)        # (E, 3E)
    wph = wp.reshape(NUM_HEAD, HEAD_SIZE, E).astype(jnp.bfloat16)            # (H, hs, E)
    bp = bp.reshape(1, E).astype(jnp.float32)

    return pl.pallas_call(
        mha_kernel,
        out_shape=jax.ShapeDtypeStruct((B, T, E), jnp.float32),
        grid_spec=pltpu.PrefetchScalarGridSpec(
            num_scalar_prefetch=0,
            grid=(B,),                      # parallel over batch -> megacore shards on v7x
            in_specs=[
                pl.BlockSpec((None, T, E), lambda b: (b, 0, 0)),              # x (batch squeezed)
                pl.BlockSpec((E, 3 * E), lambda b: (0, 0)),                   # fused Wqkv (bf16)
                pl.BlockSpec((NUM_HEAD, HEAD_SIZE, E), lambda b: (0, 0, 0)),  # Wproj per head
                pl.BlockSpec((1, E), lambda b: (0, 0)),                       # bproj
            ],
            out_specs=pl.BlockSpec((None, T, E), lambda b: (b, 0, 0)),
        ),
        compiler_params=pltpu.CompilerParams(dimension_semantics=("parallel",)),
    )(x, wqkv, wph, bp)


def ref_mha(x, wq, wk, wv, wp, bp):
    """Plain-JAX reference matching the PyTorch forward (fresh cache, T == block_size)."""
    B, T, E = x.shape
    hp = jax.lax.Precision.HIGHEST
    q = jnp.einsum("bte,ef->btf", x, wq, precision=hp).reshape(B, T, NUM_HEAD, HEAD_SIZE)
    k = jnp.einsum("bte,ef->btf", x, wk, precision=hp).reshape(B, T, NUM_HEAD, HEAD_SIZE)
    v = jnp.einsum("bte,ef->btf", x, wv, precision=hp).reshape(B, T, NUM_HEAD, HEAD_SIZE)
    wei = jnp.einsum("bthd,bshd->bhts", q, k, precision=hp) / (HEAD_SIZE ** 0.5)
    mask = jnp.tril(jnp.ones((T, T), bool))
    wei = jnp.where(mask, wei, -jnp.inf)
    p = jax.nn.softmax(wei, axis=-1)
    out = jnp.einsum("bhts,bshd->bthd", p, v, precision=hp).reshape(B, T, E)
    return jnp.einsum("bte,ef->btf", out, wp, precision=hp) + bp


if __name__ == "__main__":
    B, T, E = 2, BLOCK_SIZE, EMBED
    key = jax.random.PRNGKey(0)
    kx, kq, kk, kv, kp, kb = jax.random.split(key, 6)

    x = jax.random.normal(kx, (B, T, E), jnp.float32)
    scale = 1.0 / (E ** 0.5)  # matches nn.Linear uniform(-1/sqrt(in), 1/sqrt(in)) scale
    # Per-head key/query/value weights concatenated along the output (column) axis,
    # already transposed so that x @ W gives the projection (head h -> cols h*hs:(h+1)*hs).
    wq = jax.random.uniform(kq, (E, E), jnp.float32, -scale, scale)
    wk = jax.random.uniform(kk, (E, E), jnp.float32, -scale, scale)
    wv = jax.random.uniform(kv, (E, E), jnp.float32, -scale, scale)
    wp = jax.random.uniform(kp, (E, E), jnp.float32, -scale, scale)
    bp = jax.random.uniform(kb, (1, E), jnp.float32, -scale, scale)

    # TODO(synk): the stateful k_cache/v_cache rolling-shift mutation across multiple
    # forward() calls and Dropout (p=0, identity here) are not modeled beyond this single
    # fresh full-block prefill step.

    out = multi_head_attention(x, wq, wk, wv, wp, bp)
    out = jax.block_until_ready(out)

    ref = ref_mha(x, wq, wk, wv, wp, bp)
    assert out.shape == (B, T, E)
    assert bool(jnp.all(jnp.isfinite(out)))
    assert bool(jnp.allclose(out, ref, rtol=5e-2, atol=5e-2)), "mismatch vs reference"

    print("KERNEL_OK")
</pallas_src>

<mosaic_0001>
module attributes {stable_mosaic.version = 11 : i64} {
  func.func @mha_kernel(%arg0: i32, %arg1: memref<1x128x64xf32, #tpu.memory_space<vmem>>, %arg2: memref<64x192xbf16, #tpu.memory_space<vmem>>, %arg3: memref<4x16x64xbf16, #tpu.memory_space<vmem>>, %arg4: memref<1x64xf32, #tpu.memory_space<vmem>>, %arg5: memref<1x128x64xf32, #tpu.memory_space<vmem>>) attributes {dimension_semantics = [#tpu.dimension_semantics<parallel>], iteration_bounds = array<i64: 2>, scalar_prefetch = 0 : i64, scratch_operands = 0 : i64, tpu.core_type = #tpu.core_type<tc>, window_params = [{transform_indices = @transform_0, window_bounds = array<i64: 1, 128, 64>}, {pipeline_mode = #tpu.pipeline_mode<synchronous>, transform_indices = @transform_1, window_bounds = array<i64: 64, 192>}, {pipeline_mode = #tpu.pipeline_mode<synchronous>, transform_indices = @transform_2, window_bounds = array<i64: 4, 16, 64>}, {pipeline_mode = #tpu.pipeline_mode<synchronous>, transform_indices = @transform_3, window_bounds = array<i64: 1, 64>}, {transform_indices = @transform_4, window_bounds = array<i64: 1, 128, 64>}]} {
    %c0 = arith.constant 0 : index
    %c0_0 = arith.constant 0 : index
    %c0_1 = arith.constant 0 : index
    %0 = vector.load %arg1[%c0, %c0_0, %c0_1] : memref<1x128x64xf32, #tpu.memory_space<vmem>>, vector<1x128x64xf32>
    %1 = vector.shape_cast %0 : vector<1x128x64xf32> to vector<128x64xf32>
    %2 = arith.truncf %1 : vector<128x64xf32> to vector<128x64xbf16>
    %c0_2 = arith.constant 0 : index
    %c0_3 = arith.constant 0 : index
    %3 = vector.load %arg2[%c0_2, %c0_3] : memref<64x192xbf16, #tpu.memory_space<vmem>>, vector<64x192xbf16>
    %cst = arith.constant dense<0.000000e+00> : vector<128x192xf32>
    %4 = tpu.matmul %2, %3, %cst {dimension_numbers = #tpu.dot_dimension_numbers<[1], [0], [0], [1], [0, 0, 1, 1], [], []>} : vector<128x64xbf16>, vector<64x192xbf16>, vector<128x192xf32> -> vector<128x192xf32>
    %5 = vector.extract_strided_slice %4 {offsets = [0, 0], sizes = [128, 16], strides = [1, 1]} : vector<128x192xf32> to vector<128x16xf32>
    %6 = vector.extract_strided_slice %4 {offsets = [0, 16], sizes = [128, 16], strides = [1, 1]} : vector<128x192xf32> to vector<128x16xf32>
    %7 = vector.extract_strided_slice %4 {offsets = [0, 32], sizes = [128, 16], strides = [1, 1]} : vector<128x192xf32> to vector<128x16xf32>
    %8 = vector.extract_strided_slice %4 {offsets = [0, 48], sizes = [128, 16], strides = [1, 1]} : vector<128x192xf32> to vector<128x16xf32>
    %9 = vector.shape_cast %5 : vector<128x16xf32> to vector<1x128x16xf32>
    %10 = vector.shape_cast %6 : vector<128x16xf32> to vector<1x128x16xf32>
    %11 = vector.shape_cast %7 : vector<128x16xf32> to vector<1x128x16xf32>
    %12 = vector.shape_cast %8 : vector<128x16xf32> to vector<1x128x16xf32>
    %13 = tpu.concatenate %9, %10, %11, %12 in 0 : vector<1x128x16xf32>, vector<1x128x16xf32>, vector<1x128x16xf32>, vector<1x128x16xf32> -> vector<4x128x16xf32>
    %14 = vector.extract_strided_slice %4 {offsets = [0, 64], sizes = [128, 16], strides = [1, 1]} : vector<128x192xf32> to vector<128x16xf32>
    %15 = vector.extract_strided_slice %4 {offsets = [0, 80], sizes = [128, 16], strides = [1, 1]} : vector<128x192xf32> to vector<128x16xf32>
    %16 = vector.extract_strided_slice %4 {offsets = [0, 96], sizes = [128, 16], strides = [1, 1]} : vector<128x192xf32> to vector<128x16xf32>
    %17 = vector.extract_strided_slice %4 {offsets = [0, 112], sizes = [128, 16], strides = [1, 1]} : vector<128x192xf32> to vector<128x16xf32>
    %18 = vector.shape_cast %14 : vector<128x16xf32> to vector<1x128x16xf32>
    %19 = vector.shape_cast %15 : vector<128x16xf32> to vector<1x128x16xf32>
    %20 = vector.shape_cast %16 : vector<128x16xf32> to vector<1x128x16xf32>
    %21 = vector.shape_cast %17 : vector<128x16xf32> to vector<1x128x16xf32>
    %22 = tpu.concatenate %18, %19, %20, %21 in 0 : vector<1x128x16xf32>, vector<1x128x16xf32>, vector<1x128x16xf32>, vector<1x128x16xf32> -> vector<4x128x16xf32>
    %23 = vector.extract_strided_slice %4 {offsets = [0, 128], sizes = [128, 16], strides = [1, 1]} : vector<128x192xf32> to vector<128x16xf32>
    %24 = vector.extract_strided_slice %4 {offsets = [0, 144], sizes = [128, 16], strides = [1, 1]} : vector<128x192xf32> to vector<128x16xf32>
    %25 = vector.extract_strided_slice %4 {offsets = [0, 160], sizes = [128, 16], strides = [1, 1]} : vector<128x192xf32> to vector<128x16xf32>
    %26 = vector.extract_strided_slice %4 {offsets = [0, 176], sizes = [128, 16], strides = [1, 1]} : vector<128x192xf32> to vector<128x16xf32>
    %27 = vector.shape_cast %23 : vector<128x16xf32> to vector<1x128x16xf32>
    %28 = vector.shape_cast %24 : vector<128x16xf32> to vector<1x128x16xf32>
    %29 = vector.shape_cast %25 : vector<128x16xf32> to vector<1x128x16xf32>
    %30 = vector.shape_cast %26 : vector<128x16xf32> to vector<1x128x16xf32>
    %31 = tpu.concatenate %27, %28, %29, %30 in 0 : vector<1x128x16xf32>, vector<1x128x16xf32>, vector<1x128x16xf32>, vector<1x128x16xf32> -> vector<4x128x16xf32>
    %cst_4 = arith.constant 2.500000e-01 : f32
    %32 = vector.broadcast %cst_4 : f32 to vector<4x128x16xf32>
    %33 = arith.mulf %13, %32 : vector<4x128x16xf32>
    %34 = arith.truncf %33 : vector<4x128x16xf32> to vector<4x128x16xbf16>
    %35 = arith.truncf %22 : vector<4x128x16xf32> to vector<4x128x16xbf16>
    %36 = arith.truncf %31 : vector<4x128x16xf32> to vector<4x128x16xbf16>
    %37 = tpu.iota {dimensions = array<i32: 0>} : vector<128x128xi32>
    %38 = tpu.iota {dimensions = array<i32: 1>} : vector<128x128xi32>
    %39 = arith.cmpi sge, %37, %38 : vector<128x128xi32>
    "tpu.trace_start"() <{level = 10 : i32, message = "htd,hsd->hts"}> : () -> ()
    %cst_5 = arith.constant dense<0.000000e+00> : vector<4x128x128xf32>
    %40 = tpu.matmul %34, %35, %cst_5 {dimension_numbers = #tpu.dot_dimension_numbers<[2], [2], [1], [1], [0, 0, 0, 1, 1, 1], [0], [0]>} : vector<4x128x16xbf16>, vector<4x128x16xbf16>, vector<4x128x128xf32> -> vector<4x128x128xf32>
    "tpu.trace_stop"() : () -> ()
    %41 = vector.shape_cast %39 : vector<128x128xi1> to vector<1x128x128xi1>
    %cst_6 = arith.constant 0xFF800000 : f32
    %42 = vector.shape_cast %41 : vector<1x128x128xi1> to vector<1x128x128xi1>
    %43 = vector.broadcast %42 : vector<1x128x128xi1> to vector<4x128x128xi1>
    %44 = vector.broadcast %cst_6 : f32 to vector<4x128x128xf32>
    %45 = arith.select %43, %40, %44 : vector<4x128x128xi1>, vector<4x128x128xf32>
    %cst_7 = arith.constant dense<0xFF800000> : vector<4x128xf32>
    %46 = vector.multi_reduction <maximumf>, %45, %cst_7 [2] : vector<4x128x128xf32> to vector<4x128xf32>
    %47 = vector.shape_cast %46 : vector<4x128xf32> to vector<4x128x1xf32>
    %48 = vector.broadcast %47 : vector<4x128x1xf32> to vector<4x128x128xf32>
    %49 = arith.subf %45, %48 : vector<4x128x128xf32>
    %50 = math.exp %49 : vector<4x128x128xf32>
    %cst_8 = arith.constant dense<0.000000e+00> : vector<4x128xf32>
    %51 = vector.multi_reduction <add>, %50, %cst_8 [2] : vector<4x128x128xf32> to vector<4x128xf32>
    %52 = vector.shape_cast %51 : vector<4x128xf32> to vector<4x128x1xf32>
    %53 = tpu.reciprocal %52 {approx = true} : vector<4x128x1xf32> -> vector<4x128x1xf32>
    %54 = vector.broadcast %53 : vector<4x128x1xf32> to vector<4x128x128xf32>
    %55 = arith.mulf %50, %54 : vector<4x128x128xf32>
    %56 = arith.truncf %55 : vector<4x128x128xf32> to vector<4x128x128xbf16>
    "tpu.trace_start"() <{level = 10 : i32, message = "hts,hsd->htd"}> : () -> ()
    %cst_9 = arith.constant dense<0.000000e+00> : vector<4x128x16xf32>
    %57 = tpu.matmul %56, %36, %cst_9 {dimension_numbers = #tpu.dot_dimension_numbers<[2], [1], [1], [2], [0, 0, 0, 1, 1, 2], [0], [0]>} : vector<4x128x128xbf16>, vector<4x128x16xbf16>, vector<4x128x16xf32> -> vector<4x128x16xf32>
    "tpu.trace_stop"() : () -> ()
    %58 = arith.truncf %57 : vector<4x128x16xf32> to vector<4x128x16xbf16>
    %c0_10 = arith.constant 0 : index
    %c0_11 = arith.constant 0 : index
    %c0_12 = arith.constant 0 : index
    %59 = vector.load %arg3[%c0_10, %c0_11, %c0_12] : memref<4x16x64xbf16, #tpu.memory_space<vmem>>, vector<4x16x64xbf16>
    "tpu.trace_start"() <{level = 10 : i32, message = "htd,hde->hte"}> : () -> ()
    %cst_13 = arith.constant dense<0.000000e+00> : vector<4x128x64xf32>
    %60 = tpu.matmul %58, %59, %cst_13 {dimension_numbers = #tpu.dot_dimension_numbers<[2], [1], [1], [2], [0, 0, 0, 1, 1, 2], [0], [0]>} : vector<4x128x16xbf16>, vector<4x16x64xbf16>, vector<4x128x64xf32> -> vector<4x128x64xf32>
    "tpu.trace_stop"() : () -> ()
    %cst_14 = arith.constant dense<0.000000e+00> : vector<128x64xf32>
    %61 = vector.multi_reduction <add>, %60, %cst_14 [0] : vector<4x128x64xf32> to vector<128x64xf32>
    %c0_15 = arith.constant 0 : index
    %c0_16 = arith.constant 0 : index
    %62 = vector.load %arg4[%c0_15, %c0_16] : memref<1x64xf32, #tpu.memory_space<vmem>>, vector<1x64xf32>
    %63 = vector.broadcast %62 : vector<1x64xf32> to vector<128x64xf32>
    %64 = arith.addf %61, %63 : vector<128x64xf32>
    %c0_17 = arith.constant 0 : index
    %c0_18 = arith.constant 0 : index
    %c0_19 = arith.constant 0 : index
    %65 = vector.load %arg5[%c0_17, %c0_18, %c0_19] : memref<1x128x64xf32, #tpu.memory_space<vmem>>, vector<1x128x64xf32>
    %66 = vector.shape_cast %65 : vector<1x128x64xf32> to vector<128x64xf32>
    %67 = vector.shape_cast %64 : vector<128x64xf32> to vector<1x128x64xf32>
    tpu.vector_store %arg5[%c0_17, %c0_18, %c0_19], %67 {strides = array<i32>} : memref<1x128x64xf32, #tpu.memory_space<vmem>>, vector<1x128x64xf32>,
    return
  }
  func.func @transform_0(%arg0: i32) -> (i32, i32, i32) {
    %c0_i32 = arith.constant 0 : i32
    %c0_i32_0 = arith.constant 0 : i32
    %c0_i32_1 = arith.constant 0 : i32
    return %arg0, %c0_i32, %c0_i32_0 : i32, i32, i32
  }
  func.func @transform_1(%arg0: i32) -> (i32, i32) {
    %c0_i32 = arith.constant 0 : i32
    %c0_i32_0 = arith.constant 0 : i32
    %c0_i32_1 = arith.constant 0 : i32
    return %c0_i32, %c0_i32_0 : i32, i32
  }
  func.func @transform_2(%arg0: i32) -> (i32, i32, i32) {
    %c0_i32 = arith.constant 0 : i32
    %c0_i32_0 = arith.constant 0 : i32
    %c0_i32_1 = arith.constant 0 : i32
    %c0_i32_2 = arith.constant 0 : i32
    return %c0_i32, %c0_i32_0, %c0_i32_1 : i32, i32, i32
  }
  func.func @transform_3(%arg0: i32) -> (i32, i32) {
    %c0_i32 = arith.constant 0 : i32
    %c0_i32_0 = arith.constant 0 : i32
    %c0_i32_1 = arith.constant 0 : i32
    return %c0_i32, %c0_i32_0 : i32, i32
  }
  func.func @transform_4(%arg0: i32) -> (i32, i32, i32) {
    %c0_i32 = arith.constant 0 : i32
    %c0_i32_0 = arith.constant 0 : i32
    %c0_i32_1 = arith.constant 0 : i32
    return %arg0, %c0_i32, %c0_i32_0 : i32, i32, i32
  }
}

</mosaic_0001>

<llo_original>
// kernel: tpu_custom_call.1
$region0: #{tpu_custom_call.1}
  #allocation0 [shape = 'u32[]', space=smem, size = 0x4, offset = 0x4, fixed_abs, tag = 'smem constant byte address 0x4 - core index']
  #allocation1 [shape = 'u32[144,128]{1,0:T(1,128)}', space=vmem, size = 0x12000, scoped, tag = 'internal scratch']
  %s0 = inlined_call_operand.vmem [shape: f32[2,128,64], index: 0, kind: input, shape index: {}]
  %s1 = inlined_call_operand.vmem [shape: bf16[64,192], index: 1, kind: input, shape index: {}]
  %s2 = inlined_call_operand.vmem [shape: bf16[4,16,64], index: 2, kind: input, shape index: {}]
  %s3 = inlined_call_operand.vmem [shape: f32[1,64], index: 3, kind: input, shape index: {}]
  %s4 = inlined_call_operand.vmem [shape: f32[2,128,64], index: 4, kind: output, shape index: {}]
  %s5 = sld [smem:[#allocation0]]
  $region49: #{tpu_custom_call.1} parent=0
    _
  %s7 = ssub.s32 1, %s5
  %s8 = scalar_select 0, %s7, %s5
  loop: start=0, step=1, limit=4
  $region2: #{tpu_custom_call.1} parent=0 // loop_pre_header
    _
  $region3: #{tpu_custom_call.1} parent=0 // loop_header
    %s10 = sphi 0, %s14
    %p11 = scmp.ge.s32.totalorder %s10, 4
    %s20 = sphi 0, %s22
    %s23 = sphi 0, %s20
    %s24 = sphi 0, %s23
    %s40 = sphi 0, %s24
    %s44 = sphi 0, %s44
    %s46 = sphi 0, %s44
    %s47 = sphi 0, %s46
    %s61 = sphi 0, %s47
    %s65 = sphi 0, %s65
    %s67 = sphi 0, %s65
    %s68 = sphi 0, %s67
    %s82 = sphi 0, %s68
    %s86 = sphi 0, %s86
    %s88 = sphi 0, %s86
    %s89 = sphi 0, %s88
    %s103 = sphi 0, %s89
    %s109 = sphi 0, %s111
    %s112 = sphi 0, %s109
    %s113 = sphi 0, %s112
    %s129 = sphi 0, %s113
  $region4: #{tpu_custom_call.1} parent=0 // loop_header_branch
    %13 = sbr.rel (%p11) target = $region8
  $region5: #{tpu_custom_call.1} parent=0 // loop_body
    %s15 = ssub.s32 %s10, 1
    %s16 = ssub.s32 %s10, 2
    %s17 = sadd.s32 %s10, 1
    %s18 = ssub.s32 %s10, %s17
    %p19 = scmp.eq.s32.totalorder %s18, 0
    %s21 = sadd.s32 %s20, 1
    %s22 = scalar_select %p19, %s20, %s21
    %p25 = pneg %p19
    %p26 = scmp.eq.s32.totalorder %s10, 1
    %p27 = por %p25, %p26
    %p28 = scmp.ne.s32.totalorder %s20, %s23
    %p29 = scmp.eq.s32.totalorder %s10, 0
    %p30 = por %p28, %p29
    %p31 = scmp.ne.s32.totalorder %s20, %s23
    %p32 = scmp.eq.s32.totalorder %s15, 1
    %p33 = por %p31, %p32
    %p34 = scmp.ne.s32.totalorder %s23, %s24
    %p35 = scmp.eq.s32.totalorder %s15, 0
    %p36 = por %p34, %p35
    %p37 = scmp.ne.s32.totalorder %s23, %s24
    %p38 = scmp.eq.s32.totalorder %s16, 1
    %p39 = por %p37, %p38
    %p41 = scmp.ne.s32.totalorder %s24, %s40
    %p42 = scmp.eq.s32.totalorder %s16, 0
    %p43 = por %p41, %p42
    %s45 = sadd.s32 %s44, 1
    %p48 = scmp.eq.s32.totalorder %s10, 1
    %p49 = scmp.ne.s32.totalorder %s44, %s46
    %p50 = scmp.eq.s32.totalorder %s10, 0
    %p51 = por %p49, %p50
    %p52 = scmp.ne.s32.totalorder %s44, %s46
    %p53 = scmp.eq.s32.totalorder %s15, 1
    %p54 = por %p52, %p53
    %p55 = scmp.ne.s32.totalorder %s46, %s47
    %p56 = scmp.eq.s32.totalorder %s15, 0
    %p57 = por %p55, %p56
    %p58 = scmp.ne.s32.totalorder %s46, %s47
    %p59 = scmp.eq.s32.totalorder %s16, 1
    %p60 = por %p58, %p59
    %p62 = scmp.ne.s32.totalorder %s47, %s61
    %p63 = scmp.eq.s32.totalorder %s16, 0
    %p64 = por %p62, %p63
    %s66 = sadd.s32 %s65, 1
    %p69 = scmp.eq.s32.totalorder %s10, 1
    %p70 = scmp.ne.s32.totalorder %s65, %s67
    %p71 = scmp.eq.s32.totalorder %s10, 0
    %p72 = por %p70, %p71
    %p73 = scmp.ne.s32.totalorder %s65, %s67
    %p74 = scmp.eq.s32.totalorder %s15, 1
    %p75 = por %p73, %p74
    %p76 = scmp.ne.s32.totalorder %s67, %s68
    %p77 = scmp.eq.s32.totalorder %s15, 0
    %p78 = por %p76, %p77
    %p79 = scmp.ne.s32.totalorder %s67, %s68
    %p80 = scmp.eq.s32.totalorder %s16, 1
    %p81 = por %p79, %p80
    %p83 = scmp.ne.s32.totalorder %s68, %s82
    %p84 = scmp.eq.s32.totalorder %s16, 0
    %p85 = por %p83, %p84
    %s87 = sadd.s32 %s86, 1
    %p90 = scmp.eq.s32.totalorder %s10, 1
    %p91 = scmp.ne.s32.totalorder %s86, %s88
    %p92 = scmp.eq.s32.totalorder %s10, 0
    %p93 = por %p91, %p92
    %p94 = scmp.ne.s32.totalorder %s86, %s88
    %p95 = scmp.eq.s32.totalorder %s15, 1
    %p96 = por %p94, %p95
    %p97 = scmp.ne.s32.totalorder %s88, %s89
    %p98 = scmp.eq.s32.totalorder %s15, 0
    %p99 = por %p97, %p98
    %p100 = scmp.ne.s32.totalorder %s88, %s89
    %p101 = scmp.eq.s32.totalorder %s16, 1
    %p102 = por %p100, %p101
    %p104 = scmp.ne.s32.totalorder %s89, %s103
    %p105 = scmp.eq.s32.totalorder %s16, 0
    %p106 = por %p104, %p105
    %s107 = ssub.s32 %s10, %s17
    %p108 = scmp.eq.s32.totalorder %s107, 0
    %s110 = sadd.s32 %s109, 1
    %s111 = scalar_select %p108, %s109, %s110
    %p114 = pneg %p108
    %p115 = scmp.eq.s32.totalorder %s10, 1
    %p116 = por %p114, %p115
    %p117 = scmp.ne.s32.totalorder %s109, %s112
    %p118 = scmp.eq.s32.totalorder %s10, 0
    %p119 = por %p117, %p118
    %p120 = scmp.ne.s32.totalorder %s109, %s112
    %p121 = scmp.eq.s32.totalorder %s15, 1
    %p122 = por %p120, %p121
    %p123 = scmp.ne.s32.totalorder %s112, %s113
    %p124 = scmp.eq.s32.totalorder %s15, 0
    %p125 = por %p123, %p124
    %p126 = scmp.ne.s32.totalorder %s112, %s113
    %p127 = scmp.eq.s32.totalorder %s16, 1
    %p128 = por %p126, %p127
    %p130 = scmp.ne.s32.totalorder %s113, %s129
    %p131 = scmp.eq.s32.totalorder %s16, 0
    %p132 = por %p130, %p131
    %p133 = scmp.le.s32.totalorder 1, %s10
    %p134 = scmp.lt.s32.totalorder %s10, 3
    %p135 = pnand %p133, %p134
    %p136 = pneg %p135
    // Predicated region
    $region9: #{tpu_custom_call.1} parent=5 // pred_check
      _
    $region10: #{tpu_custom_call.1} parent=5 // pred_check_branch
      %138 = sbr.rel (%p135) target = $region12
    $region11: #{tpu_custom_call.1} parent=5 // pred_region
      %s139 = ssub.s32 %s10, 1
      // Predicated region
      $region13: #{tpu_custom_call.1} parent=11 // pred_check
        %p140 = pneg %p57
      $region14: #{tpu_custom_call.1} parent=11 // pred_check_branch
        %142 = sbr.rel (%p140) target = $region16
      $region15: #{tpu_custom_call.1} parent=11 // pred_region
        _
      $region16: #{tpu_custom_call.1} parent=11 // pred_fallthru
        _
      // Predicated region
      $region17: #{tpu_custom_call.1} parent=11 // pred_check
        %p143 = pneg %p78
      $region18: #{tpu_custom_call.1} parent=11 // pred_check_branch
        %145 = sbr.rel (%p143) target = $region20
      $region19: #{tpu_custom_call.1} parent=11 // pred_region
        _
      $region20: #{tpu_custom_call.1} parent=11 // pred_fallthru
        _
      // Predicated region
      $region21: #{tpu_custom_call.1} parent=11 // pred_check
        %p146 = pneg %p99
      $region22: #{tpu_custom_call.1} parent=11 // pred_check_branch
        %148 = sbr.rel (%p146) target = $region24
      $region23: #{tpu_custom_call.1} parent=11 // pred_region
        _
      $region24: #{tpu_custom_call.1} parent=11 // pred_fallthru
        _
    $region12: #{tpu_custom_call.1} parent=5 // pred_fallthru
      _
    %p149 = scmp.lt.s32.totalorder %s10, 2
    // Predicated region
    $region25: #{tpu_custom_call.1} parent=5 // pred_check
      %p150 = pneg %p149
    $region26: #{tpu_custom_call.1} parent=5 // pred_check_branch
      %152 = sbr.rel (%p150) target = $region28
    $region27: #{tpu_custom_call.1} parent=5 // pred_region
      // Predicated region
      $region29: #{tpu_custom_call.1} parent=27 // pred_check
        %p153 = pneg %p30
      $region30: #{tpu_custom_call.1} parent=27 // pred_check_branch
        %155 = sbr.rel (%p153) target = $region32
      $region31: #{tpu_custom_call.1} parent=27 // pred_region
        %p156 = scmp.lt.s32.totalorder %s10, 1
        %s157 = scalar_select %p156, %s10, 1
        %s158 = smul.addr %s157, 16
        %s159 = smul.addr %s158, 8
        %s160 = scalar_lea.vmem %s0, %s159
      $region32: #{tpu_custom_call.1} parent=27 // pred_fallthru
        _
    $region28: #{tpu_custom_call.1} parent=5 // pred_fallthru
      _
    %p161 = scmp.le.s32.totalorder 1, %s10
    %p162 = scmp.lt.s32.totalorder %s10, 3
    %p163 = pnand %p161, %p162
    %p164 = pneg %p163
    // Predicated region
    $region33: #{tpu_custom_call.1} parent=5 // pred_check
      _
    $region34: #{tpu_custom_call.1} parent=5 // pred_check_branch
      %166 = sbr.rel (%p163) target = $region36
    $region35: #{tpu_custom_call.1} parent=5 // pred_region
      %s167 = ssub.s32 %s10, 1
      %p168 = scmp.lt.s32.totalorder %s15, 1
      %s169 = scalar_select %p168, %s15, 1
      %s170 = smul.addr %s169, 16
      %s171 = smul.addr %s170, 8
      %s172 = scalar_lea.vmem %s0, %s171
      %p173 = pneg %p36
      %p174 = pneg %p33
      %p175 = pneg %p57
      %p176 = pneg %p54
      %p177 = pneg %p78
      %p178 = pneg %p75
      %p179 = pneg %p99
      %p180 = pneg %p96
      %p181 = pneg %p125
      %p182 = pneg %p122
      %p183 = scmp.lt.s32.totalorder %s15, 1
      %s184 = scalar_select %p183, %s15, 1
      %s185 = smul.addr %s184, 16
      %s186 = smul.addr %s185, 8
      %s187 = scalar_lea.vmem %s4, %s186
      %p188 = scmp.lt.s32.totalorder %s15, 1
      %s189 = scalar_select %p188, %s15, 1
      %s190 = smul.addr %s189, 16
      %s191 = smul.addr %s190, 8
      %s192 = scalar_lea.vmem %s0, %s191
      %p193 = scmp.lt.s32.totalorder %s15, 1
      %s194 = scalar_select %p193, %s15, 1
      %s195 = smul.addr %s194, 16
      %s196 = smul.addr %s195, 8
      %s197 = scalar_lea.vmem %s4, %s196
      %v199 = vld [vmem:[%s192] sm:$0xff]
      %v200 = vld [vmem:[%s192 + $0x8] sm:$0xff]
      %v201 = vld [vmem:[%s192 + $0x10] sm:$0xff]
      %v202 = vld [vmem:[%s192 + $0x18] sm:$0xff]
      %v203 = vld [vmem:[%s192 + $0x20] sm:$0xff]
      %v204 = vld [vmem:[%s192 + $0x28] sm:$0xff]
      %v205 = vld [vmem:[%s192 + $0x30] sm:$0xff]
      %v206 = vld [vmem:[%s192 + $0x38] sm:$0xff]
      %v207 = vld [vmem:[%s192 + $0x40] sm:$0xff]
      %v208 = vld [vmem:[%s192 + $0x48] sm:$0xff]
      %v209 = vld [vmem:[%s192 + $0x50] sm:$0xff]
      %v210 = vld [vmem:[%s192 + $0x58] sm:$0xff]
      %v211 = vld [vmem:[%s192 + $0x60] sm:$0xff]
      %v212 = vld [vmem:[%s192 + $0x68] sm:$0xff]
      %v213 = vld [vmem:[%s192 + $0x70] sm:$0xff]
      %v214 = vld [vmem:[%s192 + $0x78] sm:$0xff]
      %v215 = vpack.c.bf16 %v200, %v199
      %v216 = vpack.c.bf16 %v202, %v201
      %v217 = vpack.c.bf16 %v204, %v203
      %v218 = vpack.c.bf16 %v206, %v205
      %v219 = vpack.c.bf16 %v208, %v207
      %v220 = vpack.c.bf16 %v210, %v209
      %v221 = vpack.c.bf16 %v212, %v211
      %v222 = vpack.c.bf16 %v214, %v213
      %v223 = vld [vmem:[%s1] sm:$0xff]
      %v224 = vld [vmem:[%s1 + $0x8] sm:$0xff]
      %v225 = vld [vmem:[%s1 + $0x10] sm:$0xff]
      %v226 = vld [vmem:[%s1 + $0x18] sm:$0xff]
      %v227 = vld [vmem:[%s1 + $0x20] sm:$0xff]
      %v228 = vld [vmem:[%s1 + $0x28] sm:$0xff]
      %v229 = vld [vmem:[%s1 + $0x30] sm:$0xff]
      %v230 = vld [vmem:[%s1 + $0x38] sm:$0xff]
      %v239 = vunpack.c.l.b16 %v223
      %v240 = vunpack.c.h.b16 %v223
      %v241 = vunpack.c.l.b16 %v224
      %v242 = vunpack.c.h.b16 %v224
      %v243 = vunpack.c.l.b16 %v225
      %v244 = vunpack.c.h.b16 %v225
      %v245 = vunpack.c.l.b16 %v226
      %v246 = vunpack.c.h.b16 %v226
      %v247 = vunpack.c.l.b16 %v227
      %v248 = vunpack.c.h.b16 %v227
      %v249 = vunpack.c.l.b16 %v228
      %v250 = vunpack.c.h.b16 %v228
      %v251 = vunpack.c.l.b16 %v229
      %v252 = vunpack.c.h.b16 %v229
      %v253 = vunpack.c.l.b16 %v230
      %v254 = vunpack.c.h.b16 %v230
      %v255 = vpack.c.b16 %v241, %v239
      %v256 = vpack.c.b16 %v242, %v240
      %v257 = vpack.c.b16 %v245, %v243
      %v258 = vpack.c.b16 %v246, %v244
      %v259 = vpack.c.b16 %v249, %v247
      %v260 = vpack.c.b16 %v250, %v248
      %v261 = vpack.c.b16 %v253, %v251
      %v262 = vpack.c.b16 %v254, %v252
      %vm271 = vcmask 523264
      %v273 = vsel %vm271, %v215, 0
      %v276 = vsel %vm271, %v216, 0
      %v279 = vsel %vm271, %v217, 0
      %v282 = vsel %vm271, %v218, 0
      %v285 = vsel %vm271, %v219, 0
      %v288 = vsel %vm271, %v220, 0
      %v291 = vsel %vm271, %v221, 0
      %v294 = vsel %vm271, %v222, 0
      %296 = vmatprep.subr.bf16.mxu0 %v256
      %297 = vmatpush1.bf16.msra.mxu0 %v255
      %298 = vmatprep.subr.bf16.mxu0 %v258
      %299 = vmatpush1.bf16.msra.mxu0 %v257
      %300 = vmatprep.subr.bf16.mxu0 %v260
      %301 = vmatpush1.bf16.msra.mxu0 %v259
      %302 = vmatprep.subr.bf16.mxu0 %v262
      %303 = vmatpush1.bf16.msra.mxu0 %v261
      %304 = vmatprep.subr.bf16.mxu0 0
      %305 = vmatpush1.bf16.msra.mxu0 0
      %306 = vmatprep.subr.bf16.mxu0 0
      %307 = vmatpush1.bf16.msra.mxu0 0
      %308 = vmatprep.subr.bf16.mxu0 0
      %309 = vmatpush1.bf16.msra.mxu0 0
      %310 = vmatprep.subr.bf16.mxu0 0
      %311 = vmatpush1.bf16.msra.mxu0 0
      %312 = vmatprep.subr.bf16.mxu0 0
      %313 = vmatpush1.bf16.msra.mxu0 0
      %314 = vmatprep.subr.bf16.mxu0 0
      %315 = vmatpush1.bf16.msra.mxu0 0
      %316 = vmatprep.subr.bf16.mxu0 0
      %317 = vmatpush1.bf16.msra.mxu0 0
      %318 = vmatprep.subr.bf16.mxu0 0
      %319 = vmatpush1.bf16.msra.mxu0 0
      %320 = vmatprep.subr.bf16.mxu0 0
      %321 = vmatpush1.bf16.msra.mxu0 0
      %322 = vmatprep.subr.bf16.mxu0 0
      %323 = vmatpush1.bf16.msra.mxu0 0
      %324 = vmatprep.subr.bf16.mxu0 0
      %325 = vmatpush1.bf16.msra.mxu0 0
      %326 = vmatprep.subr.bf16.mxu0 0
      %327 = vmatpush1.bf16.msra.mxu0 0
      %328 = vmatprep.mubr.bf16.mxu0 0
      %329 = vmatmul.mubr.bf16.gmra.mrb[0].mxu0 %v273
      %v330 = vpop.f32.mrb[0].mxu0
      %v331 = vadd.f32 0.0, %v330
      %v332 = vpop.f32.mrb[0].mxu0
      %v333 = vadd.f32 0.0, %v332
      %v334 = vpop.f32.mrb[0].mxu0
      %v335 = vadd.f32 0.0, %v334
      %v336 = vpop.f32.mrb[0].mxu0
      %v337 = vadd.f32 0.0, %v336
      %338 = vmatprep.mubr.bf16.mxu0 0
      %339 = vmatmul.mubr.bf16.gmra.mrb[0].mxu0 %v276
      %v340 = vpop.f32.mrb[0].mxu0
      %v341 = vadd.f32 0.0, %v340
      %v342 = vpop.f32.mrb[0].mxu0
      %v343 = vadd.f32 0.0, %v342
      %v344 = vpop.f32.mrb[0].mxu0
      %v345 = vadd.f32 0.0, %v344
      %v346 = vpop.f32.mrb[0].mxu0
      %v347 = vadd.f32 0.0, %v346
      %348 = vmatprep.mubr.bf16.mxu0 0
      %349 = vmatmul.mubr.bf16.gmra.mrb[0].mxu0 %v279
      %v350 = vpop.f32.mrb[0].mxu0
      %v351 = vadd.f32 0.0, %v350
      %v352 = vpop.f32.mrb[0].mxu0
      %v353 = vadd.f32 0.0, %v352
      %v354 = vpop.f32.mrb[0].mxu0
      %v355 = vadd.f32 0.0, %v354
      %v356 = vpop.f32.mrb[0].mxu0
      %v357 = vadd.f32 0.0, %v356
      %358 = vmatprep.mubr.bf16.mxu0 0
      %359 = vmatmul.mubr.bf16.gmra.mrb[0].mxu0 %v282
      %v360 = vpop.f32.mrb[0].mxu0
      %v361 = vadd.f32 0.0, %v360
      %v362 = vpop.f32.mrb[0].mxu0
      %v363 = vadd.f32 0.0, %v362
      %v364 = vpop.f32.mrb[0].mxu0
      %v365 = vadd.f32 0.0, %v364
      %v366 = vpop.f32.mrb[0].mxu0
      %v367 = vadd.f32 0.0, %v366
      %368 = vmatprep.mubr.bf16.mxu0 0
      %369 = vmatmul.mubr.bf16.gmra.mrb[0].mxu0 %v285
      %v370 = vpop.f32.mrb[0].mxu0
      %v371 = vadd.f32 0.0, %v370
      %v372 = vpop.f32.mrb[0].mxu0
      %v373 = vadd.f32 0.0, %v372
      %v374 = vpop.f32.mrb[0].mxu0
      %v375 = vadd.f32 0.0, %v374
      %v376 = vpop.f32.mrb[0].mxu0
      %v377 = vadd.f32 0.0, %v376
      %378 = vmatprep.mubr.bf16.mxu0 0
      %379 = vmatmul.mubr.bf16.gmra.mrb[0].mxu0 %v288
      %v380 = vpop.f32.mrb[0].mxu0
      %v381 = vadd.f32 0.0, %v380
      %v382 = vpop.f32.mrb[0].mxu0
      %v383 = vadd.f32 0.0, %v382
      %v384 = vpop.f32.mrb[0].mxu0
      %v385 = vadd.f32 0.0, %v384
      %v386 = vpop.f32.mrb[0].mxu0
      %v387 = vadd.f32 0.0, %v386
      %388 = vmatprep.mubr.bf16.mxu0 0
      %389 = vmatmul.mubr.bf16.gmra.mrb[0].mxu0 %v291
      %v390 = vpop.f32.mrb[0].mxu0
      %v391 = vadd.f32 0.0, %v390
      %v392 = vpop.f32.mrb[0].mxu0
      %v393 = vadd.f32 0.0, %v392
      %v394 = vpop.f32.mrb[0].mxu0
      %v395 = vadd.f32 0.0, %v394
      %v396 = vpop.f32.mrb[0].mxu0
      %v397 = vadd.f32 0.0, %v396
      %398 = vmatprep.mubr.bf16.mxu0 0
      %399 = vmatmul.mubr.bf16.gmra.mrb[0].mxu0 %v294
      %v400 = vpop.f32.mrb[0].mxu0
      %v401 = vadd.f32 0.0, %v400
      %v402 = vpop.f32.mrb[0].mxu0
      %v403 = vadd.f32 0.0, %v402
      %v404 = vpop.f32.mrb[0].mxu0
      %v405 = vadd.f32 0.0, %v404
      %v406 = vpop.f32.mrb[0].mxu0
      %v407 = vadd.f32 0.0, %v406
      %408 = vdwg.mxu0
      %425 = vrot.lane.b32.xlu0 %v331, 112
      %v426 = vpop.permute.xlu0 %425
      %427 = vrot.lane.b32.xlu0 %v335, 112
      %v428 = vpop.permute.xlu0 %427
      %429 = vrot.lane.b32.xlu0 %v341, 112
      %v430 = vpop.permute.xlu0 %429
      %431 = vrot.lane.b32.xlu0 %v345, 112
      %v432 = vpop.permute.xlu0 %431
      %433 = vrot.lane.b32.xlu0 %v351, 112
      %v434 = vpop.permute.xlu0 %433
      %435 = vrot.lane.b32.xlu0 %v355, 112
      %v436 = vpop.permute.xlu0 %435
      %437 = vrot.lane.b32.xlu0 %v361, 112
      %v438 = vpop.permute.xlu0 %437
      %439 = vrot.lane.b32.xlu0 %v365, 112
      %v440 = vpop.permute.xlu0 %439
      %441 = vrot.lane.b32.xlu0 %v371, 112
      %v442 = vpop.permute.xlu0 %441
      %443 = vrot.lane.b32.xlu0 %v375, 112
      %v444 = vpop.permute.xlu0 %443
      %445 = vrot.lane.b32.xlu0 %v381, 112
      %v446 = vpop.permute.xlu0 %445
      %447 = vrot.lane.b32.xlu0 %v385, 112
      %v448 = vpop.permute.xlu0 %447
      %449 = vrot.lane.b32.xlu0 %v391, 112
      %v450 = vpop.permute.xlu0 %449
      %451 = vrot.lane.b32.xlu0 %v395, 112
      %v452 = vpop.permute.xlu0 %451
      %453 = vrot.lane.b32.xlu0 %v401, 112
      %v454 = vpop.permute.xlu0 %453
      %455 = vrot.lane.b32.xlu0 %v405, 112
      %v456 = vpop.permute.xlu0 %455
      %473 = vrot.lane.b32.xlu0 %v331, 96
      %v474 = vpop.permute.xlu0 %473
      %475 = vrot.lane.b32.xlu0 %v335, 96
      %v476 = vpop.permute.xlu0 %475
      %477 = vrot.lane.b32.xlu0 %v341, 96
      %v478 = vpop.permute.xlu0 %477
      %479 = vrot.lane.b32.xlu0 %v345, 96
      %v480 = vpop.permute.xlu0 %479
      %481 = vrot.lane.b32.xlu0 %v351, 96
      %v482 = vpop.permute.xlu0 %481
      %483 = vrot.lane.b32.xlu0 %v355, 96
      %v484 = vpop.permute.xlu0 %483
      %485 = vrot.lane.b32.xlu0 %v361, 96
      %v486 = vpop.permute.xlu0 %485
      %487 = vrot.lane.b32.xlu0 %v365, 96
      %v488 = vpop.permute.xlu0 %487
      %489 = vrot.lane.b32.xlu0 %v371, 96
      %v490 = vpop.permute.xlu0 %489
      %491 = vrot.lane.b32.xlu0 %v375, 96
      %v492 = vpop.permute.xlu0 %491
      %493 = vrot.lane.b32.xlu0 %v381, 96
      %v494 = vpop.permute.xlu0 %493
      %495 = vrot.lane.b32.xlu0 %v385, 96
      %v496 = vpop.permute.xlu0 %495
      %497 = vrot.lane.b32.xlu0 %v391, 96
      %v498 = vpop.permute.xlu0 %497
      %499 = vrot.lane.b32.xlu0 %v395, 96
      %v500 = vpop.permute.xlu0 %499
      %501 = vrot.lane.b32.xlu0 %v401, 96
      %v502 = vpop.permute.xlu0 %501
      %503 = vrot.lane.b32.xlu0 %v405, 96
      %v504 = vpop.permute.xlu0 %503
      %521 = vrot.lane.b32.xlu0 %v331, 80
      %v522 = vpop.permute.xlu0 %521
      %523 = vrot.lane.b32.xlu0 %v335, 80
      %v524 = vpop.permute.xlu0 %523
      %525 = vrot.lane.b32.xlu0 %v341, 80
      %v526 = vpop.permute.xlu0 %525
      %527 = vrot.lane.b32.xlu0 %v345, 80
      %v528 = vpop.permute.xlu0 %527
      %529 = vrot.lane.b32.xlu0 %v351, 80
      %v530 = vpop.permute.xlu0 %529
      %531 = vrot.lane.b32.xlu0 %v355, 80
      %v532 = vpop.permute.xlu0 %531
      %533 = vrot.lane.b32.xlu0 %v361, 80
      %v534 = vpop.permute.xlu0 %533
      %535 = vrot.lane.b32.xlu0 %v365, 80
      %v536 = vpop.permute.xlu0 %535
      %537 = vrot.lane.b32.xlu0 %v371, 80
      %v538 = vpop.permute.xlu0 %537
      %539 = vrot.lane.b32.xlu0 %v375, 80
      %v540 = vpop.permute.xlu0 %539
      %541 = vrot.lane.b32.xlu0 %v381, 80
      %v542 = vpop.permute.xlu0 %541
      %543 = vrot.lane.b32.xlu0 %v385, 80
      %v544 = vpop.permute.xlu0 %543
      %545 = vrot.lane.b32.xlu0 %v391, 80
      %v546 = vpop.permute.xlu0 %545
      %547 = vrot.lane.b32.xlu0 %v395, 80
      %v548 = vpop.permute.xlu0 %547
      %549 = vrot.lane.b32.xlu0 %v401, 80
      %v550 = vpop.permute.xlu0 %549
      %551 = vrot.lane.b32.xlu0 %v405, 80
      %v552 = vpop.permute.xlu0 %551
      %585 = vrot.lane.b32.xlu0 %v333, 112
      %v586 = vpop.permute.xlu0 %585
      %587 = vrot.lane.b32.xlu0 %v337, 112
      %v588 = vpop.permute.xlu0 %587
      %589 = vrot.lane.b32.xlu0 %v343, 112
      %v590 = vpop.permute.xlu0 %589
      %591 = vrot.lane.b32.xlu0 %v347, 112
      %v592 = vpop.permute.xlu0 %591
      %593 = vrot.lane.b32.xlu0 %v353, 112
      %v594 = vpop.permute.xlu0 %593
      %595 = vrot.lane.b32.xlu0 %v357, 112
      %v596 = vpop.permute.xlu0 %595
      %597 = vrot.lane.b32.xlu0 %v363, 112
      %v598 = vpop.permute.xlu0 %597
      %599 = vrot.lane.b32.xlu0 %v367, 112
      %v600 = vpop.permute.xlu0 %599
      %601 = vrot.lane.b32.xlu0 %v373, 112
      %v602 = vpop.permute.xlu0 %601
      %603 = vrot.lane.b32.xlu0 %v377, 112
      %v604 = vpop.permute.xlu0 %603
      %605 = vrot.lane.b32.xlu0 %v383, 112
      %v606 = vpop.permute.xlu0 %605
      %607 = vrot.lane.b32.xlu0 %v387, 112
      %v608 = vpop.permute.xlu0 %607
      %609 = vrot.lane.b32.xlu0 %v393, 112
      %v610 = vpop.permute.xlu0 %609
      %611 = vrot.lane.b32.xlu0 %v397, 112
      %v612 = vpop.permute.xlu0 %611
      %613 = vrot.lane.b32.xlu0 %v403, 112
      %v614 = vpop.permute.xlu0 %613
      %615 = vrot.lane.b32.xlu0 %v407, 112
      %v616 = vpop.permute.xlu0 %615
      %633 = vrot.lane.b32.xlu0 %v333, 96
      %v634 = vpop.permute.xlu0 %633
      %635 = vrot.lane.b32.xlu0 %v337, 96
      %v636 = vpop.permute.xlu0 %635
      %637 = vrot.lane.b32.xlu0 %v343, 96
      %v638 = vpop.permute.xlu0 %637
      %639 = vrot.lane.b32.xlu0 %v347, 96
      %v640 = vpop.permute.xlu0 %639
      %641 = vrot.lane.b32.xlu0 %v353, 96
      %v642 = vpop.permute.xlu0 %641
      %643 = vrot.lane.b32.xlu0 %v357, 96
      %v644 = vpop.permute.xlu0 %643
      %645 = vrot.lane.b32.xlu0 %v363, 96
      %v646 = vpop.permute.xlu0 %645
      %647 = vrot.lane.b32.xlu0 %v367, 96
      %v648 = vpop.permute.xlu0 %647
      %649 = vrot.lane.b32.xlu0 %v373, 96
      %v650 = vpop.permute.xlu0 %649
      %651 = vrot.lane.b32.xlu0 %v377, 96
      %v652 = vpop.permute.xlu0 %651
      %653 = vrot.lane.b32.xlu0 %v383, 96
      %v654 = vpop.permute.xlu0 %653
      %655 = vrot.lane.b32.xlu0 %v387, 96
      %v656 = vpop.permute.xlu0 %655
      %657 = vrot.lane.b32.xlu0 %v393, 96
      %v658 = vpop.permute.xlu0 %657
      %659 = vrot.lane.b32.xlu0 %v397, 96
      %v660 = vpop.permute.xlu0 %659
      %661 = vrot.lane.b32.xlu0 %v403, 96
      %v662 = vpop.permute.xlu0 %661
      %663 = vrot.lane.b32.xlu0 %v407, 96
      %v664 = vpop.permute.xlu0 %663
      %681 = vrot.lane.b32.xlu0 %v333, 80
      %v682 = vpop.permute.xlu0 %681
      %683 = vrot.lane.b32.xlu0 %v337, 80
      %v684 = vpop.permute.xlu0 %683
      %685 = vrot.lane.b32.xlu0 %v343, 80
      %v686 = vpop.permute.xlu0 %685
      %687 = vrot.lane.b32.xlu0 %v347, 80
      %v688 = vpop.permute.xlu0 %687
      %689 = vrot.lane.b32.xlu0 %v353, 80
      %v690 = vpop.permute.xlu0 %689
      %691 = vrot.lane.b32.xlu0 %v357, 80
      %v692 = vpop.permute.xlu0 %691
      %693 = vrot.lane.b32.xlu0 %v363, 80
      %v694 = vpop.permute.xlu0 %693
      %695 = vrot.lane.b32.xlu0 %v367, 80
      %v696 = vpop.permute.xlu0 %695
      %697 = vrot.lane.b32.xlu0 %v373, 80
      %v698 = vpop.permute.xlu0 %697
      %699 = vrot.lane.b32.xlu0 %v377, 80
      %v700 = vpop.permute.xlu0 %699
      %701 = vrot.lane.b32.xlu0 %v383, 80
      %v702 = vpop.permute.xlu0 %701
      %703 = vrot.lane.b32.xlu0 %v387, 80
      %v704 = vpop.permute.xlu0 %703
      %705 = vrot.lane.b32.xlu0 %v393, 80
      %v706 = vpop.permute.xlu0 %705
      %707 = vrot.lane.b32.xlu0 %v397, 80
      %v708 = vpop.permute.xlu0 %707
      %709 = vrot.lane.b32.xlu0 %v403, 80
      %v710 = vpop.permute.xlu0 %709
      %711 = vrot.lane.b32.xlu0 %v407, 80
      %v712 = vpop.permute.xlu0 %711
      %v729 = vmul.f32 %v331, 0.25
      %v730 = vmul.f32 %v335, 0.25
      %v731 = vmul.f32 %v341, 0.25
      %v732 = vmul.f32 %v345, 0.25
      %v733 = vmul.f32 %v351, 0.25
      %v734 = vmul.f32 %v355, 0.25
      %v735 = vmul.f32 %v361, 0.25
      %v736 = vmul.f32 %v365, 0.25
      %v737 = vmul.f32 %v371, 0.25
      %v738 = vmul.f32 %v375, 0.25
      %v739 = vmul.f32 %v381, 0.25
      %v740 = vmul.f32 %v385, 0.25
      %v741 = vmul.f32 %v391, 0.25
      %v742 = vmul.f32 %v395, 0.25
      %v743 = vmul.f32 %v401, 0.25
      %v744 = vmul.f32 %v405, 0.25
      %v745 = vmul.f32 %v426, 0.25
      %v746 = vmul.f32 %v428, 0.25
      %v747 = vmul.f32 %v430, 0.25
      %v748 = vmul.f32 %v432, 0.25
      %v749 = vmul.f32 %v434, 0.25
      %v750 = vmul.f32 %v436, 0.25
      %v751 = vmul.f32 %v438, 0.25
      %v752 = vmul.f32 %v440, 0.25
      %v753 = vmul.f32 %v442, 0.25
      %v754 = vmul.f32 %v444, 0.25
      %v755 = vmul.f32 %v446, 0.25
      %v756 = vmul.f32 %v448, 0.25
      %v757 = vmul.f32 %v450, 0.25
      %v758 = vmul.f32 %v452, 0.25
      %v759 = vmul.f32 %v454, 0.25
      %v760 = vmul.f32 %v456, 0.25
      %v761 = vmul.f32 %v474, 0.25
      %v762 = vmul.f32 %v476, 0.25
      %v763 = vmul.f32 %v478, 0.25
      %v764 = vmul.f32 %v480, 0.25
      %v765 = vmul.f32 %v482, 0.25
      %v766 = vmul.f32 %v484, 0.25
      %v767 = vmul.f32 %v486, 0.25
      %v768 = vmul.f32 %v488, 0.25
      %v769 = vmul.f32 %v490, 0.25
      %v770 = vmul.f32 %v492, 0.25
      %v771 = vmul.f32 %v494, 0.25
      %v772 = vmul.f32 %v496, 0.25
      %v773 = vmul.f32 %v498, 0.25
      %v774 = vmul.f32 %v500, 0.25
      %v775 = vmul.f32 %v502, 0.25
      %v776 = vmul.f32 %v504, 0.25
      %v777 = vmul.f32 %v522, 0.25
      %v778 = vmul.f32 %v524, 0.25
      %v779 = vmul.f32 %v526, 0.25
      %v780 = vmul.f32 %v528, 0.25
      %v781 = vmul.f32 %v530, 0.25
      %v782 = vmul.f32 %v532, 0.25
      %v783 = vmul.f32 %v534, 0.25
      %v784 = vmul.f32 %v536, 0.25
      %v785 = vmul.f32 %v538, 0.25
      %v786 = vmul.f32 %v540, 0.25
      %v787 = vmul.f32 %v542, 0.25
      %v788 = vmul.f32 %v544, 0.25
      %v789 = vmul.f32 %v546, 0.25
      %v790 = vmul.f32 %v548, 0.25
      %v791 = vmul.f32 %v550, 0.25
      %v792 = vmul.f32 %v552, 0.25
      %v793 = vpack.c.bf16 %v730, %v729
      %v794 = vpack.c.bf16 %v732, %v731
      %v795 = vpack.c.bf16 %v734, %v733
      %v796 = vpack.c.bf16 %v736, %v735
      %v797 = vpack.c.bf16 %v738, %v737
      %v798 = vpack.c.bf16 %v740, %v739
      %v799 = vpack.c.bf16 %v742, %v741
      %v800 = vpack.c.bf16 %v744, %v743
      %v801 = vpack.c.bf16 %v746, %v745
      %v802 = vpack.c.bf16 %v748, %v747
      %v803 = vpack.c.bf16 %v750, %v749
      %v804 = vpack.c.bf16 %v752, %v751
      %v805 = vpack.c.bf16 %v754, %v753
      %v806 = vpack.c.bf16 %v756, %v755
      %v807 = vpack.c.bf16 %v758, %v757
      %v808 = vpack.c.bf16 %v760, %v759
      %v809 = vpack.c.bf16 %v762, %v761
      %v810 = vpack.c.bf16 %v764, %v763
      %v811 = vpack.c.bf16 %v766, %v765
      %v812 = vpack.c.bf16 %v768, %v767
      %v813 = vpack.c.bf16 %v770, %v769
      %v814 = vpack.c.bf16 %v772, %v771
      %v815 = vpack.c.bf16 %v774, %v773
      %v816 = vpack.c.bf16 %v776, %v775
      %v817 = vpack.c.bf16 %v778, %v777
      %v818 = vpack.c.bf16 %v780, %v779
      %v819 = vpack.c.bf16 %v782, %v781
      %v820 = vpack.c.bf16 %v784, %v783
      %v821 = vpack.c.bf16 %v786, %v785
      %v822 = vpack.c.bf16 %v788, %v787
      %v823 = vpack.c.bf16 %v790, %v789
      %v824 = vpack.c.bf16 %v792, %v791
      %v825 = vpack.c.bf16 %v335, %v331
      %v826 = vpack.c.bf16 %v345, %v341
      %v827 = vpack.c.bf16 %v355, %v351
      %v828 = vpack.c.bf16 %v365, %v361
      %v829 = vpack.c.bf16 %v375, %v371
      %v830 = vpack.c.bf16 %v385, %v381
      %v831 = vpack.c.bf16 %v395, %v391
      %v832 = vpack.c.bf16 %v405, %v401
      %v833 = vpack.c.bf16 %v428, %v426
      %v834 = vpack.c.bf16 %v432, %v430
      %v835 = vpack.c.bf16 %v436, %v434
      %v836 = vpack.c.bf16 %v440, %v438
      %v837 = vpack.c.bf16 %v444, %v442
      %v838 = vpack.c.bf16 %v448, %v446
      %v839 = vpack.c.bf16 %v452, %v450
      %v840 = vpack.c.bf16 %v456, %v454
      %v841 = vpack.c.bf16 %v476, %v474
      %v842 = vpack.c.bf16 %v480, %v478
      %v843 = vpack.c.bf16 %v484, %v482
      %v844 = vpack.c.bf16 %v488, %v486
      %v845 = vpack.c.bf16 %v492, %v490
      %v846 = vpack.c.bf16 %v496, %v494
      %v847 = vpack.c.bf16 %v500, %v498
      %v848 = vpack.c.bf16 %v504, %v502
      %v849 = vpack.c.bf16 %v524, %v522
      %v850 = vpack.c.bf16 %v528, %v526
      %v851 = vpack.c.bf16 %v532, %v530
      %v852 = vpack.c.bf16 %v536, %v534
      %v853 = vpack.c.bf16 %v540, %v538
      %v854 = vpack.c.bf16 %v544, %v542
      %v855 = vpack.c.bf16 %v548, %v546
      %v856 = vpack.c.bf16 %v552, %v550
      %v857 = vpack.c.bf16 %v337, %v333
      %v858 = vpack.c.bf16 %v347, %v343
      %v859 = vpack.c.bf16 %v357, %v353
      %v860 = vpack.c.bf16 %v367, %v363
      %v861 = vpack.c.bf16 %v377, %v373
      %v862 = vpack.c.bf16 %v387, %v383
      %v863 = vpack.c.bf16 %v397, %v393
      %v864 = vpack.c.bf16 %v407, %v403
      %v865 = vpack.c.bf16 %v588, %v586
      %v866 = vpack.c.bf16 %v592, %v590
      %v867 = vpack.c.bf16 %v596, %v594
      %v868 = vpack.c.bf16 %v600, %v598
      %v869 = vpack.c.bf16 %v604, %v602
      %v870 = vpack.c.bf16 %v608, %v606
      %v871 = vpack.c.bf16 %v612, %v610
      %v872 = vpack.c.bf16 %v616, %v614
      %v873 = vpack.c.bf16 %v636, %v634
      %v874 = vpack.c.bf16 %v640, %v638
      %v875 = vpack.c.bf16 %v644, %v642
      %v876 = vpack.c.bf16 %v648, %v646
      %v877 = vpack.c.bf16 %v652, %v650
      %v878 = vpack.c.bf16 %v656, %v654
      %v879 = vpack.c.bf16 %v660, %v658
      %v880 = vpack.c.bf16 %v664, %v662
      %v881 = vpack.c.bf16 %v684, %v682
      %v882 = vpack.c.bf16 %v688, %v686
      %v883 = vpack.c.bf16 %v692, %v690
      %v884 = vpack.c.bf16 %v696, %v694
      %v885 = vpack.c.bf16 %v700, %v698
      %v886 = vpack.c.bf16 %v704, %v702
      %v887 = vpack.c.bf16 %v708, %v706
      %v888 = vpack.c.bf16 %v712, %v710
      %v889 = vlaneseq
      %v890 = vshrl.u32 %v889, 7
      %v891 = vadd.s32 %v890, 8
      %v892 = vadd.s32 %v890, 16
      %v893 = vadd.s32 %v890, 24
      %v894 = vadd.s32 %v890, 32
      %v895 = vadd.s32 %v890, 40
      %v896 = vadd.s32 %v890, 48
      %v897 = vadd.s32 %v890, 56
      %v898 = vadd.s32 %v890, 64
      %v899 = vadd.s32 %v890, 72
      %v900 = vadd.s32 %v890, 80
      %v901 = vadd.s32 %v890, 88
      %v902 = vadd.s32 %v890, 96
      %v903 = vadd.s32 %v890, 104
      %v904 = vadd.s32 %v890, 112
      %v905 = vadd.s32 %v890, 120
      %v906 = vlaneseq
      %v907 = vand.u32 %v906, 127
      %vm908 = vcmp.ge.s32.totalorder %v890, %v907
      %vm909 = vcmp.ge.s32.totalorder %v891, %v907
      %vm910 = vcmp.ge.s32.totalorder %v892, %v907
      %vm911 = vcmp.ge.s32.totalorder %v893, %v907
      %vm912 = vcmp.ge.s32.totalorder %v894, %v907
      %vm913 = vcmp.ge.s32.totalorder %v895, %v907
      %vm914 = vcmp.ge.s32.totalorder %v896, %v907
      %vm915 = vcmp.ge.s32.totalorder %v897, %v907
      %vm916 = vcmp.ge.s32.totalorder %v898, %v907
      %vm917 = vcmp.ge.s32.totalorder %v899, %v907
      %vm918 = vcmp.ge.s32.totalorder %v900, %v907
      %vm919 = vcmp.ge.s32.totalorder %v901, %v907
      %vm920 = vcmp.ge.s32.totalorder %v902, %v907
      %vm921 = vcmp.ge.s32.totalorder %v903, %v907
      %vm922 = vcmp.ge.s32.totalorder %v904, %v907
      %vm923 = vcmp.ge.s32.totalorder %v905, %v907
      %932 = vrot.lane.b32.xlu0 %v825, 64
      %v933 = vpop.permute.xlu0 %932
      %934 = vrot.lane.b32.xlu0 %v826, 64
      %v935 = vpop.permute.xlu0 %934
      %936 = vrot.lane.b32.xlu0 %v827, 64
      %v937 = vpop.permute.xlu0 %936
      %938 = vrot.lane.b32.xlu0 %v828, 64
      %v939 = vpop.permute.xlu0 %938
      %940 = vrot.lane.b32.xlu0 %v829, 64
      %v941 = vpop.permute.xlu0 %940
      %942 = vrot.lane.b32.xlu0 %v830, 64
      %v943 = vpop.permute.xlu0 %942
      %944 = vrot.lane.b32.xlu0 %v831, 64
      %v945 = vpop.permute.xlu0 %944
      %946 = vrot.lane.b32.xlu0 %v832, 64
      %v947 = vpop.permute.xlu0 %946
      %vm948 = vcmask 130048
      %v950 = vsel %vm948, %v793, 0
      %v953 = vsel %vm948, %v794, 0
      %v956 = vsel %vm948, %v795, 0
      %v959 = vsel %vm948, %v796, 0
      %v962 = vsel %vm948, %v797, 0
      %v965 = vsel %vm948, %v798, 0
      %v968 = vsel %vm948, %v799, 0
      %v971 = vsel %vm948, %v800, 0
      %v974 = vsel %vm948, %v933, 0
      %v977 = vsel %vm948, %v935, 0
      %v980 = vsel %vm948, %v937, 0
      %v983 = vsel %vm948, %v939, 0
      %v986 = vsel %vm948, %v941, 0
      %v989 = vsel %vm948, %v943, 0
      %v992 = vsel %vm948, %v945, 0
      %v995 = vsel %vm948, %v947, 0
      %997 = vmatprep.subr.bf16.mxu0 0
      %998 = vmatpush1.bf16.xpose.msra.mxu0 %v974
      %999 = vmatprep.subr.bf16.mxu0 0
      %1000 = vmatpush1.bf16.xpose.msra.mxu0 %v977
      %1001 = vmatprep.subr.bf16.mxu0 0
      %1002 = vmatpush1.bf16.xpose.msra.mxu0 %v980
      %1003 = vmatprep.subr.bf16.mxu0 0
      %1004 = vmatpush1.bf16.xpose.msra.mxu0 %v983
      %1005 = vmatprep.subr.bf16.mxu0 0
      %1006 = vmatpush1.bf16.xpose.msra.mxu0 %v986
      %1007 = vmatprep.subr.bf16.mxu0 0
      %1008 = vmatpush1.bf16.xpose.msra.mxu0 %v989
      %1009 = vmatprep.subr.bf16.mxu0 0
      %1010 = vmatpush1.bf16.xpose.msra.mxu0 %v992
      %1011 = vmatprep.subr.bf16.mxu0 0
      %1012 = vmatpush1.bf16.xpose.msra.mxu0 %v995
      %1013 = vmatprep.subr.bf16.mxu0 0
      %1014 = vmatpush1.bf16.xpose.msra.mxu0 0
      %1015 = vmatprep.subr.bf16.mxu0 0
      %1016 = vmatpush1.bf16.xpose.msra.mxu0 0
      %1017 = vmatprep.subr.bf16.mxu0 0
      %1018 = vmatpush1.bf16.xpose.msra.mxu0 0
      %1019 = vmatprep.subr.bf16.mxu0 0
      %1020 = vmatpush1.bf16.xpose.msra.mxu0 0
      %1021 = vmatprep.subr.bf16.mxu0 0
      %1022 = vmatpush1.bf16.xpose.msra.mxu0 0
      %1023 = vmatprep.subr.bf16.mxu0 0
      %1024 = vmatpush1.bf16.xpose.msra.mxu0 0
      %1025 = vmatprep.subr.bf16.mxu0 0
      %1026 = vmatpush1.bf16.xpose.msra.mxu0 0
      %1027 = vmatprep.subr.bf16.mxu0 0
      %1028 = vmatpush1.bf16.xpose.msra.mxu0 0
      %1029 = vmatprep.mubr.bf16.mxu0 0
      %1030 = vmatmul.mubr.bf16.gmra.mrb[0].mxu0 %v950
      %v1031 = vpop.f32.mrb[0].mxu0
      %v1032 = vadd.f32 0.0, %v1031
      %v1033 = vpop.f32.mrb[0].mxu0
      %v1034 = vpop.f32.mrb[0].mxu0
      %v1035 = vadd.f32 0.0, %v1034
      %v1036 = vpop.f32.mrb[0].mxu0
      %1037 = vmatprep.mubr.bf16.mxu0 0
      %1038 = vmatmul.mubr.bf16.gmra.mrb[0].mxu0 %v953
      %v1039 = vpop.f32.mrb[0].mxu0
      %v1040 = vadd.f32 0.0, %v1039
      %v1041 = vpop.f32.mrb[0].mxu0
      %v1042 = vpop.f32.mrb[0].mxu0
      %v1043 = vadd.f32 0.0, %v1042
      %v1044 = vpop.f32.mrb[0].mxu0
      %1045 = vmatprep.mubr.bf16.mxu0 0
      %1046 = vmatmul.mubr.bf16.gmra.mrb[0].mxu0 %v956
      %v1047 = vpop.f32.mrb[0].mxu0
      %v1048 = vadd.f32 0.0, %v1047
      %v1049 = vpop.f32.mrb[0].mxu0
      %v1050 = vpop.f32.mrb[0].mxu0
      %v1051 = vadd.f32 0.0, %v1050
      %v1052 = vpop.f32.mrb[0].mxu0
      %1053 = vmatprep.mubr.bf16.mxu0 0
      %1054 = vmatmul.mubr.bf16.gmra.mrb[0].mxu0 %v959
      %v1055 = vpop.f32.mrb[0].mxu0
      %v1056 = vadd.f32 0.0, %v1055
      %v1057 = vpop.f32.mrb[0].mxu0
      %v1058 = vpop.f32.mrb[0].mxu0
      %v1059 = vadd.f32 0.0, %v1058
      %v1060 = vpop.f32.mrb[0].mxu0
      %1061 = vmatprep.mubr.bf16.mxu0 0
      %1062 = vmatmul.mubr.bf16.gmra.mrb[0].mxu0 %v962
      %v1063 = vpop.f32.mrb[0].mxu0
      %v1064 = vadd.f32 0.0, %v1063
      %v1065 = vpop.f32.mrb[0].mxu0
      %v1066 = vpop.f32.mrb[0].mxu0
      %v1067 = vadd.f32 0.0, %v1066
      %v1068 = vpop.f32.mrb[0].mxu0
      %1069 = vmatprep.mubr.bf16.mxu0 0
      %1070 = vmatmul.mubr.bf16.gmra.mrb[0].mxu0 %v965
      %v1071 = vpop.f32.mrb[0].mxu0
      %v1072 = vadd.f32 0.0, %v1071
      %v1073 = vpop.f32.mrb[0].mxu0
      %v1074 = vpop.f32.mrb[0].mxu0
      %v1075 = vadd.f32 0.0, %v1074
      %v1076 = vpop.f32.mrb[0].mxu0
      %1077 = vmatprep.mubr.bf16.mxu0 0
      %1078 = vmatmul.mubr.bf16.gmra.mrb[0].mxu0 %v968
      %v1079 = vpop.f32.mrb[0].mxu0
      %v1080 = vadd.f32 0.0, %v1079
      %v1081 = vpop.f32.mrb[0].mxu0
      %v1082 = vpop.f32.mrb[0].mxu0
      %v1083 = vadd.f32 0.0, %v1082
      %v1084 = vpop.f32.mrb[0].mxu0
      %1085 = vmatprep.mubr.bf16.mxu0 0
      %1086 = vmatmul.mubr.bf16.gmra.mrb[0].mxu0 %v971
      %v1087 = vpop.f32.mrb[0].mxu0
      %v1088 = vadd.f32 0.0, %v1087
      %v1089 = vpop.f32.mrb[0].mxu0
      %v1090 = vpop.f32.mrb[0].mxu0
      %v1091 = vadd.f32 0.0, %v1090
      %v1092 = vpop.f32.mrb[0].mxu0
      %1093 = vdwg.mxu0
      %1102 = vrot.lane.b32.xlu0 %v833, 64
      %v1103 = vpop.permute.xlu0 %1102
      %1104 = vrot.lane.b32.xlu0 %v834, 64
      %v1105 = vpop.permute.xlu0 %1104
      %1106 = vrot.lane.b32.xlu0 %v835, 64
      %v1107 = vpop.permute.xlu0 %1106
      %1108 = vrot.lane.b32.xlu0 %v836, 64
      %v1109 = vpop.permute.xlu0 %1108
      %1110 = vrot.lane.b32.xlu0 %v837, 64
      %v1111 = vpop.permute.xlu0 %1110
      %1112 = vrot.lane.b32.xlu0 %v838, 64
      %v1113 = vpop.permute.xlu0 %1112
      %1114 = vrot.lane.b32.xlu0 %v839, 64
      %v1115 = vpop.permute.xlu0 %1114
      %1116 = vrot.lane.b32.xlu0 %v840, 64
      %v1117 = vpop.permute.xlu0 %1116
      %v1119 = vsel %vm948, %v801, 0
      %v1122 = vsel %vm948, %v802, 0
      %v1125 = vsel %vm948, %v803, 0
      %v1128 = vsel %vm948, %v804, 0
      %v1131 = vsel %vm948, %v805, 0
      %v1134 = vsel %vm948, %v806, 0
      %v1137 = vsel %vm948, %v807, 0
      %v1140 = vsel %vm948, %v808, 0
      %v1143 = vsel %vm948, %v1103, 0
      %v1146 = vsel %vm948, %v1105, 0
      %v1149 = vsel %vm948, %v1107, 0
      %v1152 = vsel %vm948, %v1109, 0
      %v1155 = vsel %vm948, %v1111, 0
      %v1158 = vsel %vm948, %v1113, 0
      %v1161 = vsel %vm948, %v1115, 0
      %v1164 = vsel %vm948, %v1117, 0
      %1166 = vmatprep.subr.bf16.mxu0 0
      %1167 = vmatpush1.bf16.xpose.msra.mxu0 %v1143
      %1168 = vmatprep.subr.bf16.mxu0 0
      %1169 = vmatpush1.bf16.xpose.msra.mxu0 %v1146
      %1170 = vmatprep.subr.bf16.mxu0 0
      %1171 = vmatpush1.bf16.xpose.msra.mxu0 %v1149
      %1172 = vmatprep.subr.bf16.mxu0 0
      %1173 = vmatpush1.bf16.xpose.msra.mxu0 %v1152
      %1174 = vmatprep.subr.bf16.mxu0 0
      %1175 = vmatpush1.bf16.xpose.msra.mxu0 %v1155
      %1176 = vmatprep.subr.bf16.mxu0 0
      %1177 = vmatpush1.bf16.xpose.msra.mxu0 %v1158
      %1178 = vmatprep.subr.bf16.mxu0 0
      %1179 = vmatpush1.bf16.xpose.msra.mxu0 %v1161
      %1180 = vmatprep.subr.bf16.mxu0 0
      %1181 = vmatpush1.bf16.xpose.msra.mxu0 %v1164
      %1182 = vmatprep.subr.bf16.mxu0 0
      %1183 = vmatpush1.bf16.xpose.msra.mxu0 0
      %1184 = vmatprep.subr.bf16.mxu0 0
      %1185 = vmatpush1.bf16.xpose.msra.mxu0 0
      %1186 = vmatprep.subr.bf16.mxu0 0
      %1187 = vmatpush1.bf16.xpose.msra.mxu0 0
      %1188 = vmatprep.subr.bf16.mxu0 0
      %1189 = vmatpush1.bf16.xpose.msra.mxu0 0
      %1190 = vmatprep.subr.bf16.mxu0 0
      %1191 = vmatpush1.bf16.xpose.msra.mxu0 0
      %1192 = vmatprep.subr.bf16.mxu0 0
      %1193 = vmatpush1.bf16.xpose.msra.mxu0 0
      %1194 = vmatprep.subr.bf16.mxu0 0
      %1195 = vmatpush1.bf16.xpose.msra.mxu0 0
      %1196 = vmatprep.subr.bf16.mxu0 0
      %1197 = vmatpush1.bf16.xpose.msra.mxu0 0
      %1198 = vmatprep.mubr.bf16.mxu0 0
      %1199 = vmatmul.mubr.bf16.gmra.mrb[0].mxu0 %v1119
      %v1200 = vpop.f32.mrb[0].mxu0
      %v1201 = vadd.f32 0.0, %v1200
      %v1202 = vpop.f32.mrb[0].mxu0
      %v1203 = vpop.f32.mrb[0].mxu0
      %v1204 = vadd.f32 0.0, %v1203
      %v1205 = vpop.f32.mrb[0].mxu0
      %1206 = vmatprep.mubr.bf16.mxu0 0
      %1207 = vmatmul.mubr.bf16.gmra.mrb[0].mxu0 %v1122
      %v1208 = vpop.f32.mrb[0].mxu0
      %v1209 = vadd.f32 0.0, %v1208
      %v1210 = vpop.f32.mrb[0].mxu0
      %v1211 = vpop.f32.mrb[0].mxu0
      %v1212 = vadd.f32 0.0, %v1211
      %v1213 = vpop.f32.mrb[0].mxu0
      %1214 = vmatprep.mubr.bf16.mxu0 0
      %1215 = vmatmul.mubr.bf16.gmra.mrb[0].mxu0 %v1125
      %v1216 = vpop.f32.mrb[0].mxu0
      %v1217 = vadd.f32 0.0, %v1216
      %v1218 = vpop.f32.mrb[0].mxu0
      %v1219 = vpop.f32.mrb[0].mxu0
      %v1220 = vadd.f32 0.0, %v1219
      %v1221 = vpop.f32.mrb[0].mxu0
      %1222 = vmatprep.mubr.bf16.mxu0 0
      %1223 = vmatmul.mubr.bf16.gmra.mrb[0].mxu0 %v1128
      %v1224 = vpop.f32.mrb[0].mxu0
      %v1225 = vadd.f32 0.0, %v1224
      %v1226 = vpop.f32.mrb[0].mxu0
      %v1227 = vpop.f32.mrb[0].mxu0
      %v1228 = vadd.f32 0.0, %v1227
      %v1229 = vpop.f32.mrb[0].mxu0
      %1230 = vmatprep.mubr.bf16.mxu0 0
      %1231 = vmatmul.mubr.bf16.gmra.mrb[0].mxu0 %v1131
      %v1232 = vpop.f32.mrb[0].mxu0
      %v1233 = vadd.f32 0.0, %v1232
      %v1234 = vpop.f32.mrb[0].mxu0
      %v1235 = vpop.f32.mrb[0].mxu0
      %v1236 = vadd.f32 0.0, %v1235
      %v1237 = vpop.f32.mrb[0].mxu0
      %1238 = vmatprep.mubr.bf16.mxu0 0
      %1239 = vmatmul.mubr.bf16.gmra.mrb[0].mxu0 %v1134
      %v1240 = vpop.f32.mrb[0].mxu0
      %v1241 = vadd.f32 0.0, %v1240
      %v1242 = vpop.f32.mrb[0].mxu0
      %v1243 = vpop.f32.mrb[0].mxu0
      %v1244 = vadd.f32 0.0, %v1243
      %v1245 = vpop.f32.mrb[0].mxu0
      %1246 = vmatprep.mubr.bf16.mxu0 0
      %1247 = vmatmul.mubr.bf16.gmra.mrb[0].mxu0 %v1137
      %v1248 = vpop.f32.mrb[0].mxu0
      %v1249 = vadd.f32 0.0, %v1248
      %v1250 = vpop.f32.mrb[0].mxu0
      %v1251 = vpop.f32.mrb[0].mxu0
      %v1252 = vadd.f32 0.0, %v1251
      %v1253 = vpop.f32.mrb[0].mxu0
      %1254 = vmatprep.mubr.bf16.mxu0 0
      %1255 = vmatmul.mubr.bf16.gmra.mrb[0].mxu0 %v1140
      %v1256 = vpop.f32.mrb[0].mxu0
      %v1257 = vadd.f32 0.0, %v1256
      %v1258 = vpop.f32.mrb[0].mxu0
      %v1259 = vpop.f32.mrb[0].mxu0
      %v1260 = vadd.f32 0.0, %v1259
      %v1261 = vpop.f32.mrb[0].mxu0
      %1262 = vdwg.mxu0
      %1271 = vrot.lane.b32.xlu0 %v841, 64
      %v1272 = vpop.permute.xlu0 %1271
      %1273 = vrot.lane.b32.xlu0 %v842, 64
      %v1274 = vpop.permute.xlu0 %1273
      %1275 = vrot.lane.b32.xlu0 %v843, 64
      %v1276 = vpop.permute.xlu0 %1275
      %1277 = vrot.lane.b32.xlu0 %v844, 64
      %v1278 = vpop.permute.xlu0 %1277
      %1279 = vrot.lane.b32.xlu0 %v845, 64
      %v1280 = vpop.permute.xlu0 %1279
      %1281 = vrot.lane.b32.xlu0 %v846, 64
      %v1282 = vpop.permute.xlu0 %1281
      %1283 = vrot.lane.b32.xlu0 %v847, 64
      %v1284 = vpop.permute.xlu0 %1283
      %1285 = vrot.lane.b32.xlu0 %v848, 64
      %v1286 = vpop.permute.xlu0 %1285
      %v1288 = vsel %vm948, %v809, 0
      %v1291 = vsel %vm948, %v810, 0
      %v1294 = vsel %vm948, %v811, 0
      %v1297 = vsel %vm948, %v812, 0
      %v1300 = vsel %vm948, %v813, 0
      %v1303 = vsel %vm948, %v814, 0
      %v1306 = vsel %vm948, %v815, 0
      %v1309 = vsel %vm948, %v816, 0
      %v1312 = vsel %vm948, %v1272, 0
      %v1315 = vsel %vm948, %v1274, 0
      %v1318 = vsel %vm948, %v1276, 0
      %v1321 = vsel %vm948, %v1278, 0
      %v1324 = vsel %vm948, %v1280, 0
      %v1327 = vsel %vm948, %v1282, 0
      %v1330 = vsel %vm948, %v1284, 0
      %v1333 = vsel %vm948, %v1286, 0
      %1335 = vmatprep.subr.bf16.mxu0 0
      %1336 = vmatpush1.bf16.xpose.msra.mxu0 %v1312
      %1337 = vmatprep.subr.bf16.mxu0 0
      %1338 = vmatpush1.bf16.xpose.msra.mxu0 %v1315
      %1339 = vmatprep.subr.bf16.mxu0 0
      %1340 = vmatpush1.bf16.xpose.msra.mxu0 %v1318
      %1341 = vmatprep.subr.bf16.mxu0 0
      %1342 = vmatpush1.bf16.xpose.msra.mxu0 %v1321
      %1343 = vmatprep.subr.bf16.mxu0 0
      %1344 = vmatpush1.bf16.xpose.msra.mxu0 %v1324
      %1345 = vmatprep.subr.bf16.mxu0 0
      %1346 = vmatpush1.bf16.xpose.msra.mxu0 %v1327
      %1347 = vmatprep.subr.bf16.mxu0 0
      %1348 = vmatpush1.bf16.xpose.msra.mxu0 %v1330
      %1349 = vmatprep.subr.bf16.mxu0 0
      %1350 = vmatpush1.bf16.xpose.msra.mxu0 %v1333
      %1351 = vmatprep.subr.bf16.mxu0 0
      %1352 = vmatpush1.bf16.xpose.msra.mxu0 0
      %1353 = vmatprep.subr.bf16.mxu0 0
      %1354 = vmatpush1.bf16.xpose.msra.mxu0 0
      %1355 = vmatprep.subr.bf16.mxu0 0
      %1356 = vmatpush1.bf16.xpose.msra.mxu0 0
      %1357 = vmatprep.subr.bf16.mxu0 0
      %1358 = vmatpush1.bf16.xpose.msra.mxu0 0
      %1359 = vmatprep.subr.bf16.mxu0 0
      %1360 = vmatpush1.bf16.xpose.msra.mxu0 0
      %1361 = vmatprep.subr.bf16.mxu0 0
      %1362 = vmatpush1.bf16.xpose.msra.mxu0 0
      %1363 = vmatprep.subr.bf16.mxu0 0
      %1364 = vmatpush1.bf16.xpose.msra.mxu0 0
      %1365 = vmatprep.subr.bf16.mxu0 0
      %1366 = vmatpush1.bf16.xpose.msra.mxu0 0
      %1367 = vmatprep.mubr.bf16.mxu0 0
      %1368 = vmatmul.mubr.bf16.gmra.mrb[0].mxu0 %v1288
      %v1369 = vpop.f32.mrb[0].mxu0
      %v1370 = vadd.f32 0.0, %v1369
      %v1371 = vpop.f32.mrb[0].mxu0
      %v1372 = vpop.f32.mrb[0].mxu0
      %v1373 = vadd.f32 0.0, %v1372
      %v1374 = vpop.f32.mrb[0].mxu0
      %1375 = vmatprep.mubr.bf16.mxu0 0
      %1376 = vmatmul.mubr.bf16.gmra.mrb[0].mxu0 %v1291
      %v1377 = vpop.f32.mrb[0].mxu0
      %v1378 = vadd.f32 0.0, %v1377
      %v1379 = vpop.f32.mrb[0].mxu0
      %v1380 = vpop.f32.mrb[0].mxu0
      %v1381 = vadd.f32 0.0, %v1380
      %v1382 = vpop.f32.mrb[0].mxu0
      %1383 = vmatprep.mubr.bf16.mxu0 0
      %1384 = vmatmul.mubr.bf16.gmra.mrb[0].mxu0 %v1294
      %v1385 = vpop.f32.mrb[0].mxu0
      %v1386 = vadd.f32 0.0, %v1385
      %v1387 = vpop.f32.mrb[0].mxu0
      %v1388 = vpop.f32.mrb[0].mxu0
      %v1389 = vadd.f32 0.0, %v1388
      %v1390 = vpop.f32.mrb[0].mxu0
      %1391 = vmatprep.mubr.bf16.mxu0 0
      %1392 = vmatmul.mubr.bf16.gmra.mrb[0].mxu0 %v1297
      %v1393 = vpop.f32.mrb[0].mxu0
      %v1394 = vadd.f32 0.0, %v1393
      %v1395 = vpop.f32.mrb[0].mxu0
      %v1396 = vpop.f32.mrb[0].mxu0
      %v1397 = vadd.f32 0.0, %v1396
      %v1398 = vpop.f32.mrb[0].mxu0
      %1399 = vmatprep.mubr.bf16.mxu0 0
      %1400 = vmatmul.mubr.bf16.gmra.mrb[0].mxu0 %v1300
      %v1401 = vpop.f32.mrb[0].mxu0
      %v1402 = vadd.f32 0.0, %v1401
      %v1403 = vpop.f32.mrb[0].mxu0
      %v1404 = vpop.f32.mrb[0].mxu0
      %v1405 = vadd.f32 0.0, %v1404
      %v1406 = vpop.f32.mrb[0].mxu0
      %1407 = vmatprep.mubr.bf16.mxu0 0
      %1408 = vmatmul.mubr.bf16.gmra.mrb[0].mxu0 %v1303
      %v1409 = vpop.f32.mrb[0].mxu0
      %v1410 = vadd.f32 0.0, %v1409
      %v1411 = vpop.f32.mrb[0].mxu0
      %v1412 = vpop.f32.mrb[0].mxu0
      %v1413 = vadd.f32 0.0, %v1412
      %v1414 = vpop.f32.mrb[0].mxu0
      %1415 = vmatprep.mubr.bf16.mxu0 0
      %1416 = vmatmul.mubr.bf16.gmra.mrb[0].mxu0 %v1306
      %v1417 = vpop.f32.mrb[0].mxu0
      %v1418 = vadd.f32 0.0, %v1417
      %v1419 = vpop.f32.mrb[0].mxu0
      %v1420 = vpop.f32.mrb[0].mxu0
      %v1421 = vadd.f32 0.0, %v1420
      %v1422 = vpop.f32.mrb[0].mxu0
      %1423 = vmatprep.mubr.bf16.mxu0 0
      %1424 = vmatmul.mubr.bf16.gmra.mrb[0].mxu0 %v1309
      %v1425 = vpop.f32.mrb[0].mxu0
      %v1426 = vadd.f32 0.0, %v1425
      %v1427 = vpop.f32.mrb[0].mxu0
      %v1428 = vpop.f32.mrb[0].mxu0
      %v1429 = vadd.f32 0.0, %v1428
      %v1430 = vpop.f32.mrb[0].mxu0
      %1431 = vdwg.mxu0
      %1440 = vrot.lane.b32.xlu0 %v849, 64
      %v1441 = vpop.permute.xlu0 %1440
      %1442 = vrot.lane.b32.xlu0 %v850, 64
      %v1443 = vpop.permute.xlu0 %1442
      %1444 = vrot.lane.b32.xlu0 %v851, 64
      %v1445 = vpop.permute.xlu0 %1444
      %1446 = vrot.lane.b32.xlu0 %v852, 64
      %v1447 = vpop.permute.xlu0 %1446
      %1448 = vrot.lane.b32.xlu0 %v853, 64
      %v1449 = vpop.permute.xlu0 %1448
      %1450 = vrot.lane.b32.xlu0 %v854, 64
      %v1451 = vpop.permute.xlu0 %1450
      %1452 = vrot.lane.b32.xlu0 %v855, 64
      %v1453 = vpop.permute.xlu0 %1452
      %1454 = vrot.lane.b32.xlu0 %v856, 64
      %v1455 = vpop.permute.xlu0 %1454
      %v1457 = vsel %vm948, %v817, 0
      %v1460 = vsel %vm948, %v818, 0
      %v1463 = vsel %vm948, %v819, 0
      %v1466 = vsel %vm948, %v820, 0
      %v1469 = vsel %vm948, %v821, 0
      %v1472 = vsel %vm948, %v822, 0
      %v1475 = vsel %vm948, %v823, 0
      %v1478 = vsel %vm948, %v824, 0
      %v1481 = vsel %vm948, %v1441, 0
      %v1484 = vsel %vm948, %v1443, 0
      %v1487 = vsel %vm948, %v1445, 0
      %v1490 = vsel %vm948, %v1447, 0
      %v1493 = vsel %vm948, %v1449, 0
      %v1496 = vsel %vm948, %v1451, 0
      %v1499 = vsel %vm948, %v1453, 0
      %v1502 = vsel %vm948, %v1455, 0
      %1504 = vmatprep.subr.bf16.mxu0 0
      %1505 = vmatpush1.bf16.xpose.msra.mxu0 %v1481
      %1506 = vmatprep.subr.bf16.mxu0 0
      %1507 = vmatpush1.bf16.xpose.msra.mxu0 %v1484
      %1508 = vmatprep.subr.bf16.mxu0 0
      %1509 = vmatpush1.bf16.xpose.msra.mxu0 %v1487
      %1510 = vmatprep.subr.bf16.mxu0 0
      %1511 = vmatpush1.bf16.xpose.msra.mxu0 %v1490
      %1512 = vmatprep.subr.bf16.mxu0 0
      %1513 = vmatpush1.bf16.xpose.msra.mxu0 %v1493
      %1514 = vmatprep.subr.bf16.mxu0 0
      %1515 = vmatpush1.bf16.xpose.msra.mxu0 %v1496
      %1516 = vmatprep.subr.bf16.mxu0 0
      %1517 = vmatpush1.bf16.xpose.msra.mxu0 %v1499
      %1518 = vmatprep.subr.bf16.mxu0 0
      %1519 = vmatpush1.bf16.xpose.msra.mxu0 %v1502
      %1520 = vmatprep.subr.bf16.mxu0 0
      %1521 = vmatpush1.bf16.xpose.msra.mxu0 0
      %1522 = vmatprep.subr.bf16.mxu0 0
      %1523 = vmatpush1.bf16.xpose.msra.mxu0 0
      %1524 = vmatprep.subr.bf16.mxu0 0
      %1525 = vmatpush1.bf16.xpose.msra.mxu0 0
      %1526 = vmatprep.subr.bf16.mxu0 0
      %1527 = vmatpush1.bf16.xpose.msra.mxu0 0
      %1528 = vmatprep.subr.bf16.mxu0 0
      %1529 = vmatpush1.bf16.xpose.msra.mxu0 0
      %1530 = vmatprep.subr.bf16.mxu0 0
      %1531 = vmatpush1.bf16.xpose.msra.mxu0 0
      %1532 = vmatprep.subr.bf16.mxu0 0
      %1533 = vmatpush1.bf16.xpose.msra.mxu0 0
      %1534 = vmatprep.subr.bf16.mxu0 0
      %1535 = vmatpush1.bf16.xpose.msra.mxu0 0
      %1536 = vmatprep.mubr.bf16.mxu0 0
      %1537 = vmatmul.mubr.bf16.gmra.mrb[0].mxu0 %v1457
      %v1538 = vpop.f32.mrb[0].mxu0
      %v1539 = vadd.f32 0.0, %v1538
      %v1540 = vpop.f32.mrb[0].mxu0
      %v1541 = vpop.f32.mrb[0].mxu0
      %v1542 = vadd.f32 0.0, %v1541
      %v1543 = vpop.f32.mrb[0].mxu0
      %1544 = vmatprep.mubr.bf16.mxu0 0
      %1545 = vmatmul.mubr.bf16.gmra.mrb[0].mxu0 %v1460
      %v1546 = vpop.f32.mrb[0].mxu0
      %v1547 = vadd.f32 0.0, %v1546
      %v1548 = vpop.f32.mrb[0].mxu0
      %v1549 = vpop.f32.mrb[0].mxu0
      %v1550 = vadd.f32 0.0, %v1549
      %v1551 = vpop.f32.mrb[0].mxu0
      %1552 = vmatprep.mubr.bf16.mxu0 0
      %1553 = vmatmul.mubr.bf16.gmra.mrb[0].mxu0 %v1463
      %v1554 = vpop.f32.mrb[0].mxu0
      %v1555 = vadd.f32 0.0, %v1554
      %v1556 = vpop.f32.mrb[0].mxu0
      %v1557 = vpop.f32.mrb[0].mxu0
      %v1558 = vadd.f32 0.0, %v1557
      %v1559 = vpop.f32.mrb[0].mxu0
      %1560 = vmatprep.mubr.bf16.mxu0 0
      %1561 = vmatmul.mubr.bf16.gmra.mrb[0].mxu0 %v1466
      %v1562 = vpop.f32.mrb[0].mxu0
      %v1563 = vadd.f32 0.0, %v1562
      %v1564 = vpop.f32.mrb[0].mxu0
      %v1565 = vpop.f32.mrb[0].mxu0
      %v1566 = vadd.f32 0.0, %v1565
      %v1567 = vpop.f32.mrb[0].mxu0
      %1568 = vmatprep.mubr.bf16.mxu0 0
      %1569 = vmatmul.mubr.bf16.gmra.mrb[0].mxu0 %v1469
      %v1570 = vpop.f32.mrb[0].mxu0
      %v1571 = vadd.f32 0.0, %v1570
      %v1572 = vpop.f32.mrb[0].mxu0
      %v1573 = vpop.f32.mrb[0].mxu0
      %v1574 = vadd.f32 0.0, %v1573
      %v1575 = vpop.f32.mrb[0].mxu0
      %1576 = vmatprep.mubr.bf16.mxu0 0
      %1577 = vmatmul.mubr.bf16.gmra.mrb[0].mxu0 %v1472
      %v1578 = vpop.f32.mrb[0].mxu0
      %v1579 = vadd.f32 0.0, %v1578
      %v1580 = vpop.f32.mrb[0].mxu0
      %v1581 = vpop.f32.mrb[0].mxu0
      %v1582 = vadd.f32 0.0, %v1581
      %v1583 = vpop.f32.mrb[0].mxu0
      %1584 = vmatprep.mubr.bf16.mxu0 0
      %1585 = vmatmul.mubr.bf16.gmra.mrb[0].mxu0 %v1475
      %v1586 = vpop.f32.mrb[0].mxu0
      %v1587 = vadd.f32 0.0, %v1586
      %v1588 = vpop.f32.mrb[0].mxu0
      %v1589 = vpop.f32.mrb[0].mxu0
      %v1590 = vadd.f32 0.0, %v1589
      %v1591 = vpop.f32.mrb[0].mxu0
      %1592 = vmatprep.mubr.bf16.mxu0 0
      %1593 = vmatmul.mubr.bf16.gmra.mrb[0].mxu0 %v1478
      %v1594 = vpop.f32.mrb[0].mxu0
      %v1595 = vadd.f32 0.0, %v1594
      %v1596 = vpop.f32.mrb[0].mxu0
      %v1597 = vpop.f32.mrb[0].mxu0
      %v1598 = vadd.f32 0.0, %v1597
      %v1599 = vpop.f32.mrb[0].mxu0
      %1600 = vdwg.mxu0
      %v1601 = vsel %vm908, 1, 0
      %v1602 = vsel %vm909, 1, 0
      %v1603 = vsel %vm910, 1, 0
      %v1604 = vsel %vm911, 1, 0
      %v1605 = vsel %vm912, 1, 0
      %v1606 = vsel %vm913, 1, 0
      %v1607 = vsel %vm914, 1, 0
      %v1608 = vsel %vm915, 1, 0
      %v1609 = vsel %vm916, 1, 0
      %v1610 = vsel %vm917, 1, 0
      %v1611 = vsel %vm918, 1, 0
      %v1612 = vsel %vm919, 1, 0
      %v1613 = vsel %vm920, 1, 0
      %v1614 = vsel %vm921, 1, 0
      %v1615 = vsel %vm922, 1, 0
      %v1616 = vsel %vm923, 1, 0
      %vm1617 = vcmp.eq.s32.totalorder %v1601, 1
      %vm1618 = vcmp.eq.s32.totalorder %v1602, 1
      %vm1619 = vcmp.eq.s32.totalorder %v1603, 1
      %vm1620 = vcmp.eq.s32.totalorder %v1604, 1
      %vm1621 = vcmp.eq.s32.totalorder %v1605, 1
      %vm1622 = vcmp.eq.s32.totalorder %v1606, 1
      %vm1623 = vcmp.eq.s32.totalorder %v1607, 1
      %vm1624 = vcmp.eq.s32.totalorder %v1608, 1
      %vm1625 = vcmp.eq.s32.totalorder %v1609, 1
      %vm1626 = vcmp.eq.s32.totalorder %v1610, 1
      %vm1627 = vcmp.eq.s32.totalorder %v1611, 1
      %vm1628 = vcmp.eq.s32.totalorder %v1612, 1
      %vm1629 = vcmp.eq.s32.totalorder %v1613, 1
      %vm1630 = vcmp.eq.s32.totalorder %v1614, 1
      %vm1631 = vcmp.eq.s32.totalorder %v1615, 1
      %vm1632 = vcmp.eq.s32.totalorder %v1616, 1
      %v1633 = vsel %vm1617, %v1032, -inf
      %v1634 = vsel %vm1618, %v1035, -inf
      %v1635 = vsel %vm1619, %v1040, -inf
      %v1636 = vsel %vm1620, %v1043, -inf
      %v1637 = vsel %vm1621, %v1048, -inf
      %v1638 = vsel %vm1622, %v1051, -inf
      %v1639 = vsel %vm1623, %v1056, -inf
      %v1640 = vsel %vm1624, %v1059, -inf
      %v1641 = vsel %vm1625, %v1064, -inf
      %v1642 = vsel %vm1626, %v1067, -inf
      %v1643 = vsel %vm1627, %v1072, -inf
      %v1644 = vsel %vm1628, %v1075, -inf
      %v1645 = vsel %vm1629, %v1080, -inf
      %v1646 = vsel %vm1630, %v1083, -inf
      %v1647 = vsel %vm1631, %v1088, -inf
      %v1648 = vsel %vm1632, %v1091, -inf
      %v1649 = vsel %vm1617, %v1201, -inf
      %v1650 = vsel %vm1618, %v1204, -inf
      %v1651 = vsel %vm1619, %v1209, -inf
      %v1652 = vsel %vm1620, %v1212, -inf
      %v1653 = vsel %vm1621, %v1217, -inf
      %v1654 = vsel %vm1622, %v1220, -inf
      %v1655 = vsel %vm1623, %v1225, -inf
      %v1656 = vsel %vm1624, %v1228, -inf
      %v1657 = vsel %vm1625, %v1233, -inf
      %v1658 = vsel %vm1626, %v1236, -inf
      %v1659 = vsel %vm1627, %v1241, -inf
      %v1660 = vsel %vm1628, %v1244, -inf
      %v1661 = vsel %vm1629, %v1249, -inf
      %v1662 = vsel %vm1630, %v1252, -inf
      %v1663 = vsel %vm1631, %v1257, -inf
      %v1664 = vsel %vm1632, %v1260, -inf
      %v1665 = vsel %vm1617, %v1370, -inf
      %v1666 = vsel %vm1618, %v1373, -inf
      %v1667 = vsel %vm1619, %v1378, -inf
      %v1668 = vsel %vm1620, %v1381, -inf
      %v1669 = vsel %vm1621, %v1386, -inf
      %v1670 = vsel %vm1622, %v1389, -inf
      %v1671 = vsel %vm1623, %v1394, -inf
      %v1672 = vsel %vm1624, %v1397, -inf
      %v1673 = vsel %vm1625, %v1402, -inf
      %v1674 = vsel %vm1626, %v1405, -inf
      %v1675 = vsel %vm1627, %v1410, -inf
      %v1676 = vsel %vm1628, %v1413, -inf
      %v1677 = vsel %vm1629, %v1418, -inf
      %v1678 = vsel %vm1630, %v1421, -inf
      %v1679 = vsel %vm1631, %v1426, -inf
      %v1680 = vsel %vm1632, %v1429, -inf
      %v1681 = vsel %vm1617, %v1539, -inf
      %v1682 = vsel %vm1618, %v1542, -inf
      %v1683 = vsel %vm1619, %v1547, -inf
      %v1684 = vsel %vm1620, %v1550, -inf
      %v1685 = vsel %vm1621, %v1555, -inf
      %v1686 = vsel %vm1622, %v1558, -inf
      %v1687 = vsel %vm1623, %v1563, -inf
      %v1688 = vsel %vm1624, %v1566, -inf
      %v1689 = vsel %vm1625, %v1571, -inf
      %v1690 = vsel %vm1626, %v1574, -inf
      %v1691 = vsel %vm1627, %v1579, -inf
      %v1692 = vsel %vm1628, %v1582, -inf
      %v1693 = vsel %vm1629, %v1587, -inf
      %v1694 = vsel %vm1630, %v1590, -inf
      %v1695 = vsel %vm1631, %v1595, -inf
      %v1696 = vsel %vm1632, %v1598, -inf
      %1697 = vmax.xlane.f32.xlu0 %v1633
      %v1698 = vpop.xlane.xlu0 %1697
      %1699 = vmax.xlane.f32.xlu0 %v1634
      %v1700 = vpop.xlane.xlu0 %1699
      %1701 = vmax.xlane.f32.xlu0 %v1635
      %v1702 = vpop.xlane.xlu0 %1701
      %1703 = vmax.xlane.f32.xlu0 %v1636
      %v1704 = vpop.xlane.xlu0 %1703
      %1705 = vmax.xlane.f32.xlu0 %v1637
      %v1706 = vpop.xlane.xlu0 %1705
      %1707 = vmax.xlane.f32.xlu0 %v1638
      %v1708 = vpop.xlane.xlu0 %1707
      %1709 = vmax.xlane.f32.xlu0 %v1639
      %v1710 = vpop.xlane.xlu0 %1709
      %1711 = vmax.xlane.f32.xlu0 %v1640
      %v1712 = vpop.xlane.xlu0 %1711
      %1713 = vmax.xlane.f32.xlu0 %v1641
      %v1714 = vpop.xlane.xlu0 %1713
      %1715 = vmax.xlane.f32.xlu0 %v1642
      %v1716 = vpop.xlane.xlu0 %1715
      %1717 = vmax.xlane.f32.xlu0 %v1643
      %v1718 = vpop.xlane.xlu0 %1717
      %1719 = vmax.xlane.f32.xlu0 %v1644
      %v1720 = vpop.xlane.xlu0 %1719
      %1721 = vmax.xlane.f32.xlu0 %v1645
      %v1722 = vpop.xlane.xlu0 %1721
      %1723 = vmax.xlane.f32.xlu0 %v1646
      %v1724 = vpop.xlane.xlu0 %1723
      %1725 = vmax.xlane.f32.xlu0 %v1647
      %v1726 = vpop.xlane.xlu0 %1725
      %1727 = vmax.xlane.f32.xlu0 %v1648
      %v1728 = vpop.xlane.xlu0 %1727
      %1729 = vmax.xlane.f32.xlu0 %v1649
      %v1730 = vpop.xlane.xlu0 %1729
      %1731 = vmax.xlane.f32.xlu0 %v1650
      %v1732 = vpop.xlane.xlu0 %1731
      %1733 = vmax.xlane.f32.xlu0 %v1651
      %v1734 = vpop.xlane.xlu0 %1733
      %1735 = vmax.xlane.f32.xlu0 %v1652
      %v1736 = vpop.xlane.xlu0 %1735
      %1737 = vmax.xlane.f32.xlu0 %v1653
      %v1738 = vpop.xlane.xlu0 %1737
      %1739 = vmax.xlane.f32.xlu0 %v1654
      %v1740 = vpop.xlane.xlu0 %1739
      %1741 = vmax.xlane.f32.xlu0 %v1655
      %v1742 = vpop.xlane.xlu0 %1741
      %1743 = vmax.xlane.f32.xlu0 %v1656
      %v1744 = vpop.xlane.xlu0 %1743
      %1745 = vmax.xlane.f32.xlu0 %v1657
      %v1746 = vpop.xlane.xlu0 %1745
      %1747 = vmax.xlane.f32.xlu0 %v1658
      %v1748 = vpop.xlane.xlu0 %1747
      %1749 = vmax.xlane.f32.xlu0 %v1659
      %v1750 = vpop.xlane.xlu0 %1749
      %1751 = vmax.xlane.f32.xlu0 %v1660
      %v1752 = vpop.xlane.xlu0 %1751
      %1753 = vmax.xlane.f32.xlu0 %v1661
      %v1754 = vpop.xlane.xlu0 %1753
      %1755 = vmax.xlane.f32.xlu0 %v1662
      %v1756 = vpop.xlane.xlu0 %1755
      %1757 = vmax.xlane.f32.xlu0 %v1663
      %v1758 = vpop.xlane.xlu0 %1757
      %1759 = vmax.xlane.f32.xlu0 %v1664
      %v1760 = vpop.xlane.xlu0 %1759
      %1761 = vmax.xlane.f32.xlu0 %v1665
      %v1762 = vpop.xlane.xlu0 %1761
      %1763 = vmax.xlane.f32.xlu0 %v1666
      %v1764 = vpop.xlane.xlu0 %1763
      %1765 = vmax.xlane.f32.xlu0 %v1667
      %v1766 = vpop.xlane.xlu0 %1765
      %1767 = vmax.xlane.f32.xlu0 %v1668
      %v1768 = vpop.xlane.xlu0 %1767
      %1769 = vmax.xlane.f32.xlu0 %v1669
      %v1770 = vpop.xlane.xlu0 %1769
      %1771 = vmax.xlane.f32.xlu0 %v1670
      %v1772 = vpop.xlane.xlu0 %1771
      %1773 = vmax.xlane.f32.xlu0 %v1671
      %v1774 = vpop.xlane.xlu0 %1773
      %1775 = vmax.xlane.f32.xlu0 %v1672
      %v1776 = vpop.xlane.xlu0 %1775
      %1777 = vmax.xlane.f32.xlu0 %v1673
      %v1778 = vpop.xlane.xlu0 %1777
      %1779 = vmax.xlane.f32.xlu0 %v1674
      %v1780 = vpop.xlane.xlu0 %1779
      %1781 = vmax.xlane.f32.xlu0 %v1675
      %v1782 = vpop.xlane.xlu0 %1781
      %1783 = vmax.xlane.f32.xlu0 %v1676
      %v1784 = vpop.xlane.xlu0 %1783
      %1785 = vmax.xlane.f32.xlu0 %v1677
      %v1786 = vpop.xlane.xlu0 %1785
      %1787 = vmax.xlane.f32.xlu0 %v1678
      %v1788 = vpop.xlane.xlu0 %1787
      %1789 = vmax.xlane.f32.xlu0 %v1679
      %v1790 = vpop.xlane.xlu0 %1789
      %1791 = vmax.xlane.f32.xlu0 %v1680
      %v1792 = vpop.xlane.xlu0 %1791
      %1793 = vmax.xlane.f32.xlu0 %v1681
      %v1794 = vpop.xlane.xlu0 %1793
      %1795 = vmax.xlane.f32.xlu0 %v1682
      %v1796 = vpop.xlane.xlu0 %1795
      %1797 = vmax.xlane.f32.xlu0 %v1683
      %v1798 = vpop.xlane.xlu0 %1797
      %1799 = vmax.xlane.f32.xlu0 %v1684
      %v1800 = vpop.xlane.xlu0 %1799
      %1801 = vmax.xlane.f32.xlu0 %v1685
      %v1802 = vpop.xlane.xlu0 %1801
      %1803 = vmax.xlane.f32.xlu0 %v1686
      %v1804 = vpop.xlane.xlu0 %1803
      %1805 = vmax.xlane.f32.xlu0 %v1687
      %v1806 = vpop.xlane.xlu0 %1805
      %1807 = vmax.xlane.f32.xlu0 %v1688
      %v1808 = vpop.xlane.xlu0 %1807
      %1809 = vmax.xlane.f32.xlu0 %v1689
      %v1810 = vpop.xlane.xlu0 %1809
      %1811 = vmax.xlane.f32.xlu0 %v1690
      %v1812 = vpop.xlane.xlu0 %1811
      %1813 = vmax.xlane.f32.xlu0 %v1691
      %v1814 = vpop.xlane.xlu0 %1813
      %1815 = vmax.xlane.f32.xlu0 %v1692
      %v1816 = vpop.xlane.xlu0 %1815
      %1817 = vmax.xlane.f32.xlu0 %v1693
      %v1818 = vpop.xlane.xlu0 %1817
      %1819 = vmax.xlane.f32.xlu0 %v1694
      %v1820 = vpop.xlane.xlu0 %1819
      %1821 = vmax.xlane.f32.xlu0 %v1695
      %v1822 = vpop.xlane.xlu0 %1821
      %1823 = vmax.xlane.f32.xlu0 %v1696
      %v1824 = vpop.xlane.xlu0 %1823
      %v1825 = vsub.f32 %v1633, %v1698
      %v1826 = vsub.f32 %v1634, %v1700
      %v1827 = vsub.f32 %v1635, %v1702
      %v1828 = vsub.f32 %v1636, %v1704
      %v1829 = vsub.f32 %v1637, %v1706
      %v1830 = vsub.f32 %v1638, %v1708
      %v1831 = vsub.f32 %v1639, %v1710
      %v1832 = vsub.f32 %v1640, %v1712
      %v1833 = vsub.f32 %v1641, %v1714
      %v1834 = vsub.f32 %v1642, %v1716
      %v1835 = vsub.f32 %v1643, %v1718
      %v1836 = vsub.f32 %v1644, %v1720
      %v1837 = vsub.f32 %v1645, %v1722
      %v1838 = vsub.f32 %v1646, %v1724
      %v1839 = vsub.f32 %v1647, %v1726
      %v1840 = vsub.f32 %v1648, %v1728
      %v1841 = vsub.f32 %v1649, %v1730
      %v1842 = vsub.f32 %v1650, %v1732
      %v1843 = vsub.f32 %v1651, %v1734
      %v1844 = vsub.f32 %v1652, %v1736
      %v1845 = vsub.f32 %v1653, %v1738
      %v1846 = vsub.f32 %v1654, %v1740
      %v1847 = vsub.f32 %v1655, %v1742
      %v1848 = vsub.f32 %v1656, %v1744
      %v1849 = vsub.f32 %v1657, %v1746
      %v1850 = vsub.f32 %v1658, %v1748
      %v1851 = vsub.f32 %v1659, %v1750
      %v1852 = vsub.f32 %v1660, %v1752
      %v1853 = vsub.f32 %v1661, %v1754
      %v1854 = vsub.f32 %v1662, %v1756
      %v1855 = vsub.f32 %v1663, %v1758
      %v1856 = vsub.f32 %v1664, %v1760
      %v1857 = vsub.f32 %v1665, %v1762
      %v1858 = vsub.f32 %v1666, %v1764
      %v1859 = vsub.f32 %v1667, %v1766
      %v1860 = vsub.f32 %v1668, %v1768
      %v1861 = vsub.f32 %v1669, %v1770
      %v1862 = vsub.f32 %v1670, %v1772
      %v1863 = vsub.f32 %v1671, %v1774
      %v1864 = vsub.f32 %v1672, %v1776
      %v1865 = vsub.f32 %v1673, %v1778
      %v1866 = vsub.f32 %v1674, %v1780
      %v1867 = vsub.f32 %v1675, %v1782
      %v1868 = vsub.f32 %v1676, %v1784
      %v1869 = vsub.f32 %v1677, %v1786
      %v1870 = vsub.f32 %v1678, %v1788
      %v1871 = vsub.f32 %v1679, %v1790
      %v1872 = vsub.f32 %v1680, %v1792
      %v1873 = vsub.f32 %v1681, %v1794
      %v1874 = vsub.f32 %v1682, %v1796
      %v1875 = vsub.f32 %v1683, %v1798
      %v1876 = vsub.f32 %v1684, %v1800
      %v1877 = vsub.f32 %v1685, %v1802
      %v1878 = vsub.f32 %v1686, %v1804
      %v1879 = vsub.f32 %v1687, %v1806
      %v1880 = vsub.f32 %v1688, %v1808
      %v1881 = vsub.f32 %v1689, %v1810
      %v1882 = vsub.f32 %v1690, %v1812
      %v1883 = vsub.f32 %v1691, %v1814
      %v1884 = vsub.f32 %v1692, %v1816
      %v1885 = vsub.f32 %v1693, %v1818
      %v1886 = vsub.f32 %v1694, %v1820
      %v1887 = vsub.f32 %v1695, %v1822
      %v1888 = vsub.f32 %v1696, %v1824
      %v1889 = vmul.f32 %v1825, 1.442695
      %v1890 = vpow.pop %v1889
      %v1891 = vmul.f32 %v1826, 1.442695
      %v1892 = vpow.pop %v1891
      %v1893 = vmul.f32 %v1827, 1.442695
      %v1894 = vpow.pop %v1893
      %v1895 = vmul.f32 %v1828, 1.442695
      %v1896 = vpow.pop %v1895
      %v1897 = vmul.f32 %v1829, 1.442695
      %v1898 = vpow.pop %v1897
      %v1899 = vmul.f32 %v1830, 1.442695
      %v1900 = vpow.pop %v1899
      %v1901 = vmul.f32 %v1831, 1.442695
      %v1902 = vpow.pop %v1901
      %v1903 = vmul.f32 %v1832, 1.442695
      %v1904 = vpow.pop %v1903
      %v1905 = vmul.f32 %v1833, 1.442695
      %v1906 = vpow.pop %v1905
      %v1907 = vmul.f32 %v1834, 1.442695
      %v1908 = vpow.pop %v1907
      %v1909 = vmul.f32 %v1835, 1.442695
      %v1910 = vpow.pop %v1909
      %v1911 = vmul.f32 %v1836, 1.442695
      %v1912 = vpow.pop %v1911
      %v1913 = vmul.f32 %v1837, 1.442695
      %v1914 = vpow.pop %v1913
      %v1915 = vmul.f32 %v1838, 1.442695
      %v1916 = vpow.pop %v1915
      %v1917 = vmul.f32 %v1839, 1.442695
      %v1918 = vpow.pop %v1917
      %v1919 = vmul.f32 %v1840, 1.442695
      %v1920 = vpow.pop %v1919
      %v1921 = vmul.f32 %v1841, 1.442695
      %v1922 = vpow.pop %v1921
      %v1923 = vmul.f32 %v1842, 1.442695
      %v1924 = vpow.pop %v1923
      %v1925 = vmul.f32 %v1843, 1.442695
      %v1926 = vpow.pop %v1925
      %v1927 = vmul.f32 %v1844, 1.442695
      %v1928 = vpow.pop %v1927
      %v1929 = vmul.f32 %v1845, 1.442695
      %v1930 = vpow.pop %v1929
      %v1931 = vmul.f32 %v1846, 1.442695
      %v1932 = vpow.pop %v1931
      %v1933 = vmul.f32 %v1847, 1.442695
      %v1934 = vpow.pop %v1933
      %v1935 = vmul.f32 %v1848, 1.442695
      %v1936 = vpow.pop %v1935
      %v1937 = vmul.f32 %v1849, 1.442695
      %v1938 = vpow.pop %v1937
      %v1939 = vmul.f32 %v1850, 1.442695
      %v1940 = vpow.pop %v1939
      %v1941 = vmul.f32 %v1851, 1.442695
      %v1942 = vpow.pop %v1941
      %v1943 = vmul.f32 %v1852, 1.442695
      %v1944 = vpow.pop %v1943
      %v1945 = vmul.f32 %v1853, 1.442695
      %v1946 = vpow.pop %v1945
      %v1947 = vmul.f32 %v1854, 1.442695
      %v1948 = vpow.pop %v1947
      %v1949 = vmul.f32 %v1855, 1.442695
      %v1950 = vpow.pop %v1949
      %v1951 = vmul.f32 %v1856, 1.442695
      %v1952 = vpow.pop %v1951
      %v1953 = vmul.f32 %v1857, 1.442695
      %v1954 = vpow.pop %v1953
      %v1955 = vmul.f32 %v1858, 1.442695
      %v1956 = vpow.pop %v1955
      %v1957 = vmul.f32 %v1859, 1.442695
      %v1958 = vpow.pop %v1957
      %v1959 = vmul.f32 %v1860, 1.442695
      %v1960 = vpow.pop %v1959
      %v1961 = vmul.f32 %v1861, 1.442695
      %v1962 = vpow.pop %v1961
      %v1963 = vmul.f32 %v1862, 1.442695
      %v1964 = vpow.pop %v1963
      %v1965 = vmul.f32 %v1863, 1.442695
      %v1966 = vpow.pop %v1965
      %v1967 = vmul.f32 %v1864, 1.442695
      %v1968 = vpow.pop %v1967
      %v1969 = vmul.f32 %v1865, 1.442695
      %v1970 = vpow.pop %v1969
      %v1971 = vmul.f32 %v1866, 1.442695
      %v1972 = vpow.pop %v1971
      %v1973 = vmul.f32 %v1867, 1.442695
      %v1974 = vpow.pop %v1973
      %v1975 = vmul.f32 %v1868, 1.442695
      %v1976 = vpow.pop %v1975
      %v1977 = vmul.f32 %v1869, 1.442695
      %v1978 = vpow.pop %v1977
      %v1979 = vmul.f32 %v1870, 1.442695
      %v1980 = vpow.pop %v1979
      %v1981 = vmul.f32 %v1871, 1.442695
      %v1982 = vpow.pop %v1981
      %v1983 = vmul.f32 %v1872, 1.442695
      %v1984 = vpow.pop %v1983
      %v1985 = vmul.f32 %v1873, 1.442695
      %v1986 = vpow.pop %v1985
      %v1987 = vmul.f32 %v1874, 1.442695
      %v1988 = vpow.pop %v1987
      %v1989 = vmul.f32 %v1875, 1.442695
      %v1990 = vpow.pop %v1989
      %v1991 = vmul.f32 %v1876, 1.442695
      %v1992 = vpow.pop %v1991
      %v1993 = vmul.f32 %v1877, 1.442695
      %v1994 = vpow.pop %v1993
      %v1995 = vmul.f32 %v1878, 1.442695
      %v1996 = vpow.pop %v1995
      %v1997 = vmul.f32 %v1879, 1.442695
      %v1998 = vpow.pop %v1997
      %v1999 = vmul.f32 %v1880, 1.442695
      %v2000 = vpow.pop %v1999
      %v2001 = vmul.f32 %v1881, 1.442695
      %v2002 = vpow.pop %v2001
      %v2003 = vmul.f32 %v1882, 1.442695
      %v2004 = vpow.pop %v2003
      %v2005 = vmul.f32 %v1883, 1.442695
      %v2006 = vpow.pop %v2005
      %v2007 = vmul.f32 %v1884, 1.442695
      %v2008 = vpow.pop %v2007
      %v2009 = vmul.f32 %v1885, 1.442695
      %v2010 = vpow.pop %v2009
      %v2011 = vmul.f32 %v1886, 1.442695
      %v2012 = vpow.pop %v2011
      %v2013 = vmul.f32 %v1887, 1.442695
      %v2014 = vpow.pop %v2013
      %v2015 = vmul.f32 %v1888, 1.442695
      %v2016 = vpow.pop %v2015
      %2017 = vadd.xlane.f32.xlu0 %v1890
      %v2018 = vpop.xlane.xlu0 %2017
      %2019 = vadd.xlane.f32.xlu0 %v1892
      %v2020 = vpop.xlane.xlu0 %2019
      %2021 = vadd.xlane.f32.xlu0 %v1894
      %v2022 = vpop.xlane.xlu0 %2021
      %2023 = vadd.xlane.f32.xlu0 %v1896
      %v2024 = vpop.xlane.xlu0 %2023
      %2025 = vadd.xlane.f32.xlu0 %v1898
      %v2026 = vpop.xlane.xlu0 %2025
      %2027 = vadd.xlane.f32.xlu0 %v1900
      %v2028 = vpop.xlane.xlu0 %2027
      %2029 = vadd.xlane.f32.xlu0 %v1902
      %v2030 = vpop.xlane.xlu0 %2029
      %2031 = vadd.xlane.f32.xlu0 %v1904
      %v2032 = vpop.xlane.xlu0 %2031
      %2033 = vadd.xlane.f32.xlu0 %v1906
      %v2034 = vpop.xlane.xlu0 %2033
      %2035 = vadd.xlane.f32.xlu0 %v1908
      %v2036 = vpop.xlane.xlu0 %2035
      %2037 = vadd.xlane.f32.xlu0 %v1910
      %v2038 = vpop.xlane.xlu0 %2037
      %2039 = vadd.xlane.f32.xlu0 %v1912
      %v2040 = vpop.xlane.xlu0 %2039
      %2041 = vadd.xlane.f32.xlu0 %v1914
      %v2042 = vpop.xlane.xlu0 %2041
      %2043 = vadd.xlane.f32.xlu0 %v1916
      %v2044 = vpop.xlane.xlu0 %2043
      %2045 = vadd.xlane.f32.xlu0 %v1918
      %v2046 = vpop.xlane.xlu0 %2045
      %2047 = vadd.xlane.f32.xlu0 %v1920
      %v2048 = vpop.xlane.xlu0 %2047
      %2049 = vadd.xlane.f32.xlu0 %v1922
      %v2050 = vpop.xlane.xlu0 %2049
      %2051 = vadd.xlane.f32.xlu0 %v1924
      %v2052 = vpop.xlane.xlu0 %2051
      %2053 = vadd.xlane.f32.xlu0 %v1926
      %v2054 = vpop.xlane.xlu0 %2053
      %2055 = vadd.xlane.f32.xlu0 %v1928
      %v2056 = vpop.xlane.xlu0 %2055
      %2057 = vadd.xlane.f32.xlu0 %v1930
      %v2058 = vpop.xlane.xlu0 %2057
      %2059 = vadd.xlane.f32.xlu0 %v1932
      %v2060 = vpop.xlane.xlu0 %2059
      %2061 = vadd.xlane.f32.xlu0 %v1934
      %v2062 = vpop.xlane.xlu0 %2061
      %2063 = vadd.xlane.f32.xlu0 %v1936
      %v2064 = vpop.xlane.xlu0 %2063
      %2065 = vadd.xlane.f32.xlu0 %v1938
      %v2066 = vpop.xlane.xlu0 %2065
      %2067 = vadd.xlane.f32.xlu0 %v1940
      %v2068 = vpop.xlane.xlu0 %2067
      %2069 = vadd.xlane.f32.xlu0 %v1942
      %v2070 = vpop.xlane.xlu0 %2069
      %2071 = vadd.xlane.f32.xlu0 %v1944
      %v2072 = vpop.xlane.xlu0 %2071
      %2073 = vadd.xlane.f32.xlu0 %v1946
      %v2074 = vpop.xlane.xlu0 %2073
      %2075 = vadd.xlane.f32.xlu0 %v1948
      %v2076 = vpop.xlane.xlu0 %2075
      %2077 = vadd.xlane.f32.xlu0 %v1950
      %v2078 = vpop.xlane.xlu0 %2077
      %2079 = vadd.xlane.f32.xlu0 %v1952
      %v2080 = vpop.xlane.xlu0 %2079
      %2081 = vadd.xlane.f32.xlu0 %v1954
      %v2082 = vpop.xlane.xlu0 %2081
      %2083 = vadd.xlane.f32.xlu0 %v1956
      %v2084 = vpop.xlane.xlu0 %2083
      %2085 = vadd.xlane.f32.xlu0 %v1958
      %v2086 = vpop.xlane.xlu0 %2085
      %2087 = vadd.xlane.f32.xlu0 %v1960
      %v2088 = vpop.xlane.xlu0 %2087
      %2089 = vadd.xlane.f32.xlu0 %v1962
      %v2090 = vpop.xlane.xlu0 %2089
      %2091 = vadd.xlane.f32.xlu0 %v1964
      %v2092 = vpop.xlane.xlu0 %2091
      %2093 = vadd.xlane.f32.xlu0 %v1966
      %v2094 = vpop.xlane.xlu0 %2093
      %2095 = vadd.xlane.f32.xlu0 %v1968
      %v2096 = vpop.xlane.xlu0 %2095
      %2097 = vadd.xlane.f32.xlu0 %v1970
      %v2098 = vpop.xlane.xlu0 %2097
      %2099 = vadd.xlane.f32.xlu0 %v1972
      %v2100 = vpop.xlane.xlu0 %2099
      %2101 = vadd.xlane.f32.xlu0 %v1974
      %v2102 = vpop.xlane.xlu0 %2101
      %2103 = vadd.xlane.f32.xlu0 %v1976
      %v2104 = vpop.xlane.xlu0 %2103
      %2105 = vadd.xlane.f32.xlu0 %v1978
      %v2106 = vpop.xlane.xlu0 %2105
      %2107 = vadd.xlane.f32.xlu0 %v1980
      %v2108 = vpop.xlane.xlu0 %2107
      %2109 = vadd.xlane.f32.xlu0 %v1982
      %v2110 = vpop.xlane.xlu0 %2109
      %2111 = vadd.xlane.f32.xlu0 %v1984
      %v2112 = vpop.xlane.xlu0 %2111
      %2113 = vadd.xlane.f32.xlu0 %v1986
      %v2114 = vpop.xlane.xlu0 %2113
      %2115 = vadd.xlane.f32.xlu0 %v1988
      %v2116 = vpop.xlane.xlu0 %2115
      %2117 = vadd.xlane.f32.xlu0 %v1990
      %v2118 = vpop.xlane.xlu0 %2117
      %2119 = vadd.xlane.f32.xlu0 %v1992
      %v2120 = vpop.xlane.xlu0 %2119
      %2121 = vadd.xlane.f32.xlu0 %v1994
      %v2122 = vpop.xlane.xlu0 %2121
      %2123 = vadd.xlane.f32.xlu0 %v1996
      %v2124 = vpop.xlane.xlu0 %2123
      %2125 = vadd.xlane.f32.xlu0 %v1998
      %v2126 = vpop.xlane.xlu0 %2125
      %2127 = vadd.xlane.f32.xlu0 %v2000
      %v2128 = vpop.xlane.xlu0 %2127
      %2129 = vadd.xlane.f32.xlu0 %v2002
      %v2130 = vpop.xlane.xlu0 %2129
      %2131 = vadd.xlane.f32.xlu0 %v2004
      %v2132 = vpop.xlane.xlu0 %2131
      %2133 = vadd.xlane.f32.xlu0 %v2006
      %v2134 = vpop.xlane.xlu0 %2133
      %2135 = vadd.xlane.f32.xlu0 %v2008
      %v2136 = vpop.xlane.xlu0 %2135
      %2137 = vadd.xlane.f32.xlu0 %v2010
      %v2138 = vpop.xlane.xlu0 %2137
      %2139 = vadd.xlane.f32.xlu0 %v2012
      %v2140 = vpop.xlane.xlu0 %2139
      %2141 = vadd.xlane.f32.xlu0 %v2014
      %v2142 = vpop.xlane.xlu0 %2141
      %2143 = vadd.xlane.f32.xlu0 %v2016
      %v2144 = vpop.xlane.xlu0 %2143
      %v2145 = vrcp.pop %v2018
      %v2146 = vrcp.pop %v2020
      %v2147 = vrcp.pop %v2022
      %v2148 = vrcp.pop %v2024
      %v2149 = vrcp.pop %v2026
      %v2150 = vrcp.pop %v2028
      %v2151 = vrcp.pop %v2030
      %v2152 = vrcp.pop %v2032
      %v2153 = vrcp.pop %v2034
      %v2154 = vrcp.pop %v2036
      %v2155 = vrcp.pop %v2038
      %v2156 = vrcp.pop %v2040
      %v2157 = vrcp.pop %v2042
      %v2158 = vrcp.pop %v2044
      %v2159 = vrcp.pop %v2046
      %v2160 = vrcp.pop %v2048
      %v2161 = vrcp.pop %v2050
      %v2162 = vrcp.pop %v2052
      %v2163 = vrcp.pop %v2054
      %v2164 = vrcp.pop %v2056
      %v2165 = vrcp.pop %v2058
      %v2166 = vrcp.pop %v2060
      %v2167 = vrcp.pop %v2062
      %v2168 = vrcp.pop %v2064
      %v2169 = vrcp.pop %v2066
      %v2170 = vrcp.pop %v2068
      %v2171 = vrcp.pop %v2070
      %v2172 = vrcp.pop %v2072
      %v2173 = vrcp.pop %v2074
      %v2174 = vrcp.pop %v2076
      %v2175 = vrcp.pop %v2078
      %v2176 = vrcp.pop %v2080
      %v2177 = vrcp.pop %v2082
      %v2178 = vrcp.pop %v2084
      %v2179 = vrcp.pop %v2086
      %v2180 = vrcp.pop %v2088
      %v2181 = vrcp.pop %v2090
      %v2182 = vrcp.pop %v2092
      %v2183 = vrcp.pop %v2094
      %v2184 = vrcp.pop %v2096
      %v2185 = vrcp.pop %v2098
      %v2186 = vrcp.pop %v2100
      %v2187 = vrcp.pop %v2102
      %v2188 = vrcp.pop %v2104
      %v2189 = vrcp.pop %v2106
      %v2190 = vrcp.pop %v2108
      %v2191 = vrcp.pop %v2110
      %v2192 = vrcp.pop %v2112
      %v2193 = vrcp.pop %v2114
      %v2194 = vrcp.pop %v2116
      %v2195 = vrcp.pop %v2118
      %v2196 = vrcp.pop %v2120
      %v2197 = vrcp.pop %v2122
      %v2198 = vrcp.pop %v2124
      %v2199 = vrcp.pop %v2126
      %v2200 = vrcp.pop %v2128
      %v2201 = vrcp.pop %v2130
      %v2202 = vrcp.pop %v2132
      %v2203 = vrcp.pop %v2134
      %v2204 = vrcp.pop %v2136
      %v2205 = vrcp.pop %v2138
      %v2206 = vrcp.pop %v2140
      %v2207 = vrcp.pop %v2142
      %v2208 = vrcp.pop %v2144
      %v2209 = vmul.f32 %v1890, %v2145
      %v2210 = vmul.f32 %v1892, %v2146
      %v2211 = vmul.f32 %v1894, %v2147
      %v2212 = vmul.f32 %v1896, %v2148
      %v2213 = vmul.f32 %v1898, %v2149
      %v2214 = vmul.f32 %v1900, %v2150
      %v2215 = vmul.f32 %v1902, %v2151
      %v2216 = vmul.f32 %v1904, %v2152
      %v2217 = vmul.f32 %v1906, %v2153
      %v2218 = vmul.f32 %v1908, %v2154
      %v2219 = vmul.f32 %v1910, %v2155
      %v2220 = vmul.f32 %v1912, %v2156
      %v2221 = vmul.f32 %v1914, %v2157
      %v2222 = vmul.f32 %v1916, %v2158
      %v2223 = vmul.f32 %v1918, %v2159
      %v2224 = vmul.f32 %v1920, %v2160
      %v2225 = vmul.f32 %v1922, %v2161
      %v2226 = vmul.f32 %v1924, %v2162
      %v2227 = vmul.f32 %v1926, %v2163
      %v2228 = vmul.f32 %v1928, %v2164
      %v2229 = vmul.f32 %v1930, %v2165
      %v2230 = vmul.f32 %v1932, %v2166
      %v2231 = vmul.f32 %v1934, %v2167
      %v2232 = vmul.f32 %v1936, %v2168
      %v2233 = vmul.f32 %v1938, %v2169
      %v2234 = vmul.f32 %v1940, %v2170
      %v2235 = vmul.f32 %v1942, %v2171
      %v2236 = vmul.f32 %v1944, %v2172
      %v2237 = vmul.f32 %v1946, %v2173
      %v2238 = vmul.f32 %v1948, %v2174
      %v2239 = vmul.f32 %v1950, %v2175
      %v2240 = vmul.f32 %v1952, %v2176
      %v2241 = vmul.f32 %v1954, %v2177
      %v2242 = vmul.f32 %v1956, %v2178
      %v2243 = vmul.f32 %v1958, %v2179
      %v2244 = vmul.f32 %v1960, %v2180
      %v2245 = vmul.f32 %v1962, %v2181
      %v2246 = vmul.f32 %v1964, %v2182
      %v2247 = vmul.f32 %v1966, %v2183
      %v2248 = vmul.f32 %v1968, %v2184
      %v2249 = vmul.f32 %v1970, %v2185
      %v2250 = vmul.f32 %v1972, %v2186
      %v2251 = vmul.f32 %v1974, %v2187
      %v2252 = vmul.f32 %v1976, %v2188
      %v2253 = vmul.f32 %v1978, %v2189
      %v2254 = vmul.f32 %v1980, %v2190
      %v2255 = vmul.f32 %v1982, %v2191
      %v2256 = vmul.f32 %v1984, %v2192
      %v2257 = vmul.f32 %v1986, %v2193
      %v2258 = vmul.f32 %v1988, %v2194
      %v2259 = vmul.f32 %v1990, %v2195
      %v2260 = vmul.f32 %v1992, %v2196
      %v2261 = vmul.f32 %v1994, %v2197
      %v2262 = vmul.f32 %v1996, %v2198
      %v2263 = vmul.f32 %v1998, %v2199
      %v2264 = vmul.f32 %v2000, %v2200
      %v2265 = vmul.f32 %v2002, %v2201
      %v2266 = vmul.f32 %v2004, %v2202
      %v2267 = vmul.f32 %v2006, %v2203
      %v2268 = vmul.f32 %v2008, %v2204
      %v2269 = vmul.f32 %v2010, %v2205
      %v2270 = vmul.f32 %v2012, %v2206
      %v2271 = vmul.f32 %v2014, %v2207
      %v2272 = vmul.f32 %v2016, %v2208
      %v2273 = vpack.c.bf16 %v2210, %v2209
      %v2274 = vpack.c.bf16 %v2212, %v2211
      %v2275 = vpack.c.bf16 %v2214, %v2213
      %v2276 = vpack.c.bf16 %v2216, %v2215
      %v2277 = vpack.c.bf16 %v2218, %v2217
      %v2278 = vpack.c.bf16 %v2220, %v2219
      %v2279 = vpack.c.bf16 %v2222, %v2221
      %v2280 = vpack.c.bf16 %v2224, %v2223
      %v2281 = vpack.c.bf16 %v2226, %v2225
      %v2282 = vpack.c.bf16 %v2228, %v2227
      %v2283 = vpack.c.bf16 %v2230, %v2229
      %v2284 = vpack.c.bf16 %v2232, %v2231
      %v2285 = vpack.c.bf16 %v2234, %v2233
      %v2286 = vpack.c.bf16 %v2236, %v2235
      %v2287 = vpack.c.bf16 %v2238, %v2237
      %v2288 = vpack.c.bf16 %v2240, %v2239
      %v2289 = vpack.c.bf16 %v2242, %v2241
      %v2290 = vpack.c.bf16 %v2244, %v2243
      %v2291 = vpack.c.bf16 %v2246, %v2245
      %v2292 = vpack.c.bf16 %v2248, %v2247
      %v2293 = vpack.c.bf16 %v2250, %v2249
      %v2294 = vpack.c.bf16 %v2252, %v2251
      %v2295 = vpack.c.bf16 %v2254, %v2253
      %v2296 = vpack.c.bf16 %v2256, %v2255
      %v2297 = vpack.c.bf16 %v2258, %v2257
      %v2298 = vpack.c.bf16 %v2260, %v2259
      %v2299 = vpack.c.bf16 %v2262, %v2261
      %v2300 = vpack.c.bf16 %v2264, %v2263
      %v2301 = vpack.c.bf16 %v2266, %v2265
      %v2302 = vpack.c.bf16 %v2268, %v2267
      %v2303 = vpack.c.bf16 %v2270, %v2269
      %v2304 = vpack.c.bf16 %v2272, %v2271
      %2305 = vmatprep.subr.bf16.mxu0 0
      %2306 = vmatpush1.bf16.msra.mxu0 %v857
      %2307 = vmatprep.subr.bf16.mxu0 0
      %2308 = vmatpush1.bf16.msra.mxu0 %v858
      %2309 = vmatprep.subr.bf16.mxu0 0
      %2310 = vmatpush1.bf16.msra.mxu0 %v859
      %2311 = vmatprep.subr.bf16.mxu0 0
      %2312 = vmatpush1.bf16.msra.mxu0 %v860
      %2313 = vmatprep.subr.bf16.mxu0 0
      %2314 = vmatpush1.bf16.msra.mxu0 %v861
      %2315 = vmatprep.subr.bf16.mxu0 0
      %2316 = vmatpush1.bf16.msra.mxu0 %v862
      %2317 = vmatprep.subr.bf16.mxu0 0
      %2318 = vmatpush1.bf16.msra.mxu0 %v863
      %2319 = vmatprep.subr.bf16.mxu0 0
      %2320 = vmatpush1.bf16.msra.mxu0 %v864
      %2321 = vmatprep.subr.bf16.mxu0 0
      %2322 = vmatpush1.bf16.msra.mxu0 0
      %2323 = vmatprep.subr.bf16.mxu0 0
      %2324 = vmatpush1.bf16.msra.mxu0 0
      %2325 = vmatprep.subr.bf16.mxu0 0
      %2326 = vmatpush1.bf16.msra.mxu0 0
      %2327 = vmatprep.subr.bf16.mxu0 0
      %2328 = vmatpush1.bf16.msra.mxu0 0
      %2329 = vmatprep.subr.bf16.mxu0 0
      %2330 = vmatpush1.bf16.msra.mxu0 0
      %2331 = vmatprep.subr.bf16.mxu0 0
      %2332 = vmatpush1.bf16.msra.mxu0 0
      %2333 = vmatprep.subr.bf16.mxu0 0
      %2334 = vmatpush1.bf16.msra.mxu0 0
      %2335 = vmatprep.subr.bf16.mxu0 0
      %2336 = vmatpush1.bf16.msra.mxu0 0
      %2337 = vmatprep.mubr.bf16.mxu0 0
      %2338 = vmatmul.mubr.bf16.gmra.mrb[0].mxu0 %v2273
      %v2339 = vpop.f32.mrb[0].mxu0
      %v2340 = vadd.f32 0.0, %v2339
      %v2341 = vpop.f32.mrb[0].mxu0
      %v2342 = vpop.f32.mrb[0].mxu0
      %v2343 = vadd.f32 0.0, %v2342
      %v2344 = vpop.f32.mrb[0].mxu0
      %2345 = vmatprep.mubr.bf16.mxu0 0
      %2346 = vmatmul.mubr.bf16.gmra.mrb[0].mxu0 %v2274
      %v2347 = vpop.f32.mrb[0].mxu0
      %v2348 = vadd.f32 0.0, %v2347
      %v2349 = vpop.f32.mrb[0].mxu0
      %v2350 = vpop.f32.mrb[0].mxu0
      %v2351 = vadd.f32 0.0, %v2350
      %v2352 = vpop.f32.mrb[0].mxu0
      %2353 = vmatprep.mubr.bf16.mxu0 0
      %2354 = vmatmul.mubr.bf16.gmra.mrb[0].mxu0 %v2275
      %v2355 = vpop.f32.mrb[0].mxu0
      %v2356 = vadd.f32 0.0, %v2355
      %v2357 = vpop.f32.mrb[0].mxu0
      %v2358 = vpop.f32.mrb[0].mxu0
      %v2359 = vadd.f32 0.0, %v2358
      %v2360 = vpop.f32.mrb[0].mxu0
      %2361 = vmatprep.mubr.bf16.mxu0 0
      %2362 = vmatmul.mubr.bf16.gmra.mrb[0].mxu0 %v2276
      %v2363 = vpop.f32.mrb[0].mxu0
      %v2364 = vadd.f32 0.0, %v2363
      %v2365 = vpop.f32.mrb[0].mxu0
      %v2366 = vpop.f32.mrb[0].mxu0
      %v2367 = vadd.f32 0.0, %v2366
      %v2368 = vpop.f32.mrb[0].mxu0
      %2369 = vmatprep.mubr.bf16.mxu0 0
      %2370 = vmatmul.mubr.bf16.gmra.mrb[0].mxu0 %v2277
      %v2371 = vpop.f32.mrb[0].mxu0
      %v2372 = vadd.f32 0.0, %v2371
      %v2373 = vpop.f32.mrb[0].mxu0
      %v2374 = vpop.f32.mrb[0].mxu0
      %v2375 = vadd.f32 0.0, %v2374
      %v2376 = vpop.f32.mrb[0].mxu0
      %2377 = vmatprep.mubr.bf16.mxu0 0
      %2378 = vmatmul.mubr.bf16.gmra.mrb[0].mxu0 %v2278
      %v2379 = vpop.f32.mrb[0].mxu0
      %v2380 = vadd.f32 0.0, %v2379
      %v2381 = vpop.f32.mrb[0].mxu0
      %v2382 = vpop.f32.mrb[0].mxu0
      %v2383 = vadd.f32 0.0, %v2382
      %v2384 = vpop.f32.mrb[0].mxu0
      %2385 = vmatprep.mubr.bf16.mxu0 0
      %2386 = vmatmul.mubr.bf16.gmra.mrb[0].mxu0 %v2279
      %v2387 = vpop.f32.mrb[0].mxu0
      %v2388 = vadd.f32 0.0, %v2387
      %v2389 = vpop.f32.mrb[0].mxu0
      %v2390 = vpop.f32.mrb[0].mxu0
      %v2391 = vadd.f32 0.0, %v2390
      %v2392 = vpop.f32.mrb[0].mxu0
      %2393 = vmatprep.mubr.bf16.mxu0 0
      %2394 = vmatmul.mubr.bf16.gmra.mrb[0].mxu0 %v2280
      %v2395 = vpop.f32.mrb[0].mxu0
      %v2396 = vadd.f32 0.0, %v2395
      %v2397 = vpop.f32.mrb[0].mxu0
      %v2398 = vpop.f32.mrb[0].mxu0
      %v2399 = vadd.f32 0.0, %v2398
      %v2400 = vpop.f32.mrb[0].mxu0
      %2401 = vdwg.mxu0
      %2402 = vmatprep.subr.bf16.mxu0 0
      %2403 = vmatpush1.bf16.msra.mxu0 %v865
      %2404 = vmatprep.subr.bf16.mxu0 0
      %2405 = vmatpush1.bf16.msra.mxu0 %v866
      %2406 = vmatprep.subr.bf16.mxu0 0
      %2407 = vmatpush1.bf16.msra.mxu0 %v867
      %2408 = vmatprep.subr.bf16.mxu0 0
      %2409 = vmatpush1.bf16.msra.mxu0 %v868
      %2410 = vmatprep.subr.bf16.mxu0 0
      %2411 = vmatpush1.bf16.msra.mxu0 %v869
      %2412 = vmatprep.subr.bf16.mxu0 0
      %2413 = vmatpush1.bf16.msra.mxu0 %v870
      %2414 = vmatprep.subr.bf16.mxu0 0
      %2415 = vmatpush1.bf16.msra.mxu0 %v871
      %2416 = vmatprep.subr.bf16.mxu0 0
      %2417 = vmatpush1.bf16.msra.mxu0 %v872
      %2418 = vmatprep.subr.bf16.mxu0 0
      %2419 = vmatpush1.bf16.msra.mxu0 0
      %2420 = vmatprep.subr.bf16.mxu0 0
      %2421 = vmatpush1.bf16.msra.mxu0 0
      %2422 = vmatprep.subr.bf16.mxu0 0
      %2423 = vmatpush1.bf16.msra.mxu0 0
      %2424 = vmatprep.subr.bf16.mxu0 0
      %2425 = vmatpush1.bf16.msra.mxu0 0
      %2426 = vmatprep.subr.bf16.mxu0 0
      %2427 = vmatpush1.bf16.msra.mxu0 0
      %2428 = vmatprep.subr.bf16.mxu0 0
      %2429 = vmatpush1.bf16.msra.mxu0 0
      %2430 = vmatprep.subr.bf16.mxu0 0
      %2431 = vmatpush1.bf16.msra.mxu0 0
      %2432 = vmatprep.subr.bf16.mxu0 0
      %2433 = vmatpush1.bf16.msra.mxu0 0
      %2434 = vmatprep.mubr.bf16.mxu0 0
      %2435 = vmatmul.mubr.bf16.gmra.mrb[0].mxu0 %v2281
      %v2436 = vpop.f32.mrb[0].mxu0
      %v2437 = vadd.f32 0.0, %v2436
      %v2438 = vpop.f32.mrb[0].mxu0
      %v2439 = vpop.f32.mrb[0].mxu0
      %v2440 = vadd.f32 0.0, %v2439
      %v2441 = vpop.f32.mrb[0].mxu0
      %2442 = vmatprep.mubr.bf16.mxu0 0
      %2443 = vmatmul.mubr.bf16.gmra.mrb[0].mxu0 %v2282
      %v2444 = vpop.f32.mrb[0].mxu0
      %v2445 = vadd.f32 0.0, %v2444
      %v2446 = vpop.f32.mrb[0].mxu0
      %v2447 = vpop.f32.mrb[0].mxu0
      %v2448 = vadd.f32 0.0, %v2447
      %v2449 = vpop.f32.mrb[0].mxu0
      %2450 = vmatprep.mubr.bf16.mxu0 0
      %2451 = vmatmul.mubr.bf16.gmra.mrb[0].mxu0 %v2283
      %v2452 = vpop.f32.mrb[0].mxu0
      %v2453 = vadd.f32 0.0, %v2452
      %v2454 = vpop.f32.mrb[0].mxu0
      %v2455 = vpop.f32.mrb[0].mxu0
      %v2456 = vadd.f32 0.0, %v2455
      %v2457 = vpop.f32.mrb[0].mxu0
      %2458 = vmatprep.mubr.bf16.mxu0 0
      %2459 = vmatmul.mubr.bf16.gmra.mrb[0].mxu0 %v2284
      %v2460 = vpop.f32.mrb[0].mxu0
      %v2461 = vadd.f32 0.0, %v2460
      %v2462 = vpop.f32.mrb[0].mxu0
      %v2463 = vpop.f32.mrb[0].mxu0
      %v2464 = vadd.f32 0.0, %v2463
      %v2465 = vpop.f32.mrb[0].mxu0
      %2466 = vmatprep.mubr.bf16.mxu0 0
      %2467 = vmatmul.mubr.bf16.gmra.mrb[0].mxu0 %v2285
      %v2468 = vpop.f32.mrb[0].mxu0
      %v2469 = vadd.f32 0.0, %v2468
      %v2470 = vpop.f32.mrb[0].mxu0
      %v2471 = vpop.f32.mrb[0].mxu0
      %v2472 = vadd.f32 0.0, %v2471
      %v2473 = vpop.f32.mrb[0].mxu0
      %2474 = vmatprep.mubr.bf16.mxu0 0
      %2475 = vmatmul.mubr.bf16.gmra.mrb[0].mxu0 %v2286
      %v2476 = vpop.f32.mrb[0].mxu0
      %v2477 = vadd.f32 0.0, %v2476
      %v2478 = vpop.f32.mrb[0].mxu0
      %v2479 = vpop.f32.mrb[0].mxu0
      %v2480 = vadd.f32 0.0, %v2479
      %v2481 = vpop.f32.mrb[0].mxu0
      %2482 = vmatprep.mubr.bf16.mxu0 0
      %2483 = vmatmul.mubr.bf16.gmra.mrb[0].mxu0 %v2287
      %v2484 = vpop.f32.mrb[0].mxu0
      %v2485 = vadd.f32 0.0, %v2484
      %v2486 = vpop.f32.mrb[0].mxu0
      %v2487 = vpop.f32.mrb[0].mxu0
      %v2488 = vadd.f32 0.0, %v2487
      %v2489 = vpop.f32.mrb[0].mxu0
      %2490 = vmatprep.mubr.bf16.mxu0 0
      %2491 = vmatmul.mubr.bf16.gmra.mrb[0].mxu0 %v2288
      %v2492 = vpop.f32.mrb[0].mxu0
      %v2493 = vadd.f32 0.0, %v2492
      %v2494 = vpop.f32.mrb[0].mxu0
      %v2495 = vpop.f32.mrb[0].mxu0
      %v2496 = vadd.f32 0.0, %v2495
      %v2497 = vpop.f32.mrb[0].mxu0
      %2498 = vdwg.mxu0
      %2499 = vmatprep.subr.bf16.mxu0 0
      %2500 = vmatpush1.bf16.msra.mxu0 %v873
      %2501 = vmatprep.subr.bf16.mxu0 0
      %2502 = vmatpush1.bf16.msra.mxu0 %v874
      %2503 = vmatprep.subr.bf16.mxu0 0
      %2504 = vmatpush1.bf16.msra.mxu0 %v875
      %2505 = vmatprep.subr.bf16.mxu0 0
      %2506 = vmatpush1.bf16.msra.mxu0 %v876
      %2507 = vmatprep.subr.bf16.mxu0 0
      %2508 = vmatpush1.bf16.msra.mxu0 %v877
      %2509 = vmatprep.subr.bf16.mxu0 0
      %2510 = vmatpush1.bf16.msra.mxu0 %v878
      %2511 = vmatprep.subr.bf16.mxu0 0
      %2512 = vmatpush1.bf16.msra.mxu0 %v879
      %2513 = vmatprep.subr.bf16.mxu0 0
      %2514 = vmatpush1.bf16.msra.mxu0 %v880
      %2515 = vmatprep.subr.bf16.mxu0 0
      %2516 = vmatpush1.bf16.msra.mxu0 0
      %2517 = vmatprep.subr.bf16.mxu0 0
      %2518 = vmatpush1.bf16.msra.mxu0 0
      %2519 = vmatprep.subr.bf16.mxu0 0
      %2520 = vmatpush1.bf16.msra.mxu0 0
      %2521 = vmatprep.subr.bf16.mxu0 0
      %2522 = vmatpush1.bf16.msra.mxu0 0
      %2523 = vmatprep.subr.bf16.mxu0 0
      %2524 = vmatpush1.bf16.msra.mxu0 0
      %2525 = vmatprep.subr.bf16.mxu0 0
      %2526 = vmatpush1.bf16.msra.mxu0 0
      %2527 = vmatprep.subr.bf16.mxu0 0
      %2528 = vmatpush1.bf16.msra.mxu0 0
      %2529 = vmatprep.subr.bf16.mxu0 0
      %2530 = vmatpush1.bf16.msra.mxu0 0
      %2531 = vmatprep.mubr.bf16.mxu0 0
      %2532 = vmatmul.mubr.bf16.gmra.mrb[0].mxu0 %v2289
      %v2533 = vpop.f32.mrb[0].mxu0
      %v2534 = vadd.f32 0.0, %v2533
      %v2535 = vpop.f32.mrb[0].mxu0
      %v2536 = vpop.f32.mrb[0].mxu0
      %v2537 = vadd.f32 0.0, %v2536
      %v2538 = vpop.f32.mrb[0].mxu0
      %2539 = vmatprep.mubr.bf16.mxu0 0
      %2540 = vmatmul.mubr.bf16.gmra.mrb[0].mxu0 %v2290
      %v2541 = vpop.f32.mrb[0].mxu0
      %v2542 = vadd.f32 0.0, %v2541
      %v2543 = vpop.f32.mrb[0].mxu0
      %v2544 = vpop.f32.mrb[0].mxu0
      %v2545 = vadd.f32 0.0, %v2544
      %v2546 = vpop.f32.mrb[0].mxu0
      %2547 = vmatprep.mubr.bf16.mxu0 0
      %2548 = vmatmul.mubr.bf16.gmra.mrb[0].mxu0 %v2291
      %v2549 = vpop.f32.mrb[0].mxu0
      %v2550 = vadd.f32 0.0, %v2549
      %v2551 = vpop.f32.mrb[0].mxu0
      %v2552 = vpop.f32.mrb[0].mxu0
      %v2553 = vadd.f32 0.0, %v2552
      %v2554 = vpop.f32.mrb[0].mxu0
      %2555 = vmatprep.mubr.bf16.mxu0 0
      %2556 = vmatmul.mubr.bf16.gmra.mrb[0].mxu0 %v2292
      %v2557 = vpop.f32.mrb[0].mxu0
      %v2558 = vadd.f32 0.0, %v2557
      %v2559 = vpop.f32.mrb[0].mxu0
      %v2560 = vpop.f32.mrb[0].mxu0
      %v2561 = vadd.f32 0.0, %v2560
      %v2562 = vpop.f32.mrb[0].mxu0
      %2563 = vmatprep.mubr.bf16.mxu0 0
      %2564 = vmatmul.mubr.bf16.gmra.mrb[0].mxu0 %v2293
      %v2565 = vpop.f32.mrb[0].mxu0
      %v2566 = vadd.f32 0.0, %v2565
      %v2567 = vpop.f32.mrb[0].mxu0
      %v2568 = vpop.f32.mrb[0].mxu0
      %v2569 = vadd.f32 0.0, %v2568
      %v2570 = vpop.f32.mrb[0].mxu0
      %2571 = vmatprep.mubr.bf16.mxu0 0
      %2572 = vmatmul.mubr.bf16.gmra.mrb[0].mxu0 %v2294
      %v2573 = vpop.f32.mrb[0].mxu0
      %v2574 = vadd.f32 0.0, %v2573
      %v2575 = vpop.f32.mrb[0].mxu0
      %v2576 = vpop.f32.mrb[0].mxu0
      %v2577 = vadd.f32 0.0, %v2576
      %v2578 = vpop.f32.mrb[0].mxu0
      %2579 = vmatprep.mubr.bf16.mxu0 0
      %2580 = vmatmul.mubr.bf16.gmra.mrb[0].mxu0 %v2295
      %v2581 = vpop.f32.mrb[0].mxu0
      %v2582 = vadd.f32 0.0, %v2581
      %v2583 = vpop.f32.mrb[0].mxu0
      %v2584 = vpop.f32.mrb[0].mxu0
      %v2585 = vadd.f32 0.0, %v2584
      %v2586 = vpop.f32.mrb[0].mxu0
      %2587 = vmatprep.mubr.bf16.mxu0 0
      %2588 = vmatmul.mubr.bf16.gmra.mrb[0].mxu0 %v2296
      %v2589 = vpop.f32.mrb[0].mxu0
      %v2590 = vadd.f32 0.0, %v2589
      %v2591 = vpop.f32.mrb[0].mxu0
      %v2592 = vpop.f32.mrb[0].mxu0
      %v2593 = vadd.f32 0.0, %v2592
      %v2594 = vpop.f32.mrb[0].mxu0
      %2595 = vdwg.mxu0
      %2596 = vmatprep.subr.bf16.mxu0 0
      %2597 = vmatpush1.bf16.msra.mxu0 %v881
      %2598 = vmatprep.subr.bf16.mxu0 0
      %2599 = vmatpush1.bf16.msra.mxu0 %v882
      %2600 = vmatprep.subr.bf16.mxu0 0
      %2601 = vmatpush1.bf16.msra.mxu0 %v883
      %2602 = vmatprep.subr.bf16.mxu0 0
      %2603 = vmatpush1.bf16.msra.mxu0 %v884
      %2604 = vmatprep.subr.bf16.mxu0 0
      %2605 = vmatpush1.bf16.msra.mxu0 %v885
      %2606 = vmatprep.subr.bf16.mxu0 0
      %2607 = vmatpush1.bf16.msra.mxu0 %v886
      %2608 = vmatprep.subr.bf16.mxu0 0
      %2609 = vmatpush1.bf16.msra.mxu0 %v887
      %2610 = vmatprep.subr.bf16.mxu0 0
      %2611 = vmatpush1.bf16.msra.mxu0 %v888
      %2612 = vmatprep.subr.bf16.mxu0 0
      %2613 = vmatpush1.bf16.msra.mxu0 0
      %2614 = vmatprep.subr.bf16.mxu0 0
      %2615 = vmatpush1.bf16.msra.mxu0 0
      %2616 = vmatprep.subr.bf16.mxu0 0
      %2617 = vmatpush1.bf16.msra.mxu0 0
      %2618 = vmatprep.subr.bf16.mxu0 0
      %2619 = vmatpush1.bf16.msra.mxu0 0
      %2620 = vmatprep.subr.bf16.mxu0 0
      %2621 = vmatpush1.bf16.msra.mxu0 0
      %2622 = vmatprep.subr.bf16.mxu0 0
      %2623 = vmatpush1.bf16.msra.mxu0 0
      %2624 = vmatprep.subr.bf16.mxu0 0
      %2625 = vmatpush1.bf16.msra.mxu0 0
      %2626 = vmatprep.subr.bf16.mxu0 0
      %2627 = vmatpush1.bf16.msra.mxu0 0
      %2628 = vmatprep.mubr.bf16.mxu0 0
      %2629 = vmatmul.mubr.bf16.gmra.mrb[0].mxu0 %v2297
      %v2630 = vpop.f32.mrb[0].mxu0
      %v2631 = vadd.f32 0.0, %v2630
      %v2632 = vpop.f32.mrb[0].mxu0
      %v2633 = vpop.f32.mrb[0].mxu0
      %v2634 = vadd.f32 0.0, %v2633
      %v2635 = vpop.f32.mrb[0].mxu0
      %2636 = vmatprep.mubr.bf16.mxu0 0
      %2637 = vmatmul.mubr.bf16.gmra.mrb[0].mxu0 %v2298
      %v2638 = vpop.f32.mrb[0].mxu0
      %v2639 = vadd.f32 0.0, %v2638
      %v2640 = vpop.f32.mrb[0].mxu0
      %v2641 = vpop.f32.mrb[0].mxu0
      %v2642 = vadd.f32 0.0, %v2641
      %v2643 = vpop.f32.mrb[0].mxu0
      %2644 = vmatprep.mubr.bf16.mxu0 0
      %2645 = vmatmul.mubr.bf16.gmra.mrb[0].mxu0 %v2299
      %v2646 = vpop.f32.mrb[0].mxu0
      %v2647 = vadd.f32 0.0, %v2646
      %v2648 = vpop.f32.mrb[0].mxu0
      %v2649 = vpop.f32.mrb[0].mxu0
      %v2650 = vadd.f32 0.0, %v2649
      %v2651 = vpop.f32.mrb[0].mxu0
      %2652 = vmatprep.mubr.bf16.mxu0 0
      %2653 = vmatmul.mubr.bf16.gmra.mrb[0].mxu0 %v2300
      %v2654 = vpop.f32.mrb[0].mxu0
      %v2655 = vadd.f32 0.0, %v2654
      %v2656 = vpop.f32.mrb[0].mxu0
      %v2657 = vpop.f32.mrb[0].mxu0
      %v2658 = vadd.f32 0.0, %v2657
      %v2659 = vpop.f32.mrb[0].mxu0
      %2660 = vmatprep.mubr.bf16.mxu0 0
      %2661 = vmatmul.mubr.bf16.gmra.mrb[0].mxu0 %v2301
      %v2662 = vpop.f32.mrb[0].mxu0
      %v2663 = vadd.f32 0.0, %v2662
      %v2664 = vpop.f32.mrb[0].mxu0
      %v2665 = vpop.f32.mrb[0].mxu0
      %v2666 = vadd.f32 0.0, %v2665
      %v2667 = vpop.f32.mrb[0].mxu0
      %2668 = vmatprep.mubr.bf16.mxu0 0
      %2669 = vmatmul.mubr.bf16.gmra.mrb[0].mxu0 %v2302
      %v2670 = vpop.f32.mrb[0].mxu0
      %v2671 = vadd.f32 0.0, %v2670
      %v2672 = vpop.f32.mrb[0].mxu0
      %v2673 = vpop.f32.mrb[0].mxu0
      %v2674 = vadd.f32 0.0, %v2673
      %v2675 = vpop.f32.mrb[0].mxu0
      %2676 = vmatprep.mubr.bf16.mxu0 0
      %2677 = vmatmul.mubr.bf16.gmra.mrb[0].mxu0 %v2303
      %v2678 = vpop.f32.mrb[0].mxu0
      %v2679 = vadd.f32 0.0, %v2678
      %v2680 = vpop.f32.mrb[0].mxu0
      %v2681 = vpop.f32.mrb[0].mxu0
      %v2682 = vadd.f32 0.0, %v2681
      %v2683 = vpop.f32.mrb[0].mxu0
      %2684 = vmatprep.mubr.bf16.mxu0 0
      %2685 = vmatmul.mubr.bf16.gmra.mrb[0].mxu0 %v2304
      %v2686 = vpop.f32.mrb[0].mxu0
      %v2687 = vadd.f32 0.0, %v2686
      %v2688 = vpop.f32.mrb[0].mxu0
      %v2689 = vpop.f32.mrb[0].mxu0
      %v2690 = vadd.f32 0.0, %v2689
      %v2691 = vpop.f32.mrb[0].mxu0
      %2692 = vdwg.mxu0
      %v2693 = vpack.c.bf16 %v2343, %v2340
      %v2694 = vpack.c.bf16 %v2351, %v2348
      %v2695 = vpack.c.bf16 %v2359, %v2356
      %v2696 = vpack.c.bf16 %v2367, %v2364
      %v2697 = vpack.c.bf16 %v2375, %v2372
      %v2698 = vpack.c.bf16 %v2383, %v2380
      %v2699 = vpack.c.bf16 %v2391, %v2388
      %v2700 = vpack.c.bf16 %v2399, %v2396
      %v2701 = vpack.c.bf16 %v2440, %v2437
      %v2702 = vpack.c.bf16 %v2448, %v2445
      %v2703 = vpack.c.bf16 %v2456, %v2453
      %v2704 = vpack.c.bf16 %v2464, %v2461
      %v2705 = vpack.c.bf16 %v2472, %v2469
      %v2706 = vpack.c.bf16 %v2480, %v2477
      %v2707 = vpack.c.bf16 %v2488, %v2485
      %v2708 = vpack.c.bf16 %v2496, %v2493
      %v2709 = vpack.c.bf16 %v2537, %v2534
      %v2710 = vpack.c.bf16 %v2545, %v2542
      %v2711 = vpack.c.bf16 %v2553, %v2550
      %v2712 = vpack.c.bf16 %v2561, %v2558
      %v2713 = vpack.c.bf16 %v2569, %v2566
      %v2714 = vpack.c.bf16 %v2577, %v2574
      %v2715 = vpack.c.bf16 %v2585, %v2582
      %v2716 = vpack.c.bf16 %v2593, %v2590
      %v2717 = vpack.c.bf16 %v2634, %v2631
      %v2718 = vpack.c.bf16 %v2642, %v2639
      %v2719 = vpack.c.bf16 %v2650, %v2647
      %v2720 = vpack.c.bf16 %v2658, %v2655
      %v2721 = vpack.c.bf16 %v2666, %v2663
      %v2722 = vpack.c.bf16 %v2674, %v2671
      %v2723 = vpack.c.bf16 %v2682, %v2679
      %v2724 = vpack.c.bf16 %v2690, %v2687
      %v2725 = vld [vmem:[%s2] sm:$0xf]
      %v2726 = vld [vmem:[%s2 + $0x4] sm:$0xf]
      %v2727 = vld [vmem:[%s2 + $0x8] sm:$0xf]
      %v2728 = vld [vmem:[%s2 + $0xc] sm:$0xf]
      %v2729 = vld [vmem:[%s2 + $0x10] sm:$0xf]
      %v2730 = vld [vmem:[%s2 + $0x14] sm:$0xf]
      %v2731 = vld [vmem:[%s2 + $0x18] sm:$0xf]
      %v2732 = vld [vmem:[%s2 + $0x1c] sm:$0xf]
      %v2735 = vunpack.c.l.b16 %v2725
      %v2736 = vunpack.c.l.b16 %v2726
      %v2737 = vpack.c.b16 %v2736, %v2735
      %v2740 = vsel %vm948, %v2693, 0
      %v2743 = vsel %vm948, %v2694, 0
      %v2746 = vsel %vm948, %v2695, 0
      %v2749 = vsel %vm948, %v2696, 0
      %v2752 = vsel %vm948, %v2697, 0
      %v2755 = vsel %vm948, %v2698, 0
      %v2758 = vsel %vm948, %v2699, 0
      %v2761 = vsel %vm948, %v2700, 0
      %2763 = vmatprep.subr.bf16.mxu0 0
      %2764 = vmatpush1.bf16.msra.mxu0 %v2737
      %2765 = vmatprep.subr.bf16.mxu0 0
      %2766 = vmatpush1.bf16.msra.mxu0 0
      %2767 = vmatprep.subr.bf16.mxu0 0
      %2768 = vmatpush1.bf16.msra.mxu0 0
      %2769 = vmatprep.subr.bf16.mxu0 0
      %2770 = vmatpush1.bf16.msra.mxu0 0
      %2771 = vmatprep.subr.bf16.mxu0 0
      %2772 = vmatpush1.bf16.msra.mxu0 0
      %2773 = vmatprep.subr.bf16.mxu0 0
      %2774 = vmatpush1.bf16.msra.mxu0 0
      %2775 = vmatprep.subr.bf16.mxu0 0
      %2776 = vmatpush1.bf16.msra.mxu0 0
      %2777 = vmatprep.subr.bf16.mxu0 0
      %2778 = vmatpush1.bf16.msra.mxu0 0
      %2779 = vmatprep.subr.bf16.mxu0 0
      %2780 = vmatpush1.bf16.msra.mxu0 0
      %2781 = vmatprep.subr.bf16.mxu0 0
      %2782 = vmatpush1.bf16.msra.mxu0 0
      %2783 = vmatprep.subr.bf16.mxu0 0
      %2784 = vmatpush1.bf16.msra.mxu0 0
      %2785 = vmatprep.subr.bf16.mxu0 0
      %2786 = vmatpush1.bf16.msra.mxu0 0
      %2787 = vmatprep.subr.bf16.mxu0 0
      %2788 = vmatpush1.bf16.msra.mxu0 0
      %2789 = vmatprep.subr.bf16.mxu0 0
      %2790 = vmatpush1.bf16.msra.mxu0 0
      %2791 = vmatprep.subr.bf16.mxu0 0
      %2792 = vmatpush1.bf16.msra.mxu0 0
      %2793 = vmatprep.subr.bf16.mxu0 0
      %2794 = vmatpush1.bf16.msra.mxu0 0
      %2795 = vmatprep.mubr.bf16.mxu0 0
      %2796 = vmatmul.mubr.bf16.gmra.mrb[0].mxu0 %v2740
      %v2797 = vpop.f32.mrb[0].mxu0
      %v2798 = vadd.f32 0.0, %v2797
      %v2799 = vpop.f32.mrb[0].mxu0
      %v2800 = vpop.f32.mrb[0].mxu0
      %v2801 = vadd.f32 0.0, %v2800
      %v2802 = vpop.f32.mrb[0].mxu0
      %2803 = vmatprep.mubr.bf16.mxu0 0
      %2804 = vmatmul.mubr.bf16.gmra.mrb[0].mxu0 %v2743
      %v2805 = vpop.f32.mrb[0].mxu0
      %v2806 = vadd.f32 0.0, %v2805
      %v2807 = vpop.f32.mrb[0].mxu0
      %v2808 = vpop.f32.mrb[0].mxu0
      %v2809 = vadd.f32 0.0, %v2808
      %v2810 = vpop.f32.mrb[0].mxu0
      %2811 = vmatprep.mubr.bf16.mxu0 0
      %2812 = vmatmul.mubr.bf16.gmra.mrb[0].mxu0 %v2746
      %v2813 = vpop.f32.mrb[0].mxu0
      %v2814 = vadd.f32 0.0, %v2813
      %v2815 = vpop.f32.mrb[0].mxu0
      %v2816 = vpop.f32.mrb[0].mxu0
      %v2817 = vadd.f32 0.0, %v2816
      %v2818 = vpop.f32.mrb[0].mxu0
      %2819 = vmatprep.mubr.bf16.mxu0 0
      %2820 = vmatmul.mubr.bf16.gmra.mrb[0].mxu0 %v2749
      %v2821 = vpop.f32.mrb[0].mxu0
      %v2822 = vadd.f32 0.0, %v2821
      %v2823 = vpop.f32.mrb[0].mxu0
      %v2824 = vpop.f32.mrb[0].mxu0
      %v2825 = vadd.f32 0.0, %v2824
      %v2826 = vpop.f32.mrb[0].mxu0
      %2827 = vmatprep.mubr.bf16.mxu0 0
      %2828 = vmatmul.mubr.bf16.gmra.mrb[0].mxu0 %v2752
      %v2829 = vpop.f32.mrb[0].mxu0
      %v2830 = vadd.f32 0.0, %v2829
      %v2831 = vpop.f32.mrb[0].mxu0
      %v2832 = vpop.f32.mrb[0].mxu0
      %v2833 = vadd.f32 0.0, %v2832
      %v2834 = vpop.f32.mrb[0].mxu0
      %2835 = vmatprep.mubr.bf16.mxu0 0
      %2836 = vmatmul.mubr.bf16.gmra.mrb[0].mxu0 %v2755
      %v2837 = vpop.f32.mrb[0].mxu0
      %v2838 = vadd.f32 0.0, %v2837
      %v2839 = vpop.f32.mrb[0].mxu0
      %v2840 = vpop.f32.mrb[0].mxu0
      %v2841 = vadd.f32 0.0, %v2840
      %v2842 = vpop.f32.mrb[0].mxu0
      %2843 = vmatprep.mubr.bf16.mxu0 0
      %2844 = vmatmul.mubr.bf16.gmra.mrb[0].mxu0 %v2758
      %v2845 = vpop.f32.mrb[0].mxu0
      %v2846 = vadd.f32 0.0, %v2845
      %v2847 = vpop.f32.mrb[0].mxu0
      %v2848 = vpop.f32.mrb[0].mxu0
      %v2849 = vadd.f32 0.0, %v2848
      %v2850 = vpop.f32.mrb[0].mxu0
      %2851 = vmatprep.mubr.bf16.mxu0 0
      %2852 = vmatmul.mubr.bf16.gmra.mrb[0].mxu0 %v2761
      %v2853 = vpop.f32.mrb[0].mxu0
      %v2854 = vadd.f32 0.0, %v2853
      %v2855 = vpop.f32.mrb[0].mxu0
      %v2856 = vpop.f32.mrb[0].mxu0
      %v2857 = vadd.f32 0.0, %v2856
      %v2858 = vpop.f32.mrb[0].mxu0
      %2859 = vdwg.mxu0
      %v2862 = vunpack.c.l.b16 %v2727
      %v2863 = vunpack.c.l.b16 %v2728
      %v2864 = vpack.c.b16 %v2863, %v2862
      %v2867 = vsel %vm948, %v2701, 0
      %v2870 = vsel %vm948, %v2702, 0
      %v2873 = vsel %vm948, %v2703, 0
      %v2876 = vsel %vm948, %v2704, 0
      %v2879 = vsel %vm948, %v2705, 0
      %v2882 = vsel %vm948, %v2706, 0
      %v2885 = vsel %vm948, %v2707, 0
      %v2888 = vsel %vm948, %v2708, 0
      %2890 = vmatprep.subr.bf16.mxu0 0
      %2891 = vmatpush1.bf16.msra.mxu0 %v2864
      %2892 = vmatprep.subr.bf16.mxu0 0
      %2893 = vmatpush1.bf16.msra.mxu0 0
      %2894 = vmatprep.subr.bf16.mxu0 0
      %2895 = vmatpush1.bf16.msra.mxu0 0
      %2896 = vmatprep.subr.bf16.mxu0 0
      %2897 = vmatpush1.bf16.msra.mxu0 0
      %2898 = vmatprep.subr.bf16.mxu0 0
      %2899 = vmatpush1.bf16.msra.mxu0 0
      %2900 = vmatprep.subr.bf16.mxu0 0
      %2901 = vmatpush1.bf16.msra.mxu0 0
      %2902 = vmatprep.subr.bf16.mxu0 0
      %2903 = vmatpush1.bf16.msra.mxu0 0
      %2904 = vmatprep.subr.bf16.mxu0 0
      %2905 = vmatpush1.bf16.msra.mxu0 0
      %2906 = vmatprep.subr.bf16.mxu0 0
      %2907 = vmatpush1.bf16.msra.mxu0 0
      %2908 = vmatprep.subr.bf16.mxu0 0
      %2909 = vmatpush1.bf16.msra.mxu0 0
      %2910 = vmatprep.subr.bf16.mxu0 0
      %2911 = vmatpush1.bf16.msra.mxu0 0
      %2912 = vmatprep.subr.bf16.mxu0 0
      %2913 = vmatpush1.bf16.msra.mxu0 0
      %2914 = vmatprep.subr.bf16.mxu0 0
      %2915 = vmatpush1.bf16.msra.mxu0 0
      %2916 = vmatprep.subr.bf16.mxu0 0
      %2917 = vmatpush1.bf16.msra.mxu0 0
      %2918 = vmatprep.subr.bf16.mxu0 0
      %2919 = vmatpush1.bf16.msra.mxu0 0
      %2920 = vmatprep.subr.bf16.mxu0 0
      %2921 = vmatpush1.bf16.msra.mxu0 0
      %2922 = vmatprep.mubr.bf16.mxu0 0
      %2923 = vmatmul.mubr.bf16.gmra.mrb[0].mxu0 %v2867
      %v2924 = vpop.f32.mrb[0].mxu0
      %v2925 = vadd.f32 0.0, %v2924
      %v2926 = vpop.f32.mrb[0].mxu0
      %v2927 = vpop.f32.mrb[0].mxu0
      %v2928 = vadd.f32 0.0, %v2927
      %v2929 = vpop.f32.mrb[0].mxu0
      %2930 = vmatprep.mubr.bf16.mxu0 0
      %2931 = vmatmul.mubr.bf16.gmra.mrb[0].mxu0 %v2870
      %v2932 = vpop.f32.mrb[0].mxu0
      %v2933 = vadd.f32 0.0, %v2932
      %v2934 = vpop.f32.mrb[0].mxu0
      %v2935 = vpop.f32.mrb[0].mxu0
      %v2936 = vadd.f32 0.0, %v2935
      %v2937 = vpop.f32.mrb[0].mxu0
      %2938 = vmatprep.mubr.bf16.mxu0 0
      %2939 = vmatmul.mubr.bf16.gmra.mrb[0].mxu0 %v2873
      %v2940 = vpop.f32.mrb[0].mxu0
      %v2941 = vadd.f32 0.0, %v2940
      %v2942 = vpop.f32.mrb[0].mxu0
      %v2943 = vpop.f32.mrb[0].mxu0
      %v2944 = vadd.f32 0.0, %v2943
      %v2945 = vpop.f32.mrb[0].mxu0
      %2946 = vmatprep.mubr.bf16.mxu0 0
      %2947 = vmatmul.mubr.bf16.gmra.mrb[0].mxu0 %v2876
      %v2948 = vpop.f32.mrb[0].mxu0
      %v2949 = vadd.f32 0.0, %v2948
      %v2950 = vpop.f32.mrb[0].mxu0
      %v2951 = vpop.f32.mrb[0].mxu0
      %v2952 = vadd.f32 0.0, %v2951
      %v2953 = vpop.f32.mrb[0].mxu0
      %2954 = vmatprep.mubr.bf16.mxu0 0
      %2955 = vmatmul.mubr.bf16.gmra.mrb[0].mxu0 %v2879
      %v2956 = vpop.f32.mrb[0].mxu0
      %v2957 = vadd.f32 0.0, %v2956
      %v2958 = vpop.f32.mrb[0].mxu0
      %v2959 = vpop.f32.mrb[0].mxu0
      %v2960 = vadd.f32 0.0, %v2959
      %v2961 = vpop.f32.mrb[0].mxu0
      %2962 = vmatprep.mubr.bf16.mxu0 0
      %2963 = vmatmul.mubr.bf16.gmra.mrb[0].mxu0 %v2882
      %v2964 = vpop.f32.mrb[0].mxu0
      %v2965 = vadd.f32 0.0, %v2964
      %v2966 = vpop.f32.mrb[0].mxu0
      %v2967 = vpop.f32.mrb[0].mxu0
      %v2968 = vadd.f32 0.0, %v2967
      %v2969 = vpop.f32.mrb[0].mxu0
      %2970 = vmatprep.mubr.bf16.mxu0 0
      %2971 = vmatmul.mubr.bf16.gmra.mrb[0].mxu0 %v2885
      %v2972 = vpop.f32.mrb[0].mxu0
      %v2973 = vadd.f32 0.0, %v2972
      %v2974 = vpop.f32.mrb[0].mxu0
      %v2975 = vpop.f32.mrb[0].mxu0
      %v2976 = vadd.f32 0.0, %v2975
      %v2977 = vpop.f32.mrb[0].mxu0
      %2978 = vmatprep.mubr.bf16.mxu0 0
      %2979 = vmatmul.mubr.bf16.gmra.mrb[0].mxu0 %v2888
      %v2980 = vpop.f32.mrb[0].mxu0
      %v2981 = vadd.f32 0.0, %v2980
      %v2982 = vpop.f32.mrb[0].mxu0
      %v2983 = vpop.f32.mrb[0].mxu0
      %v2984 = vadd.f32 0.0, %v2983
      %v2985 = vpop.f32.mrb[0].mxu0
      %2986 = vdwg.mxu0
      %v2989 = vunpack.c.l.b16 %v2729
      %v2990 = vunpack.c.l.b16 %v2730
      %v2991 = vpack.c.b16 %v2990, %v2989
      %v2994 = vsel %vm948, %v2709, 0
      %v2997 = vsel %vm948, %v2710, 0
      %v3000 = vsel %vm948, %v2711, 0
      %v3003 = vsel %vm948, %v2712, 0
      %v3006 = vsel %vm948, %v2713, 0
      %v3009 = vsel %vm948, %v2714, 0
      %v3012 = vsel %vm948, %v2715, 0
      %v3015 = vsel %vm948, %v2716, 0
      %3017 = vmatprep.subr.bf16.mxu0 0
      %3018 = vmatpush1.bf16.msra.mxu0 %v2991
      %3019 = vmatprep.subr.bf16.mxu0 0
      %3020 = vmatpush1.bf16.msra.mxu0 0
      %3021 = vmatprep.subr.bf16.mxu0 0
      %3022 = vmatpush1.bf16.msra.mxu0 0
      %3023 = vmatprep.subr.bf16.mxu0 0
      %3024 = vmatpush1.bf16.msra.mxu0 0
      %3025 = vmatprep.subr.bf16.mxu0 0
      %3026 = vmatpush1.bf16.msra.mxu0 0
      %3027 = vmatprep.subr.bf16.mxu0 0
      %3028 = vmatpush1.bf16.msra.mxu0 0
      %3029 = vmatprep.subr.bf16.mxu0 0
      %3030 = vmatpush1.bf16.msra.mxu0 0
      %3031 = vmatprep.subr.bf16.mxu0 0
      %3032 = vmatpush1.bf16.msra.mxu0 0
      %3033 = vmatprep.subr.bf16.mxu0 0
      %3034 = vmatpush1.bf16.msra.mxu0 0
      %3035 = vmatprep.subr.bf16.mxu0 0
      %3036 = vmatpush1.bf16.msra.mxu0 0
      %3037 = vmatprep.subr.bf16.mxu0 0
      %3038 = vmatpush1.bf16.msra.mxu0 0
      %3039 = vmatprep.subr.bf16.mxu0 0
      %3040 = vmatpush1.bf16.msra.mxu0 0
      %3041 = vmatprep.subr.bf16.mxu0 0
      %3042 = vmatpush1.bf16.msra.mxu0 0
      %3043 = vmatprep.subr.bf16.mxu0 0
      %3044 = vmatpush1.bf16.msra.mxu0 0
      %3045 = vmatprep.subr.bf16.mxu0 0
      %3046 = vmatpush1.bf16.msra.mxu0 0
      %3047 = vmatprep.subr.bf16.mxu0 0
      %3048 = vmatpush1.bf16.msra.mxu0 0
      %3049 = vmatprep.mubr.bf16.mxu0 0
      %3050 = vmatmul.mubr.bf16.gmra.mrb[0].mxu0 %v2994
      %v3051 = vpop.f32.mrb[0].mxu0
      %v3052 = vadd.f32 0.0, %v3051
      %v3053 = vpop.f32.mrb[0].mxu0
      %v3054 = vpop.f32.mrb[0].mxu0
      %v3055 = vadd.f32 0.0, %v3054
      %v3056 = vpop.f32.mrb[0].mxu0
      %3057 = vmatprep.mubr.bf16.mxu0 0
      %3058 = vmatmul.mubr.bf16.gmra.mrb[0].mxu0 %v2997
      %v3059 = vpop.f32.mrb[0].mxu0
      %v3060 = vadd.f32 0.0, %v3059
      %v3061 = vpop.f32.mrb[0].mxu0
      %v3062 = vpop.f32.mrb[0].mxu0
      %v3063 = vadd.f32 0.0, %v3062
      %v3064 = vpop.f32.mrb[0].mxu0
      %3065 = vmatprep.mubr.bf16.mxu0 0
      %3066 = vmatmul.mubr.bf16.gmra.mrb[0].mxu0 %v3000
      %v3067 = vpop.f32.mrb[0].mxu0
      %v3068 = vadd.f32 0.0, %v3067
      %v3069 = vpop.f32.mrb[0].mxu0
      %v3070 = vpop.f32.mrb[0].mxu0
      %v3071 = vadd.f32 0.0, %v3070
      %v3072 = vpop.f32.mrb[0].mxu0
      %3073 = vmatprep.mubr.bf16.mxu0 0
      %3074 = vmatmul.mubr.bf16.gmra.mrb[0].mxu0 %v3003
      %v3075 = vpop.f32.mrb[0].mxu0
      %v3076 = vadd.f32 0.0, %v3075
      %v3077 = vpop.f32.mrb[0].mxu0
      %v3078 = vpop.f32.mrb[0].mxu0
      %v3079 = vadd.f32 0.0, %v3078
      %v3080 = vpop.f32.mrb[0].mxu0
      %3081 = vmatprep.mubr.bf16.mxu0 0
      %3082 = vmatmul.mubr.bf16.gmra.mrb[0].mxu0 %v3006
      %v3083 = vpop.f32.mrb[0].mxu0
      %v3084 = vadd.f32 0.0, %v3083
      %v3085 = vpop.f32.mrb[0].mxu0
      %v3086 = vpop.f32.mrb[0].mxu0
      %v3087 = vadd.f32 0.0, %v3086
      %v3088 = vpop.f32.mrb[0].mxu0
      %3089 = vmatprep.mubr.bf16.mxu0 0
      %3090 = vmatmul.mubr.bf16.gmra.mrb[0].mxu0 %v3009
      %v3091 = vpop.f32.mrb[0].mxu0
      %v3092 = vadd.f32 0.0, %v3091
      %v3093 = vpop.f32.mrb[0].mxu0
      %v3094 = vpop.f32.mrb[0].mxu0
      %v3095 = vadd.f32 0.0, %v3094
      %v3096 = vpop.f32.mrb[0].mxu0
      %3097 = vmatprep.mubr.bf16.mxu0 0
      %3098 = vmatmul.mubr.bf16.gmra.mrb[0].mxu0 %v3012
      %v3099 = vpop.f32.mrb[0].mxu0
      %v3100 = vadd.f32 0.0, %v3099
      %v3101 = vpop.f32.mrb[0].mxu0
      %v3102 = vpop.f32.mrb[0].mxu0
      %v3103 = vadd.f32 0.0, %v3102
      %v3104 = vpop.f32.mrb[0].mxu0
      %3105 = vmatprep.mubr.bf16.mxu0 0
      %3106 = vmatmul.mubr.bf16.gmra.mrb[0].mxu0 %v3015
      %v3107 = vpop.f32.mrb[0].mxu0
      %v3108 = vadd.f32 0.0, %v3107
      %v3109 = vpop.f32.mrb[0].mxu0
      %v3110 = vpop.f32.mrb[0].mxu0
      %v3111 = vadd.f32 0.0, %v3110
      %v3112 = vpop.f32.mrb[0].mxu0
      %3113 = vdwg.mxu0
      %v3116 = vunpack.c.l.b16 %v2731
      %v3117 = vunpack.c.l.b16 %v2732
      %v3118 = vpack.c.b16 %v3117, %v3116
      %v3121 = vsel %vm948, %v2717, 0
      %v3124 = vsel %vm948, %v2718, 0
      %v3127 = vsel %vm948, %v2719, 0
      %v3130 = vsel %vm948, %v2720, 0
      %v3133 = vsel %vm948, %v2721, 0
      %v3136 = vsel %vm948, %v2722, 0
      %v3139 = vsel %vm948, %v2723, 0
      %v3142 = vsel %vm948, %v2724, 0
      %3144 = vmatprep.subr.bf16.mxu0 0
      %3145 = vmatpush1.bf16.msra.mxu0 %v3118
      %3146 = vmatprep.subr.bf16.mxu0 0
      %3147 = vmatpush1.bf16.msra.mxu0 0
      %3148 = vmatprep.subr.bf16.mxu0 0
      %3149 = vmatpush1.bf16.msra.mxu0 0
      %3150 = vmatprep.subr.bf16.mxu0 0
      %3151 = vmatpush1.bf16.msra.mxu0 0
      %3152 = vmatprep.subr.bf16.mxu0 0
      %3153 = vmatpush1.bf16.msra.mxu0 0
      %3154 = vmatprep.subr.bf16.mxu0 0
      %3155 = vmatpush1.bf16.msra.mxu0 0
      %3156 = vmatprep.subr.bf16.mxu0 0
      %3157 = vmatpush1.bf16.msra.mxu0 0
      %3158 = vmatprep.subr.bf16.mxu0 0
      %3159 = vmatpush1.bf16.msra.mxu0 0
      %3160 = vmatprep.subr.bf16.mxu0 0
      %3161 = vmatpush1.bf16.msra.mxu0 0
      %3162 = vmatprep.subr.bf16.mxu0 0
      %3163 = vmatpush1.bf16.msra.mxu0 0
      %3164 = vmatprep.subr.bf16.mxu0 0
      %3165 = vmatpush1.bf16.msra.mxu0 0
      %3166 = vmatprep.subr.bf16.mxu0 0
      %3167 = vmatpush1.bf16.msra.mxu0 0
      %3168 = vmatprep.subr.bf16.mxu0 0
      %3169 = vmatpush1.bf16.msra.mxu0 0
      %3170 = vmatprep.subr.bf16.mxu0 0
      %3171 = vmatpush1.bf16.msra.mxu0 0
      %3172 = vmatprep.subr.bf16.mxu0 0
      %3173 = vmatpush1.bf16.msra.mxu0 0
      %3174 = vmatprep.subr.bf16.mxu0 0
      %3175 = vmatpush1.bf16.msra.mxu0 0
      %3176 = vmatprep.mubr.bf16.mxu0 0
      %3177 = vmatmul.mubr.bf16.gmra.mrb[0].mxu0 %v3121
      %v3178 = vpop.f32.mrb[0].mxu0
      %v3179 = vadd.f32 0.0, %v3178
      %v3180 = vpop.f32.mrb[0].mxu0
      %v3181 = vpop.f32.mrb[0].mxu0
      %v3182 = vadd.f32 0.0, %v3181
      %v3183 = vpop.f32.mrb[0].mxu0
      %3184 = vmatprep.mubr.bf16.mxu0 0
      %3185 = vmatmul.mubr.bf16.gmra.mrb[0].mxu0 %v3124
      %v3186 = vpop.f32.mrb[0].mxu0
      %v3187 = vadd.f32 0.0, %v3186
      %v3188 = vpop.f32.mrb[0].mxu0
      %v3189 = vpop.f32.mrb[0].mxu0
      %v3190 = vadd.f32 0.0, %v3189
      %v3191 = vpop.f32.mrb[0].mxu0
      %3192 = vmatprep.mubr.bf16.mxu0 0
      %3193 = vmatmul.mubr.bf16.gmra.mrb[0].mxu0 %v3127
      %v3194 = vpop.f32.mrb[0].mxu0
      %v3195 = vadd.f32 0.0, %v3194
      %v3196 = vpop.f32.mrb[0].mxu0
      %v3197 = vpop.f32.mrb[0].mxu0
      %v3198 = vadd.f32 0.0, %v3197
      %v3199 = vpop.f32.mrb[0].mxu0
      %3200 = vmatprep.mubr.bf16.mxu0 0
      %3201 = vmatmul.mubr.bf16.gmra.mrb[0].mxu0 %v3130
      %v3202 = vpop.f32.mrb[0].mxu0
      %v3203 = vadd.f32 0.0, %v3202
      %v3204 = vpop.f32.mrb[0].mxu0
      %v3205 = vpop.f32.mrb[0].mxu0
      %v3206 = vadd.f32 0.0, %v3205
      %v3207 = vpop.f32.mrb[0].mxu0
      %3208 = vmatprep.mubr.bf16.mxu0 0
      %3209 = vmatmul.mubr.bf16.gmra.mrb[0].mxu0 %v3133
      %v3210 = vpop.f32.mrb[0].mxu0
      %v3211 = vadd.f32 0.0, %v3210
      %v3212 = vpop.f32.mrb[0].mxu0
      %v3213 = vpop.f32.mrb[0].mxu0
      %v3214 = vadd.f32 0.0, %v3213
      %v3215 = vpop.f32.mrb[0].mxu0
      %3216 = vmatprep.mubr.bf16.mxu0 0
      %3217 = vmatmul.mubr.bf16.gmra.mrb[0].mxu0 %v3136
      %v3218 = vpop.f32.mrb[0].mxu0
      %v3219 = vadd.f32 0.0, %v3218
      %v3220 = vpop.f32.mrb[0].mxu0
      %v3221 = vpop.f32.mrb[0].mxu0
      %v3222 = vadd.f32 0.0, %v3221
      %v3223 = vpop.f32.mrb[0].mxu0
      %3224 = vmatprep.mubr.bf16.mxu0 0
      %3225 = vmatmul.mubr.bf16.gmra.mrb[0].mxu0 %v3139
      %v3226 = vpop.f32.mrb[0].mxu0
      %v3227 = vadd.f32 0.0, %v3226
      %v3228 = vpop.f32.mrb[0].mxu0
      %v3229 = vpop.f32.mrb[0].mxu0
      %v3230 = vadd.f32 0.0, %v3229
      %v3231 = vpop.f32.mrb[0].mxu0
      %3232 = vmatprep.mubr.bf16.mxu0 0
      %3233 = vmatmul.mubr.bf16.gmra.mrb[0].mxu0 %v3142
      %v3234 = vpop.f32.mrb[0].mxu0
      %v3235 = vadd.f32 0.0, %v3234
      %v3236 = vpop.f32.mrb[0].mxu0
      %v3237 = vpop.f32.mrb[0].mxu0
      %v3238 = vadd.f32 0.0, %v3237
      %v3239 = vpop.f32.mrb[0].mxu0
      %3240 = vdwg.mxu0
      %v3241 = vsel %vm271, %v2798, 0.0
      %v3242 = vsel %vm271, %v2925, 0.0
      %v3243 = vadd.f32 %v3241, %v3242
      %v3244 = vsel %vm271, %v3052, 0.0
      %v3245 = vadd.f32 %v3243, %v3244
      %v3246 = vsel %vm271, %v3179, 0.0
      %v3247 = vadd.f32 %v3245, %v3246
      %v3248 = vsel %vm271, %v2801, 0.0
      %v3249 = vsel %vm271, %v2928, 0.0
      %v3250 = vadd.f32 %v3248, %v3249
      %v3251 = vsel %vm271, %v3055, 0.0
      %v3252 = vadd.f32 %v3250, %v3251
      %v3253 = vsel %vm271, %v3182, 0.0
      %v3254 = vadd.f32 %v3252, %v3253
      %v3255 = vsel %vm271, %v2806, 0.0
      %v3256 = vsel %vm271, %v2933, 0.0
      %v3257 = vadd.f32 %v3255, %v3256
      %v3258 = vsel %vm271, %v3060, 0.0
      %v3259 = vadd.f32 %v3257, %v3258
      %v3260 = vsel %vm271, %v3187, 0.0
      %v3261 = vadd.f32 %v3259, %v3260
      %v3262 = vsel %vm271, %v2809, 0.0
      %v3263 = vsel %vm271, %v2936, 0.0
      %v3264 = vadd.f32 %v3262, %v3263
      %v3265 = vsel %vm271, %v3063, 0.0
      %v3266 = vadd.f32 %v3264, %v3265
      %v3267 = vsel %vm271, %v3190, 0.0
      %v3268 = vadd.f32 %v3266, %v3267
      %v3269 = vsel %vm271, %v2814, 0.0
      %v3270 = vsel %vm271, %v2941, 0.0
      %v3271 = vadd.f32 %v3269, %v3270
      %v3272 = vsel %vm271, %v3068, 0.0
      %v3273 = vadd.f32 %v3271, %v3272
      %v3274 = vsel %vm271, %v3195, 0.0
      %v3275 = vadd.f32 %v3273, %v3274
      %v3276 = vsel %vm271, %v2817, 0.0
      %v3277 = vsel %vm271, %v2944, 0.0
      %v3278 = vadd.f32 %v3276, %v3277
      %v3279 = vsel %vm271, %v3071, 0.0
      %v3280 = vadd.f32 %v3278, %v3279
      %v3281 = vsel %vm271, %v3198, 0.0
      %v3282 = vadd.f32 %v3280, %v3281
      %v3283 = vsel %vm271, %v2822, 0.0
      %v3284 = vsel %vm271, %v2949, 0.0
      %v3285 = vadd.f32 %v3283, %v3284
      %v3286 = vsel %vm271, %v3076, 0.0
      %v3287 = vadd.f32 %v3285, %v3286
      %v3288 = vsel %vm271, %v3203, 0.0
      %v3289 = vadd.f32 %v3287, %v3288
      %v3290 = vsel %vm271, %v2825, 0.0
      %v3291 = vsel %vm271, %v2952, 0.0
      %v3292 = vadd.f32 %v3290, %v3291
      %v3293 = vsel %vm271, %v3079, 0.0
      %v3294 = vadd.f32 %v3292, %v3293
      %v3295 = vsel %vm271, %v3206, 0.0
      %v3296 = vadd.f32 %v3294, %v3295
      %v3297 = vsel %vm271, %v2830, 0.0
      %v3298 = vsel %vm271, %v2957, 0.0
      %v3299 = vadd.f32 %v3297, %v3298
      %v3300 = vsel %vm271, %v3084, 0.0
      %v3301 = vadd.f32 %v3299, %v3300
      %v3302 = vsel %vm271, %v3211, 0.0
      %v3303 = vadd.f32 %v3301, %v3302
      %v3304 = vsel %vm271, %v2833, 0.0
      %v3305 = vsel %vm271, %v2960, 0.0
      %v3306 = vadd.f32 %v3304, %v3305
      %v3307 = vsel %vm271, %v3087, 0.0
      %v3308 = vadd.f32 %v3306, %v3307
      %v3309 = vsel %vm271, %v3214, 0.0
      %v3310 = vadd.f32 %v3308, %v3309
      %v3311 = vsel %vm271, %v2838, 0.0
      %v3312 = vsel %vm271, %v2965, 0.0
      %v3313 = vadd.f32 %v3311, %v3312
      %v3314 = vsel %vm271, %v3092, 0.0
      %v3315 = vadd.f32 %v3313, %v3314
      %v3316 = vsel %vm271, %v3219, 0.0
      %v3317 = vadd.f32 %v3315, %v3316
      %v3318 = vsel %vm271, %v2841, 0.0
      %v3319 = vsel %vm271, %v2968, 0.0
      %v3320 = vadd.f32 %v3318, %v3319
      %v3321 = vsel %vm271, %v3095, 0.0
      %v3322 = vadd.f32 %v3320, %v3321
      %v3323 = vsel %vm271, %v3222, 0.0
      %v3324 = vadd.f32 %v3322, %v3323
      %v3325 = vsel %vm271, %v2846, 0.0
      %v3326 = vsel %vm271, %v2973, 0.0
      %v3327 = vadd.f32 %v3325, %v3326
      %v3328 = vsel %vm271, %v3100, 0.0
      %v3329 = vadd.f32 %v3327, %v3328
      %v3330 = vsel %vm271, %v3227, 0.0
      %v3331 = vadd.f32 %v3329, %v3330
      %v3332 = vsel %vm271, %v2849, 0.0
      %v3333 = vsel %vm271, %v2976, 0.0
      %v3334 = vadd.f32 %v3332, %v3333
      %v3335 = vsel %vm271, %v3103, 0.0
      %v3336 = vadd.f32 %v3334, %v3335
      %v3337 = vsel %vm271, %v3230, 0.0
      %v3338 = vadd.f32 %v3336, %v3337
      %v3339 = vsel %vm271, %v2854, 0.0
      %v3340 = vsel %vm271, %v2981, 0.0
      %v3341 = vadd.f32 %v3339, %v3340
      %v3342 = vsel %vm271, %v3108, 0.0
      %v3343 = vadd.f32 %v3341, %v3342
      %v3344 = vsel %vm271, %v3235, 0.0
      %v3345 = vadd.f32 %v3343, %v3344
      %v3346 = vsel %vm271, %v2857, 0.0
      %v3347 = vsel %vm271, %v2984, 0.0
      %v3348 = vadd.f32 %v3346, %v3347
      %v3349 = vsel %vm271, %v3111, 0.0
      %v3350 = vadd.f32 %v3348, %v3349
      %v3351 = vsel %vm271, %v3238, 0.0
      %v3352 = vadd.f32 %v3350, %v3351
      %v3353 = vld [vmem:[%s3] sm:$0x1]
      %v3355 = vlaneseq
      %v3356 = vshrl.u32 %v3355, 7
      %v3357 = vsub.s32 0, %v3356
      %v3358 = vrot.slane %v3353, %v3357
      %v3360 = vadd.f32 %v3247, %v3358
      %v3361 = vadd.f32 %v3254, %v3358
      %v3362 = vadd.f32 %v3261, %v3358
      %v3363 = vadd.f32 %v3268, %v3358
      %v3364 = vadd.f32 %v3275, %v3358
      %v3365 = vadd.f32 %v3282, %v3358
      %v3366 = vadd.f32 %v3289, %v3358
      %v3367 = vadd.f32 %v3296, %v3358
      %v3368 = vadd.f32 %v3303, %v3358
      %v3369 = vadd.f32 %v3310, %v3358
      %v3370 = vadd.f32 %v3317, %v3358
      %v3371 = vadd.f32 %v3324, %v3358
      %v3372 = vadd.f32 %v3331, %v3358
      %v3373 = vadd.f32 %v3338, %v3358
      %v3374 = vadd.f32 %v3345, %v3358
      %v3375 = vadd.f32 %v3352, %v3358
      %3376 = vst.msk [vmem:[%s197] sm:$0xff] %vm271, %v3360
      %3377 = vst.msk [vmem:[%s197 + $0x8] sm:$0xff] %vm271, %v3361
      %3378 = vst.msk [vmem:[%s197 + $0x10] sm:$0xff] %vm271, %v3362
      %3379 = vst.msk [vmem:[%s197 + $0x18] sm:$0xff] %vm271, %v3363
      %3380 = vst.msk [vmem:[%s197 + $0x20] sm:$0xff] %vm271, %v3364
      %3381 = vst.msk [vmem:[%s197 + $0x28] sm:$0xff] %vm271, %v3365
      %3382 = vst.msk [vmem:[%s197 + $0x30] sm:$0xff] %vm271, %v3366
      %3383 = vst.msk [vmem:[%s197 + $0x38] sm:$0xff] %vm271, %v3367
      %3384 = vst.msk [vmem:[%s197 + $0x40] sm:$0xff] %vm271, %v3368
      %3385 = vst.msk [vmem:[%s197 + $0x48] sm:$0xff] %vm271, %v3369
      %3386 = vst.msk [vmem:[%s197 + $0x50] sm:$0xff] %vm271, %v3370
      %3387 = vst.msk [vmem:[%s197 + $0x58] sm:$0xff] %vm271, %v3371
      %3388 = vst.msk [vmem:[%s197 + $0x60] sm:$0xff] %vm271, %v3372
      %3389 = vst.msk [vmem:[%s197 + $0x68] sm:$0xff] %vm271, %v3373
      %3390 = vst.msk [vmem:[%s197 + $0x70] sm:$0xff] %vm271, %v3374
      %3391 = vst.msk [vmem:[%s197 + $0x78] sm:$0xff] %vm271, %v3375
      %p3392 = scmp.lt.s32.totalorder %s15, 1
      %s3393 = scalar_select %p3392, %s15, 1
      %s3394 = smul.addr %s3393, 16
      %s3395 = smul.addr %s3394, 8
      %s3396 = scalar_lea.vmem %s4, %s3395
      // Predicated region
      $region37: #{tpu_custom_call.1} parent=35 // pred_check
        %p3397 = pneg %p122
      $region38: #{tpu_custom_call.1} parent=35 // pred_check_branch
        %3399 = sbr.rel (%p3397) target = $region40
      $region39: #{tpu_custom_call.1} parent=35 // pred_region
        _
      $region40: #{tpu_custom_call.1} parent=35 // pred_fallthru
        _
    $region36: #{tpu_custom_call.1} parent=5 // pred_fallthru
      _
    %p3400 = scmp.le.s32.totalorder 2, %s10
    // Predicated region
    $region41: #{tpu_custom_call.1} parent=5 // pred_check
      %p3401 = pneg %p3400
    $region42: #{tpu_custom_call.1} parent=5 // pred_check_branch
      %3403 = sbr.rel (%p3401) target = $region44
    $region43: #{tpu_custom_call.1} parent=5 // pred_region
      %s3404 = ssub.s32 %s10, 2
      // Predicated region
      $region45: #{tpu_custom_call.1} parent=43 // pred_check
        %p3405 = pneg %p128
      $region46: #{tpu_custom_call.1} parent=43 // pred_check_branch
        %3407 = sbr.rel (%p3405) target = $region48
      $region47: #{tpu_custom_call.1} parent=43 // pred_region
        %p3408 = scmp.lt.s32.totalorder %s16, 1
        %s3409 = scalar_select %p3408, %s16, 1
        %s3410 = smul.addr %s3409, 16
        %s3411 = smul.addr %s3410, 8
        %s3412 = scalar_lea.vmem %s4, %s3411
      $region48: #{tpu_custom_call.1} parent=43 // pred_fallthru
        _
    $region44: #{tpu_custom_call.1} parent=5 // pred_fallthru
      _
  $region6: #{tpu_custom_call.1} parent=0 // loop_footer
    %s14 = sadd.s32 1, %s10
  $region7: #{tpu_custom_call.1} parent=0 // loop_footer_branch
    %9 = sbr.rel target = $region3
  $region8: #{tpu_custom_call.1} parent=0 // loop_exit
    _

</llo_original>
